<compile_context>
chip_gen: v7x
topology: tpu7x:2x2x1
jax: 0.10.0
libtpu: 0.0.40
codegen_flags: <defaults>
</compile_context>

<pallas_src>
import functools

import jax
import jax.numpy as jnp
from jax.experimental import pallas as pl
from jax.experimental.pallas import tpu as pltpu

LANE = 128          # TPU lane width: channel dims are padded to multiples of it
EPS = 1e-5          # PyTorch BatchNorm2d default eps


def _round_up(n, m):
    return ((n + m - 1) // m) * m


def _pick_row_tile(n):
    """A row-tile that divides n and is a sublane multiple (else full n)."""
    for t in (256, 512, 1024, 128, 64, 32, 16, 8):
        if n % t == 0:
            return t
    return n


def _compiler_params():
    # 32 MiB: above the v5e scoped default, well inside v7x's 64 MiB physical
    # VMEM; the per-sample blocks below stay far under it even at real
    # EfficientNet shapes.
    return pltpu.CompilerParams(
        dimension_semantics=("parallel",),
        vmem_limit_bytes=32 * 1024 * 1024,
    )


# --------------------------------------------------------------------------- #
# pass 1: depthwise conv (per sample) + BN1 partial statistics
# --------------------------------------------------------------------------- #
def _dw_kernel(x_ref, wdw_ref, dw_ref, sum_ref, sq_ref, xpad,
               *, H, W, Ho, Wo, Cp, K, s, p):
    # Zero-filled padded scratch supplies the conv halo.  Re-zeroed every grid
    # step so correctness never depends on how the grid is split across cores.
    xpad[...] = jnp.zeros_like(xpad)
    xpad[p:p + H, p:p + W, :] = x_ref[0]

    # Depthwise conv: statically unrolled over K*K taps, each tap read straight
    # from the scratch ref (no materialised full-size shifted copies).
    acc = jnp.zeros((Ho, Wo, Cp), jnp.float32)
    for ki in range(K):
        for kj in range(K):
            if s == 1:
                tap = xpad[ki:ki + Ho, kj:kj + Wo, :]
            else:
                # TODO(synk): stride>1 path (strided pl.ds reads) is untested on
                # hardware; every DepthwiseSeparableConv in EfficientNetB3 uses
                # stride=1 (stride-2 only appears in InvertedResidual blocks).
                tap = xpad[pl.ds(ki, Ho, stride=s), pl.ds(kj, Wo, stride=s), :]
            w_tap = wdw_ref[ki * K + kj:ki * K + kj + 1, :]     # (1, Cp)
            acc = acc + tap * w_tap

    x2 = acc.reshape(Ho * Wo, Cp)            # canonical (rows, channels) view
    dw_ref[0] = x2
    # Per-sample BN1 partials; the (tiny) global reduction finishes outside.
    sum_ref[0] = jnp.sum(x2, axis=0, keepdims=True)
    sq_ref[0] = jnp.sum(x2 * x2, axis=0, keepdims=True)


# --------------------------------------------------------------------------- #
# pass 2: BN1 (global stats) + SiLU + SqueezeExcite + 1x1 pointwise conv
# --------------------------------------------------------------------------- #
def _bn1_se_pw_kernel(dw_ref, a1_ref, c1_ref, wr_ref, br_ref, we_ref, be_ref,
                      wpw_ref, y_ref, ysum_ref, ysq_ref):
    x = dw_ref[0]                                       # (HW, Cp) fp32
    # BN1 folded to per-channel scale/shift from *global* batch statistics.
    x = x * a1_ref[...] + c1_ref[...]
    x = x * jax.nn.sigmoid(x)                           # SiLU

    # SqueezeExcite.  GAP is per-sample, hence fully local to this grid step.
    # Kept off the MXU: VPU broadcasts + XLU reduces (rd is tiny).
    pooled = jnp.mean(x, axis=0, keepdims=True)                               # (1, Cp)
    r = jnp.sum(pooled * wr_ref[...], axis=-1, keepdims=True) + br_ref[...]   # (rd, 1)
    r = r * jax.nn.sigmoid(r)                                                 # SiLU
    e = jnp.sum(r * we_ref[...], axis=0, keepdims=True) + be_ref[...]         # (1, Cp)
    x = x * jax.nn.sigmoid(e)                                                 # gate

    # 1x1 pointwise conv: lane-dense MXU matmul, bf16 operands, fp32 accumulate.
    y = jnp.dot(x.astype(jnp.bfloat16), wpw_ref[...],
                preferred_element_type=jnp.float32)     # (HW, CoutP)
    y_ref[0] = y
    ysum_ref[0] = jnp.sum(y, axis=0, keepdims=True)
    ysq_ref[0] = jnp.sum(y * y, axis=0, keepdims=True)


# --------------------------------------------------------------------------- #
# pass 3: BN2 (global stats) + SiLU, tiled over lane-dense row blocks
# --------------------------------------------------------------------------- #
def _bn2_act_kernel(y_ref, a2_ref, c2_ref, o_ref):
    y = y_ref[...] * a2_ref[...] + c2_ref[...]
    o_ref[...] = y * jax.nn.sigmoid(y)


# --------------------------------------------------------------------------- #
# parameter preparation: PyTorch-shaped params -> lane-padded kernel layouts
# --------------------------------------------------------------------------- #
def _prepare_params(params, kernel_size):
    K = kernel_size
    C = params["w_dw"].shape[0]
    Cout = params["w_pw"].shape[0]
    rd = params["se_wr"].shape[0]
    Cp = _round_up(C, LANE)
    CoutP = _round_up(Cout, LANE)

    def pad_to(a, axis, size):
        widths = [(0, 0)] * a.ndim
        widths[axis] = (0, size - a.shape[axis])
        return jnp.pad(a, widths)

    w_dw = pad_to(params["w_dw"].reshape(C, K * K).T, 1, Cp)       # (K*K, Cp)
    g1 = pad_to(params["bn1_g"], 0, Cp)                            # (Cp,)
    b1 = pad_to(params["bn1_b"], 0, Cp)
    wr = pad_to(params["se_wr"].reshape(rd, C), 1, Cp)             # (rd, Cp)
    br = params["se_br"].reshape(rd, 1)                            # (rd, 1)
    we = pad_to(params["se_we"].reshape(C, rd).T, 1, Cp)           # (rd, Cp)
    be = pad_to(params["se_be"].reshape(1, C), 1, Cp)              # (1, Cp)
    wpw = pad_to(pad_to(params["w_pw"].reshape(Cout, C).T, 0, Cp), 1, CoutP)
    wpw = wpw.astype(jnp.bfloat16)                                 # (Cp, CoutP)
    g2 = pad_to(params["bn2_g"], 0, CoutP)
    b2 = pad_to(params["bn2_b"], 0, CoutP)
    return dict(C=C, Cout=Cout, rd=rd, Cp=Cp, CoutP=CoutP,
                w_dw=w_dw, g1=g1, b1=b1, wr=wr, br=br, we=we, be=be,
                wpw=wpw, g2=g2, b2=b2)


# --------------------------------------------------------------------------- #
# wrappers
# --------------------------------------------------------------------------- #
def depthwise_separable_conv_nhwc(x, params, *, kernel_size, stride):
    """x: (B, H, W, C) fp32 NHWC -> (B, Ho, Wo, Cout) fp32 NHWC."""
    B, H, W, C = x.shape
    K, s, p = kernel_size, stride, kernel_size // 2
    Ho = (H + 2 * p - K) // s + 1
    Wo = (W + 2 * p - K) // s + 1
    HW = Ho * Wo

    kp = _prepare_params(params, kernel_size)
    Cp, CoutP, rd, Cout = kp["Cp"], kp["CoutP"], kp["rd"], kp["Cout"]

    # Lane-pad the channel axis once (zero channels are exactly inert through
    # the whole block); spatial halo padding happens inside pass 1 in VMEM.
    xc = jnp.pad(x.astype(jnp.float32), ((0, 0), (0, 0), (0, 0), (0, Cp - C)))

    cparams = _compiler_params()

    # ------------- pass 1: depthwise conv + BN1 partial statistics ----------
    dw_kern = functools.partial(_dw_kernel, H=H, W=W, Ho=Ho, Wo=Wo, Cp=Cp,
                                K=K, s=s, p=p)
    dw, s1, q1 = pl.pallas_call(
        dw_kern,
        grid=(B,),
        in_specs=[
            pl.BlockSpec((1, H, W, Cp), lambda b: (b, 0, 0, 0)),
            pl.BlockSpec((K * K, Cp), lambda b: (0, 0)),
        ],
        out_specs=[
            pl.BlockSpec((1, HW, Cp), lambda b: (b, 0, 0)),
            pl.BlockSpec((1, 1, Cp), lambda b: (b, 0, 0)),
            pl.BlockSpec((1, 1, Cp), lambda b: (b, 0, 0)),
        ],
        out_shape=[
            jax.ShapeDtypeStruct((B, HW, Cp), jnp.float32),
            jax.ShapeDtypeStruct((B, 1, Cp), jnp.float32),
            jax.ShapeDtypeStruct((B, 1, Cp), jnp.float32),
        ],
        scratch_shapes=[pltpu.VMEM((H + 2 * p, W + 2 * p, Cp), jnp.float32)],
        compiler_params=cparams,
    )(xc, kp["w_dw"])

    # Tiny cross-tile reduction -> global (training-mode, biased) BN1 stats.
    n1 = float(B * HW)
    mean1 = jnp.sum(s1, axis=(0, 1)) / n1
    var1 = jnp.maximum(jnp.sum(q1, axis=(0, 1)) / n1 - mean1 * mean1, 0.0)
    scale1 = kp["g1"] * jax.lax.rsqrt(var1 + EPS)
    shift1 = kp["b1"] - mean1 * scale1
    a1 = scale1.reshape(1, Cp)
    c1 = shift1.reshape(1, Cp)

    # ------------- pass 2: BN1 + SiLU + SE + pointwise conv -----------------
    y, s2, q2 = pl.pallas_call(
        _bn1_se_pw_kernel,
        grid=(B,),
        in_specs=[
            pl.BlockSpec((1, HW, Cp), lambda b: (b, 0, 0)),
            pl.BlockSpec((1, Cp), lambda b: (0, 0)),
            pl.BlockSpec((1, Cp), lambda b: (0, 0)),
            pl.BlockSpec((rd, Cp), lambda b: (0, 0)),
            pl.BlockSpec((rd, 1), lambda b: (0, 0)),
            pl.BlockSpec((rd, Cp), lambda b: (0, 0)),
            pl.BlockSpec((1, Cp), lambda b: (0, 0)),
            pl.BlockSpec((Cp, CoutP), lambda b: (0, 0)),
        ],
        out_specs=[
            pl.BlockSpec((1, HW, CoutP), lambda b: (b, 0, 0)),
            pl.BlockSpec((1, 1, CoutP), lambda b: (b, 0, 0)),
            pl.BlockSpec((1, 1, CoutP), lambda b: (b, 0, 0)),
        ],
        out_shape=[
            jax.ShapeDtypeStruct((B, HW, CoutP), jnp.float32),
            jax.ShapeDtypeStruct((B, 1, CoutP), jnp.float32),
            jax.ShapeDtypeStruct((B, 1, CoutP), jnp.float32),
        ],
        compiler_params=cparams,
    )(dw, a1, c1, kp["wr"], kp["br"], kp["we"], kp["be"], kp["wpw"])

    n2 = float(B * HW)
    mean2 = jnp.sum(s2, axis=(0, 1)) / n2
    var2 = jnp.maximum(jnp.sum(q2, axis=(0, 1)) / n2 - mean2 * mean2, 0.0)
    scale2 = kp["g2"] * jax.lax.rsqrt(var2 + EPS)
    shift2 = kp["b2"] - mean2 * scale2
    a2 = scale2.reshape(1, CoutP)
    c2 = shift2.reshape(1, CoutP)

    # ------------- pass 3: BN2 + SiLU over lane-dense row blocks ------------
    total = B * HW
    RT = _pick_row_tile(total)
    out_flat = pl.pallas_call(
        _bn2_act_kernel,
        grid=(total // RT,),
        in_specs=[
            pl.BlockSpec((RT, CoutP), lambda i: (i, 0)),
            pl.BlockSpec((1, CoutP), lambda i: (0, 0)),
            pl.BlockSpec((1, CoutP), lambda i: (0, 0)),
        ],
        out_specs=pl.BlockSpec((RT, CoutP), lambda i: (i, 0)),
        out_shape=jax.ShapeDtypeStruct((total, CoutP), jnp.float32),
        compiler_params=cparams,
    )(y.reshape(total, CoutP), a2, c2)

    return out_flat.reshape(B, Ho, Wo, CoutP)[..., :Cout]


def depthwise_separable_conv(x_nchw, params, *, kernel_size, stride):
    """Drop-in NCHW adapter around the NHWC kernels.  A full network should
    stay NHWC end-to-end so the boundary transposes (pure glue) disappear."""
    x = jnp.transpose(x_nchw, (0, 2, 3, 1))
    out = depthwise_separable_conv_nhwc(x, params, kernel_size=kernel_size,
                                        stride=stride)
    return jnp.transpose(out, (0, 3, 1, 2))


# --------------------------------------------------------------------------- #
# deterministic synthetic parameters with PyTorch module shapes
# --------------------------------------------------------------------------- #
def init_params(key, in_chs, out_chs, kernel_size):
    rd = max(1, int(in_chs * 0.25))
    K = kernel_size
    k1, k2, k3, k4 = jax.random.split(key, 4)
    return {
        "w_dw": jax.random.normal(k1, (in_chs, 1, K, K), jnp.float32) * 0.1,
        "bn1_g": jnp.ones((in_chs,), jnp.float32),
        "bn1_b": jnp.zeros((in_chs,), jnp.float32),
        "se_wr": jax.random.normal(k2, (rd, in_chs, 1, 1), jnp.float32) * 0.1,
        "se_br": jnp.zeros((rd,), jnp.float32),
        "se_we": jax.random.normal(k3, (in_chs, rd, 1, 1), jnp.float32) * 0.1,
        "se_be": jnp.zeros((in_chs,), jnp.float32),
        "w_pw": jax.random.normal(k4, (out_chs, in_chs, 1, 1), jnp.float32) * 0.1,
        "bn2_g": jnp.ones((out_chs,), jnp.float32),
        "bn2_b": jnp.zeros((out_chs,), jnp.float32),
    }
    # NOTE: BatchNorm running_mean/running_var buffers are not modelled; the
    # forward pass normalizes with batch statistics exactly like train() mode.


if __name__ == "__main__":
    B, C_in, C_out, H, W = 2, 4, 8, 16, 16
    kernel_size, stride = 3, 1

    key = jax.random.PRNGKey(0)
    kx, kparam = jax.random.split(key)
    x = jax.random.normal(kx, (B, C_in, H, W), jnp.float32)     # NCHW like PyTorch
    params = init_params(kparam, C_in, C_out, kernel_size)

    fn = jax.jit(functools.partial(depthwise_separable_conv,
                                   kernel_size=kernel_size, stride=stride))
    out = fn(x, params)
    jax.block_until_ready(out)
    assert out.shape == (B, C_out, H, W), out.shape
    assert bool(jnp.all(jnp.isfinite(out))), "non-finite output"
    print("KERNEL_OK")
</pallas_src>

<mosaic_0001>
module attributes {stable_mosaic.version = 11 : i64} {
  func.func @_dw_kernel(%arg0: i32, %arg1: memref<1x16x16x128xf32, #tpu.memory_space<vmem>>, %arg2: memref<9x128xf32, #tpu.memory_space<vmem>>, %arg3: memref<1x256x128xf32, #tpu.memory_space<vmem>>, %arg4: memref<1x1x128xf32, #tpu.memory_space<vmem>>, %arg5: memref<1x1x128xf32, #tpu.memory_space<vmem>>, %arg6: memref<18x18x128xf32, #tpu.memory_space<vmem>>) attributes {dimension_semantics = [#tpu.dimension_semantics<parallel>], iteration_bounds = array<i64: 2>, scalar_prefetch = 0 : i64, scratch_operands = 1 : i64, tpu.core_type = #tpu.core_type<tc>, window_params = [{transform_indices = @transform_0, window_bounds = array<i64: 1, 16, 16, 128>}, {pipeline_mode = #tpu.pipeline_mode<synchronous>, transform_indices = @transform_1, window_bounds = array<i64: 9, 128>}, {transform_indices = @transform_2, window_bounds = array<i64: 1, 256, 128>}, {transform_indices = @transform_3, window_bounds = array<i64: 1, 1, 128>}, {transform_indices = @transform_4, window_bounds = array<i64: 1, 1, 128>}]} {
    %cst = arith.constant 0.000000e+00 : f32
    %0 = vector.broadcast %cst : f32 to vector<18x18x128xf32>
    %c0 = arith.constant 0 : index
    %c0_0 = arith.constant 0 : index
    %c0_1 = arith.constant 0 : index
    %1 = vector.load %arg6[%c0, %c0_0, %c0_1] : memref<18x18x128xf32, #tpu.memory_space<vmem>>, vector<18x18x128xf32>
    tpu.vector_store %arg6[%c0, %c0_0, %c0_1], %0 {strides = array<i32>} : memref<18x18x128xf32, #tpu.memory_space<vmem>>, vector<18x18x128xf32>,
    %c0_2 = arith.constant 0 : index
    %c0_3 = arith.constant 0 : index
    %c0_4 = arith.constant 0 : index
    %c0_5 = arith.constant 0 : index
    %2 = vector.load %arg1[%c0_2, %c0_3, %c0_4, %c0_5] : memref<1x16x16x128xf32, #tpu.memory_space<vmem>>, vector<1x16x16x128xf32>
    %3 = vector.shape_cast %2 : vector<1x16x16x128xf32> to vector<16x16x128xf32>
    %c1 = arith.constant 1 : index
    %c1_6 = arith.constant 1 : index
    %c0_7 = arith.constant 0 : index
    %4 = vector.load %arg6[%c1, %c1_6, %c0_7] : memref<18x18x128xf32, #tpu.memory_space<vmem>>, vector<16x16x128xf32>
    tpu.vector_store %arg6[%c1, %c1_6, %c0_7], %3 {strides = array<i32>} : memref<18x18x128xf32, #tpu.memory_space<vmem>>, vector<16x16x128xf32>,
    %cst_8 = arith.constant 0.000000e+00 : f32
    %5 = vector.broadcast %cst_8 : f32 to vector<16x16x128xf32>
    %c0_9 = arith.constant 0 : index
    %c0_10 = arith.constant 0 : index
    %c0_11 = arith.constant 0 : index
    %6 = vector.load %arg6[%c0_9, %c0_10, %c0_11] : memref<18x18x128xf32, #tpu.memory_space<vmem>>, vector<16x16x128xf32>
    %c0_12 = arith.constant 0 : index
    %c0_13 = arith.constant 0 : index
    %7 = vector.load %arg2[%c0_12, %c0_13] : memref<9x128xf32, #tpu.memory_space<vmem>>, vector<1x128xf32>
    %8 = vector.shape_cast %7 : vector<1x128xf32> to vector<1x1x128xf32>
    %9 = vector.broadcast %8 : vector<1x1x128xf32> to vector<16x16x128xf32>
    %10 = arith.mulf %6, %9 : vector<16x16x128xf32>
    %11 = arith.addf %5, %10 : vector<16x16x128xf32>
    %c0_14 = arith.constant 0 : index
    %c1_15 = arith.constant 1 : index
    %c0_16 = arith.constant 0 : index
    %12 = vector.load %arg6[%c0_14, %c1_15, %c0_16] : memref<18x18x128xf32, #tpu.memory_space<vmem>>, vector<16x16x128xf32>
    %c1_17 = arith.constant 1 : index
    %c0_18 = arith.constant 0 : index
    %13 = vector.load %arg2[%c1_17, %c0_18] : memref<9x128xf32, #tpu.memory_space<vmem>>, vector<1x128xf32>
    %14 = vector.shape_cast %13 : vector<1x128xf32> to vector<1x1x128xf32>
    %15 = vector.broadcast %14 : vector<1x1x128xf32> to vector<16x16x128xf32>
    %16 = arith.mulf %12, %15 : vector<16x16x128xf32>
    %17 = arith.addf %11, %16 : vector<16x16x128xf32>
    %c0_19 = arith.constant 0 : index
    %c2 = arith.constant 2 : index
    %c0_20 = arith.constant 0 : index
    %18 = vector.load %arg6[%c0_19, %c2, %c0_20] : memref<18x18x128xf32, #tpu.memory_space<vmem>>, vector<16x16x128xf32>
    %c2_21 = arith.constant 2 : index
    %c0_22 = arith.constant 0 : index
    %19 = vector.load %arg2[%c2_21, %c0_22] : memref<9x128xf32, #tpu.memory_space<vmem>>, vector<1x128xf32>
    %20 = vector.shape_cast %19 : vector<1x128xf32> to vector<1x1x128xf32>
    %21 = vector.broadcast %20 : vector<1x1x128xf32> to vector<16x16x128xf32>
    %22 = arith.mulf %18, %21 : vector<16x16x128xf32>
    %23 = arith.addf %17, %22 : vector<16x16x128xf32>
    %c1_23 = arith.constant 1 : index
    %c0_24 = arith.constant 0 : index
    %c0_25 = arith.constant 0 : index
    %24 = vector.load %arg6[%c1_23, %c0_24, %c0_25] : memref<18x18x128xf32, #tpu.memory_space<vmem>>, vector<16x16x128xf32>
    %c3 = arith.constant 3 : index
    %c0_26 = arith.constant 0 : index
    %25 = vector.load %arg2[%c3, %c0_26] : memref<9x128xf32, #tpu.memory_space<vmem>>, vector<1x128xf32>
    %26 = vector.shape_cast %25 : vector<1x128xf32> to vector<1x1x128xf32>
    %27 = vector.broadcast %26 : vector<1x1x128xf32> to vector<16x16x128xf32>
    %28 = arith.mulf %24, %27 : vector<16x16x128xf32>
    %29 = arith.addf %23, %28 : vector<16x16x128xf32>
    %c1_27 = arith.constant 1 : index
    %c1_28 = arith.constant 1 : index
    %c0_29 = arith.constant 0 : index
    %30 = vector.load %arg6[%c1_27, %c1_28, %c0_29] : memref<18x18x128xf32, #tpu.memory_space<vmem>>, vector<16x16x128xf32>
    %c4 = arith.constant 4 : index
    %c0_30 = arith.constant 0 : index
    %31 = vector.load %arg2[%c4, %c0_30] : memref<9x128xf32, #tpu.memory_space<vmem>>, vector<1x128xf32>
    %32 = vector.shape_cast %31 : vector<1x128xf32> to vector<1x1x128xf32>
    %33 = vector.broadcast %32 : vector<1x1x128xf32> to vector<16x16x128xf32>
    %34 = arith.mulf %30, %33 : vector<16x16x128xf32>
    %35 = arith.addf %29, %34 : vector<16x16x128xf32>
    %c1_31 = arith.constant 1 : index
    %c2_32 = arith.constant 2 : index
    %c0_33 = arith.constant 0 : index
    %36 = vector.load %arg6[%c1_31, %c2_32, %c0_33] : memref<18x18x128xf32, #tpu.memory_space<vmem>>, vector<16x16x128xf32>
    %c5 = arith.constant 5 : index
    %c0_34 = arith.constant 0 : index
    %37 = vector.load %arg2[%c5, %c0_34] : memref<9x128xf32, #tpu.memory_space<vmem>>, vector<1x128xf32>
    %38 = vector.shape_cast %37 : vector<1x128xf32> to vector<1x1x128xf32>
    %39 = vector.broadcast %38 : vector<1x1x128xf32> to vector<16x16x128xf32>
    %40 = arith.mulf %36, %39 : vector<16x16x128xf32>
    %41 = arith.addf %35, %40 : vector<16x16x128xf32>
    %c2_35 = arith.constant 2 : index
    %c0_36 = arith.constant 0 : index
    %c0_37 = arith.constant 0 : index
    %42 = vector.load %arg6[%c2_35, %c0_36, %c0_37] : memref<18x18x128xf32, #tpu.memory_space<vmem>>, vector<16x16x128xf32>
    %c6 = arith.constant 6 : index
    %c0_38 = arith.constant 0 : index
    %43 = vector.load %arg2[%c6, %c0_38] : memref<9x128xf32, #tpu.memory_space<vmem>>, vector<1x128xf32>
    %44 = vector.shape_cast %43 : vector<1x128xf32> to vector<1x1x128xf32>
    %45 = vector.broadcast %44 : vector<1x1x128xf32> to vector<16x16x128xf32>
    %46 = arith.mulf %42, %45 : vector<16x16x128xf32>
    %47 = arith.addf %41, %46 : vector<16x16x128xf32>
    %c2_39 = arith.constant 2 : index
    %c1_40 = arith.constant 1 : index
    %c0_41 = arith.constant 0 : index
    %48 = vector.load %arg6[%c2_39, %c1_40, %c0_41] : memref<18x18x128xf32, #tpu.memory_space<vmem>>, vector<16x16x128xf32>
    %c7 = arith.constant 7 : index
    %c0_42 = arith.constant 0 : index
    %49 = vector.load %arg2[%c7, %c0_42] : memref<9x128xf32, #tpu.memory_space<vmem>>, vector<1x128xf32>
    %50 = vector.shape_cast %49 : vector<1x128xf32> to vector<1x1x128xf32>
    %51 = vector.broadcast %50 : vector<1x1x128xf32> to vector<16x16x128xf32>
    %52 = arith.mulf %48, %51 : vector<16x16x128xf32>
    %53 = arith.addf %47, %52 : vector<16x16x128xf32>
    %c2_43 = arith.constant 2 : index
    %c2_44 = arith.constant 2 : index
    %c0_45 = arith.constant 0 : index
    %54 = vector.load %arg6[%c2_43, %c2_44, %c0_45] : memref<18x18x128xf32, #tpu.memory_space<vmem>>, vector<16x16x128xf32>
    %c8 = arith.constant 8 : index
    %c0_46 = arith.constant 0 : index
    %55 = vector.load %arg2[%c8, %c0_46] : memref<9x128xf32, #tpu.memory_space<vmem>>, vector<1x128xf32>
    %56 = vector.shape_cast %55 : vector<1x128xf32> to vector<1x1x128xf32>
    %57 = vector.broadcast %56 : vector<1x1x128xf32> to vector<16x16x128xf32>
    %58 = arith.mulf %54, %57 : vector<16x16x128xf32>
    %59 = arith.addf %53, %58 : vector<16x16x128xf32>
    %60 = vector.shape_cast %59 : vector<16x16x128xf32> to vector<256x128xf32>
    %c0_47 = arith.constant 0 : index
    %c0_48 = arith.constant 0 : index
    %c0_49 = arith.constant 0 : index
    %61 = vector.load %arg3[%c0_47, %c0_48, %c0_49] : memref<1x256x128xf32, #tpu.memory_space<vmem>>, vector<1x256x128xf32>
    %62 = vector.shape_cast %61 : vector<1x256x128xf32> to vector<256x128xf32>
    %63 = vector.shape_cast %60 : vector<256x128xf32> to vector<1x256x128xf32>
    tpu.vector_store %arg3[%c0_47, %c0_48, %c0_49], %63 {strides = array<i32>} : memref<1x256x128xf32, #tpu.memory_space<vmem>>, vector<1x256x128xf32>,
    %cst_50 = arith.constant dense<0.000000e+00> : vector<128xf32>
    %64 = vector.multi_reduction <add>, %60, %cst_50 [0] : vector<256x128xf32> to vector<128xf32>
    %65 = vector.shape_cast %64 : vector<128xf32> to vector<1x128xf32>
    %c0_51 = arith.constant 0 : index
    %c0_52 = arith.constant 0 : index
    %c0_53 = arith.constant 0 : index
    %66 = vector.load %arg4[%c0_51, %c0_52, %c0_53] : memref<1x1x128xf32, #tpu.memory_space<vmem>>, vector<1x1x128xf32>
    %67 = vector.shape_cast %66 : vector<1x1x128xf32> to vector<1x128xf32>
    %68 = vector.shape_cast %65 : vector<1x128xf32> to vector<1x1x128xf32>
    tpu.vector_store %arg4[%c0_51, %c0_52, %c0_53], %68 {strides = array<i32>} : memref<1x1x128xf32, #tpu.memory_space<vmem>>, vector<1x1x128xf32>,
    %69 = arith.mulf %60, %60 : vector<256x128xf32>
    %cst_54 = arith.constant dense<0.000000e+00> : vector<128xf32>
    %70 = vector.multi_reduction <add>, %69, %cst_54 [0] : vector<256x128xf32> to vector<128xf32>
    %71 = vector.shape_cast %70 : vector<128xf32> to vector<1x128xf32>
    %c0_55 = arith.constant 0 : index
    %c0_56 = arith.constant 0 : index
    %c0_57 = arith.constant 0 : index
    %72 = vector.load %arg5[%c0_55, %c0_56, %c0_57] : memref<1x1x128xf32, #tpu.memory_space<vmem>>, vector<1x1x128xf32>
    %73 = vector.shape_cast %72 : vector<1x1x128xf32> to vector<1x128xf32>
    %74 = vector.shape_cast %71 : vector<1x128xf32> to vector<1x1x128xf32>
    tpu.vector_store %arg5[%c0_55, %c0_56, %c0_57], %74 {strides = array<i32>} : memref<1x1x128xf32, #tpu.memory_space<vmem>>, vector<1x1x128xf32>,
    return
  }
  func.func @transform_0(%arg0: i32) -> (i32, i32, i32, i32) {
    %c0_i32 = arith.constant 0 : i32
    %c0_i32_0 = arith.constant 0 : i32
    %c0_i32_1 = arith.constant 0 : i32
    %c0_i32_2 = arith.constant 0 : i32
    return %arg0, %c0_i32, %c0_i32_0, %c0_i32_1 : i32, i32, i32, i32
  }
  func.func @transform_1(%arg0: i32) -> (i32, i32) {
    %c0_i32 = arith.constant 0 : i32
    %c0_i32_0 = arith.constant 0 : i32
    %c0_i32_1 = arith.constant 0 : i32
    return %c0_i32, %c0_i32_0 : i32, i32
  }
  func.func @transform_2(%arg0: i32) -> (i32, i32, i32) {
    %c0_i32 = arith.constant 0 : i32
    %c0_i32_0 = arith.constant 0 : i32
    %c0_i32_1 = arith.constant 0 : i32
    return %arg0, %c0_i32, %c0_i32_0 : i32, i32, i32
  }
  func.func @transform_3(%arg0: i32) -> (i32, i32, i32) {
    %c0_i32 = arith.constant 0 : i32
    %c0_i32_0 = arith.constant 0 : i32
    %c0_i32_1 = arith.constant 0 : i32
    return %arg0, %c0_i32, %c0_i32_0 : i32, i32, i32
  }
  func.func @transform_4(%arg0: i32) -> (i32, i32, i32) {
    %c0_i32 = arith.constant 0 : i32
    %c0_i32_0 = arith.constant 0 : i32
    %c0_i32_1 = arith.constant 0 : i32
    return %arg0, %c0_i32, %c0_i32_0 : i32, i32, i32
  }
}

module attributes {stable_mosaic.version = 11 : i64} {
  func.func @_bn1_se_pw_kernel(%arg0: i32, %arg1: memref<1x256x128xf32, #tpu.memory_space<vmem>>, %arg2: memref<1x128xf32, #tpu.memory_space<vmem>>, %arg3: memref<1x128xf32, #tpu.memory_space<vmem>>, %arg4: memref<1x128xf32, #tpu.memory_space<vmem>>, %arg5: memref<1x1xf32, #tpu.memory_space<vmem>>, %arg6: memref<1x128xf32, #tpu.memory_space<vmem>>, %arg7: memref<1x128xf32, #tpu.memory_space<vmem>>, %arg8: memref<128x128xbf16, #tpu.memory_space<vmem>>, %arg9: memref<1x256x128xf32, #tpu.memory_space<vmem>>, %arg10: memref<1x1x128xf32, #tpu.memory_space<vmem>>, %arg11: memref<1x1x128xf32, #tpu.memory_space<vmem>>) attributes {dimension_semantics = [#tpu.dimension_semantics<parallel>], iteration_bounds = array<i64: 2>, scalar_prefetch = 0 : i64, scratch_operands = 0 : i64, tpu.core_type = #tpu.core_type<tc>, window_params = [{transform_indices = @transform_0, window_bounds = array<i64: 1, 256, 128>}, {pipeline_mode = #tpu.pipeline_mode<synchronous>, transform_indices = @transform_1, window_bounds = array<i64: 1, 128>}, {pipeline_mode = #tpu.pipeline_mode<synchronous>, transform_indices = @transform_2, window_bounds = array<i64: 1, 128>}, {pipeline_mode = #tpu.pipeline_mode<synchronous>, transform_indices = @transform_3, window_bounds = array<i64: 1, 128>}, {pipeline_mode = #tpu.pipeline_mode<synchronous>, transform_indices = @transform_4, window_bounds = array<i64: 1, 1>}, {pipeline_mode = #tpu.pipeline_mode<synchronous>, transform_indices = @transform_5, window_bounds = array<i64: 1, 128>}, {pipeline_mode = #tpu.pipeline_mode<synchronous>, transform_indices = @transform_6, window_bounds = array<i64: 1, 128>}, {pipeline_mode = #tpu.pipeline_mode<synchronous>, transform_indices = @transform_7, window_bounds = array<i64: 128, 128>}, {transform_indices = @transform_8, window_bounds = array<i64: 1, 256, 128>}, {transform_indices = @transform_9, window_bounds = array<i64: 1, 1, 128>}, {transform_indices = @transform_10, window_bounds = array<i64: 1, 1, 128>}]} {
    %c0 = arith.constant 0 : index
    %c0_0 = arith.constant 0 : index
    %c0_1 = arith.constant 0 : index
    %0 = vector.load %arg1[%c0, %c0_0, %c0_1] : memref<1x256x128xf32, #tpu.memory_space<vmem>>, vector<1x256x128xf32>
    %1 = vector.shape_cast %0 : vector<1x256x128xf32> to vector<256x128xf32>
    %c0_2 = arith.constant 0 : index
    %c0_3 = arith.constant 0 : index
    %2 = vector.load %arg2[%c0_2, %c0_3] : memref<1x128xf32, #tpu.memory_space<vmem>>, vector<1x128xf32>
    %3 = vector.broadcast %2 : vector<1x128xf32> to vector<256x128xf32>
    %4 = arith.mulf %1, %3 : vector<256x128xf32>
    %c0_4 = arith.constant 0 : index
    %c0_5 = arith.constant 0 : index
    %5 = vector.load %arg3[%c0_4, %c0_5] : memref<1x128xf32, #tpu.memory_space<vmem>>, vector<1x128xf32>
    %6 = vector.broadcast %5 : vector<1x128xf32> to vector<256x128xf32>
    %7 = arith.addf %4, %6 : vector<256x128xf32>
    %8 = arith.negf %7 : vector<256x128xf32>
    %9 = math.exp %8 : vector<256x128xf32>
    %cst = arith.constant 1.000000e+00 : f32
    %10 = vector.broadcast %cst : f32 to vector<256x128xf32>
    %11 = arith.addf %10, %9 : vector<256x128xf32>
    %12 = arith.divf %10, %11 : vector<256x128xf32>
    %13 = arith.mulf %7, %12 : vector<256x128xf32>
    %cst_6 = arith.constant dense<0.000000e+00> : vector<128xf32>
    %14 = vector.multi_reduction <add>, %13, %cst_6 [0] : vector<256x128xf32> to vector<128xf32>
    %15 = vector.shape_cast %14 : vector<128xf32> to vector<1x128xf32>
    %cst_7 = arith.constant 2.560000e+02 : f32
    %16 = vector.broadcast %cst_7 : f32 to vector<1x128xf32>
    %17 = arith.divf %15, %16 : vector<1x128xf32>
    %c0_8 = arith.constant 0 : index
    %c0_9 = arith.constant 0 : index
    %18 = vector.load %arg4[%c0_8, %c0_9] : memref<1x128xf32, #tpu.memory_space<vmem>>, vector<1x128xf32>
    %19 = arith.mulf %17, %18 : vector<1x128xf32>
    %cst_10 = arith.constant dense<0.000000e+00> : vector<1xf32>
    %20 = vector.multi_reduction <add>, %19, %cst_10 [1] : vector<1x128xf32> to vector<1xf32>
    %21 = vector.shape_cast %20 : vector<1xf32> to vector<1x1xf32>
    %c0_11 = arith.constant 0 : index
    %c0_12 = arith.constant 0 : index
    %22 = vector.load %arg5[%c0_11, %c0_12] : memref<1x1xf32, #tpu.memory_space<vmem>>, vector<1x1xf32>
    %23 = arith.addf %21, %22 : vector<1x1xf32>
    %24 = arith.negf %23 : vector<1x1xf32>
    %25 = math.exp %24 : vector<1x1xf32>
    %cst_13 = arith.constant 1.000000e+00 : f32
    %26 = vector.broadcast %cst_13 : f32 to vector<1x1xf32>
    %27 = arith.addf %26, %25 : vector<1x1xf32>
    %28 = arith.divf %26, %27 : vector<1x1xf32>
    %29 = arith.mulf %23, %28 : vector<1x1xf32>
    %c0_14 = arith.constant 0 : index
    %c0_15 = arith.constant 0 : index
    %30 = vector.load %arg6[%c0_14, %c0_15] : memref<1x128xf32, #tpu.memory_space<vmem>>, vector<1x128xf32>
    %31 = vector.broadcast %29 : vector<1x1xf32> to vector<1x128xf32>
    %32 = arith.mulf %31, %30 : vector<1x128xf32>
    %cst_16 = arith.constant dense<0.000000e+00> : vector<128xf32>
    %33 = vector.multi_reduction <add>, %32, %cst_16 [0] : vector<1x128xf32> to vector<128xf32>
    %34 = vector.shape_cast %33 : vector<128xf32> to vector<1x128xf32>
    %c0_17 = arith.constant 0 : index
    %c0_18 = arith.constant 0 : index
    %35 = vector.load %arg7[%c0_17, %c0_18] : memref<1x128xf32, #tpu.memory_space<vmem>>, vector<1x128xf32>
    %36 = arith.addf %34, %35 : vector<1x128xf32>
    %37 = arith.negf %36 : vector<1x128xf32>
    %38 = math.exp %37 : vector<1x128xf32>
    %cst_19 = arith.constant 1.000000e+00 : f32
    %39 = vector.broadcast %cst_19 : f32 to vector<1x128xf32>
    %40 = arith.addf %39, %38 : vector<1x128xf32>
    %41 = arith.divf %39, %40 : vector<1x128xf32>
    %42 = vector.broadcast %41 : vector<1x128xf32> to vector<256x128xf32>
    %43 = arith.mulf %13, %42 : vector<256x128xf32>
    %44 = arith.truncf %43 : vector<256x128xf32> to vector<256x128xbf16>
    %c0_20 = arith.constant 0 : index
    %c0_21 = arith.constant 0 : index
    %45 = vector.load %arg8[%c0_20, %c0_21] : memref<128x128xbf16, #tpu.memory_space<vmem>>, vector<128x128xbf16>
    %cst_22 = arith.constant dense<0.000000e+00> : vector<256x128xf32>
    %46 = tpu.matmul %44, %45, %cst_22 {dimension_numbers = #tpu.dot_dimension_numbers<[1], [0], [0], [1], [0, 0, 1, 1], [], []>} : vector<256x128xbf16>, vector<128x128xbf16>, vector<256x128xf32> -> vector<256x128xf32>
    %c0_23 = arith.constant 0 : index
    %c0_24 = arith.constant 0 : index
    %c0_25 = arith.constant 0 : index
    %47 = vector.load %arg9[%c0_23, %c0_24, %c0_25] : memref<1x256x128xf32, #tpu.memory_space<vmem>>, vector<1x256x128xf32>
    %48 = vector.shape_cast %47 : vector<1x256x128xf32> to vector<256x128xf32>
    %49 = vector.shape_cast %46 : vector<256x128xf32> to vector<1x256x128xf32>
    tpu.vector_store %arg9[%c0_23, %c0_24, %c0_25], %49 {strides = array<i32>} : memref<1x256x128xf32, #tpu.memory_space<vmem>>, vector<1x256x128xf32>,
    %cst_26 = arith.constant dense<0.000000e+00> : vector<128xf32>
    %50 = vector.multi_reduction <add>, %46, %cst_26 [0] : vector<256x128xf32> to vector<128xf32>
    %51 = vector.shape_cast %50 : vector<128xf32> to vector<1x128xf32>
    %c0_27 = arith.constant 0 : index
    %c0_28 = arith.constant 0 : index
    %c0_29 = arith.constant 0 : index
    %52 = vector.load %arg10[%c0_27, %c0_28, %c0_29] : memref<1x1x128xf32, #tpu.memory_space<vmem>>, vector<1x1x128xf32>
    %53 = vector.shape_cast %52 : vector<1x1x128xf32> to vector<1x128xf32>
    %54 = vector.shape_cast %51 : vector<1x128xf32> to vector<1x1x128xf32>
    tpu.vector_store %arg10[%c0_27, %c0_28, %c0_29], %54 {strides = array<i32>} : memref<1x1x128xf32, #tpu.memory_space<vmem>>, vector<1x1x128xf32>,
    %55 = arith.mulf %46, %46 : vector<256x128xf32>
    %cst_30 = arith.constant dense<0.000000e+00> : vector<128xf32>
    %56 = vector.multi_reduction <add>, %55, %cst_30 [0] : vector<256x128xf32> to vector<128xf32>
    %57 = vector.shape_cast %56 : vector<128xf32> to vector<1x128xf32>
    %c0_31 = arith.constant 0 : index
    %c0_32 = arith.constant 0 : index
    %c0_33 = arith.constant 0 : index
    %58 = vector.load %arg11[%c0_31, %c0_32, %c0_33] : memref<1x1x128xf32, #tpu.memory_space<vmem>>, vector<1x1x128xf32>
    %59 = vector.shape_cast %58 : vector<1x1x128xf32> to vector<1x128xf32>
    %60 = vector.shape_cast %57 : vector<1x128xf32> to vector<1x1x128xf32>
    tpu.vector_store %arg11[%c0_31, %c0_32, %c0_33], %60 {strides = array<i32>} : memref<1x1x128xf32, #tpu.memory_space<vmem>>, vector<1x1x128xf32>,
    return
  }
  func.func @transform_0(%arg0: i32) -> (i32, i32, i32) {
    %c0_i32 = arith.constant 0 : i32
    %c0_i32_0 = arith.constant 0 : i32
    %c0_i32_1 = arith.constant 0 : i32
    return %arg0, %c0_i32, %c0_i32_0 : i32, i32, i32
  }
  func.func @transform_1(%arg0: i32) -> (i32, i32) {
    %c0_i32 = arith.constant 0 : i32
    %c0_i32_0 = arith.constant 0 : i32
    %c0_i32_1 = arith.constant 0 : i32
    return %c0_i32, %c0_i32_0 : i32, i32
  }
  func.func @transform_2(%arg0: i32) -> (i32, i32) {
    %c0_i32 = arith.constant 0 : i32
    %c0_i32_0 = arith.constant 0 : i32
    %c0_i32_1 = arith.constant 0 : i32
    return %c0_i32, %c0_i32_0 : i32, i32
  }
  func.func @transform_3(%arg0: i32) -> (i32, i32) {
    %c0_i32 = arith.constant 0 : i32
    %c0_i32_0 = arith.constant 0 : i32
    %c0_i32_1 = arith.constant 0 : i32
    return %c0_i32, %c0_i32_0 : i32, i32
  }
  func.func @transform_4(%arg0: i32) -> (i32, i32) {
    %c0_i32 = arith.constant 0 : i32
    %c0_i32_0 = arith.constant 0 : i32
    %c0_i32_1 = arith.constant 0 : i32
    return %c0_i32, %c0_i32_0 : i32, i32
  }
  func.func @transform_5(%arg0: i32) -> (i32, i32) {
    %c0_i32 = arith.constant 0 : i32
    %c0_i32_0 = arith.constant 0 : i32
    %c0_i32_1 = arith.constant 0 : i32
    return %c0_i32, %c0_i32_0 : i32, i32
  }
  func.func @transform_6(%arg0: i32) -> (i32, i32) {
    %c0_i32 = arith.constant 0 : i32
    %c0_i32_0 = arith.constant 0 : i32
    %c0_i32_1 = arith.constant 0 : i32
    return %c0_i32, %c0_i32_0 : i32, i32
  }
  func.func @transform_7(%arg0: i32) -> (i32, i32) {
    %c0_i32 = arith.constant 0 : i32
    %c0_i32_0 = arith.constant 0 : i32
    %c0_i32_1 = arith.constant 0 : i32
    return %c0_i32, %c0_i32_0 : i32, i32
  }
  func.func @transform_8(%arg0: i32) -> (i32, i32, i32) {
    %c0_i32 = arith.constant 0 : i32
    %c0_i32_0 = arith.constant 0 : i32
    %c0_i32_1 = arith.constant 0 : i32
    return %arg0, %c0_i32, %c0_i32_0 : i32, i32, i32
  }
  func.func @transform_9(%arg0: i32) -> (i32, i32, i32) {
    %c0_i32 = arith.constant 0 : i32
    %c0_i32_0 = arith.constant 0 : i32
    %c0_i32_1 = arith.constant 0 : i32
    return %arg0, %c0_i32, %c0_i32_0 : i32, i32, i32
  }
  func.func @transform_10(%arg0: i32) -> (i32, i32, i32) {
    %c0_i32 = arith.constant 0 : i32
    %c0_i32_0 = arith.constant 0 : i32
    %c0_i32_1 = arith.constant 0 : i32
    return %arg0, %c0_i32, %c0_i32_0 : i32, i32, i32
  }
}

module attributes {stable_mosaic.version = 11 : i64} {
  func.func @_bn2_act_kernel(%arg0: i32, %arg1: memref<256x128xf32, #tpu.memory_space<vmem>>, %arg2: memref<1x128xf32, #tpu.memory_space<vmem>>, %arg3: memref<1x128xf32, #tpu.memory_space<vmem>>, %arg4: memref<256x128xf32, #tpu.memory_space<vmem>>) attributes {dimension_semantics = [#tpu.dimension_semantics<parallel>], iteration_bounds = array<i64: 2>, scalar_prefetch = 0 : i64, scratch_operands = 0 : i64, tpu.core_type = #tpu.core_type<tc>, window_params = [{transform_indices = @transform_0, window_bounds = array<i64: 256, 128>}, {pipeline_mode = #tpu.pipeline_mode<synchronous>, transform_indices = @transform_1, window_bounds = array<i64: 1, 128>}, {pipeline_mode = #tpu.pipeline_mode<synchronous>, transform_indices = @transform_2, window_bounds = array<i64: 1, 128>}, {transform_indices = @transform_3, window_bounds = array<i64: 256, 128>}]} {
    %c0 = arith.constant 0 : index
    %c0_0 = arith.constant 0 : index
    %0 = vector.load %arg1[%c0, %c0_0] : memref<256x128xf32, #tpu.memory_space<vmem>>, vector<256x128xf32>
    %c0_1 = arith.constant 0 : index
    %c0_2 = arith.constant 0 : index
    %1 = vector.load %arg2[%c0_1, %c0_2] : memref<1x128xf32, #tpu.memory_space<vmem>>, vector<1x128xf32>
    %2 = vector.broadcast %1 : vector<1x128xf32> to vector<256x128xf32>
    %3 = arith.mulf %0, %2 : vector<256x128xf32>
    %c0_3 = arith.constant 0 : index
    %c0_4 = arith.constant 0 : index
    %4 = vector.load %arg3[%c0_3, %c0_4] : memref<1x128xf32, #tpu.memory_space<vmem>>, vector<1x128xf32>
    %5 = vector.broadcast %4 : vector<1x128xf32> to vector<256x128xf32>
    %6 = arith.addf %3, %5 : vector<256x128xf32>
    %7 = arith.negf %6 : vector<256x128xf32>
    %8 = math.exp %7 : vector<256x128xf32>
    %cst = arith.constant 1.000000e+00 : f32
    %9 = vector.broadcast %cst : f32 to vector<256x128xf32>
    %10 = arith.addf %9, %8 : vector<256x128xf32>
    %11 = arith.divf %9, %10 : vector<256x128xf32>
    %12 = arith.mulf %6, %11 : vector<256x128xf32>
    %c0_5 = arith.constant 0 : index
    %c0_6 = arith.constant 0 : index
    %13 = vector.load %arg4[%c0_5, %c0_6] : memref<256x128xf32, #tpu.memory_space<vmem>>, vector<256x128xf32>
    tpu.vector_store %arg4[%c0_5, %c0_6], %12 {strides = array<i32>} : memref<256x128xf32, #tpu.memory_space<vmem>>, vector<256x128xf32>,
    return
  }
  func.func @transform_0(%arg0: i32) -> (i32, i32) {
    %c0_i32 = arith.constant 0 : i32
    %c0_i32_0 = arith.constant 0 : i32
    return %arg0, %c0_i32 : i32, i32
  }
  func.func @transform_1(%arg0: i32) -> (i32, i32) {
    %c0_i32 = arith.constant 0 : i32
    %c0_i32_0 = arith.constant 0 : i32
    %c0_i32_1 = arith.constant 0 : i32
    return %c0_i32, %c0_i32_0 : i32, i32
  }
  func.func @transform_2(%arg0: i32) -> (i32, i32) {
    %c0_i32 = arith.constant 0 : i32
    %c0_i32_0 = arith.constant 0 : i32
    %c0_i32_1 = arith.constant 0 : i32
    return %c0_i32, %c0_i32_0 : i32, i32
  }
  func.func @transform_3(%arg0: i32) -> (i32, i32) {
    %c0_i32 = arith.constant 0 : i32
    %c0_i32_0 = arith.constant 0 : i32
    return %arg0, %c0_i32 : i32, i32
  }
}

</mosaic_0001>

<llo_original>
// kernel: depthwise_separable_conv.3
$region0: #{depthwise_separable_conv.3}
  #allocation0 [shape = 'u32[]', space=smem, size = 0x4, offset = 0x4, fixed_abs, tag = 'smem constant byte address 0x4 - core index']
  #allocation1 [shape = 'u32[144,128]{1,0:T(1,128)}', space=vmem, size = 0x12000, scoped, tag = 'internal scratch']
  #allocation2 [shape = 'f32[18,18,128]{2,1,0:T(8,128)}', space=vmem, size = 0x36000, scoped, tag = 'scratch operand']
  %s0 = inlined_call_operand.vmem [shape: f32[2,16,16,128], index: 0, kind: input, shape index: {}]
  %s1 = inlined_call_operand.vmem [shape: f32[9,128], index: 1, kind: input, shape index: {}]
  %s2 = inlined_call_operand.vmem [shape: f32[2,256,128], index: 2, kind: output, shape index: {0}]
  %s3 = inlined_call_operand.vmem [shape: f32[2,1,128], index: 3, kind: output, shape index: {1}]
  %s4 = inlined_call_operand.vmem [shape: f32[2,1,128], index: 4, kind: output, shape index: {2}]
  %5 = xla_tuple %s2, %s3, %s4
  %s6 = sld [smem:[#allocation0]]
  $region57: #{depthwise_separable_conv.3} parent=0
    _
  %s8 = ssub.s32 1, %s6
  %s9 = scalar_select 0, %s8, %s6
  loop: start=0, step=1, limit=4
  $region2: #{depthwise_separable_conv.3} parent=0 // loop_pre_header
    _
  $region3: #{depthwise_separable_conv.3} parent=0 // loop_header
    %s11 = sphi 0, %s15
    %p12 = scmp.ge.s32.totalorder %s11, 4
    %s21 = sphi 0, %s23
    %s24 = sphi 0, %s21
    %s25 = sphi 0, %s24
    %s41 = sphi 0, %s25
    %s45 = sphi 0, %s45
    %s47 = sphi 0, %s45
    %s48 = sphi 0, %s47
    %s62 = sphi 0, %s48
    %s68 = sphi 0, %s70
    %s71 = sphi 0, %s68
    %s72 = sphi 0, %s71
    %s88 = sphi 0, %s72
    %s94 = sphi 0, %s96
    %s97 = sphi 0, %s94
    %s98 = sphi 0, %s97
    %s114 = sphi 0, %s98
    %s120 = sphi 0, %s122
    %s123 = sphi 0, %s120
    %s124 = sphi 0, %s123
    %s140 = sphi 0, %s124
  $region4: #{depthwise_separable_conv.3} parent=0 // loop_header_branch
    %14 = sbr.rel (%p12) target = $region8
  $region5: #{depthwise_separable_conv.3} parent=0 // loop_body
    %s16 = ssub.s32 %s11, 1
    %s17 = ssub.s32 %s11, 2
    %s18 = sadd.s32 %s11, 1
    %s19 = ssub.s32 %s11, %s18
    %p20 = scmp.eq.s32.totalorder %s19, 0
    %s22 = sadd.s32 %s21, 1
    %s23 = scalar_select %p20, %s21, %s22
    %p26 = pneg %p20
    %p27 = scmp.eq.s32.totalorder %s11, 1
    %p28 = por %p26, %p27
    %p29 = scmp.ne.s32.totalorder %s21, %s24
    %p30 = scmp.eq.s32.totalorder %s11, 0
    %p31 = por %p29, %p30
    %p32 = scmp.ne.s32.totalorder %s21, %s24
    %p33 = scmp.eq.s32.totalorder %s16, 1
    %p34 = por %p32, %p33
    %p35 = scmp.ne.s32.totalorder %s24, %s25
    %p36 = scmp.eq.s32.totalorder %s16, 0
    %p37 = por %p35, %p36
    %p38 = scmp.ne.s32.totalorder %s24, %s25
    %p39 = scmp.eq.s32.totalorder %s17, 1
    %p40 = por %p38, %p39
    %p42 = scmp.ne.s32.totalorder %s25, %s41
    %p43 = scmp.eq.s32.totalorder %s17, 0
    %p44 = por %p42, %p43
    %s46 = sadd.s32 %s45, 1
    %p49 = scmp.eq.s32.totalorder %s11, 1
    %p50 = scmp.ne.s32.totalorder %s45, %s47
    %p51 = scmp.eq.s32.totalorder %s11, 0
    %p52 = por %p50, %p51
    %p53 = scmp.ne.s32.totalorder %s45, %s47
    %p54 = scmp.eq.s32.totalorder %s16, 1
    %p55 = por %p53, %p54
    %p56 = scmp.ne.s32.totalorder %s47, %s48
    %p57 = scmp.eq.s32.totalorder %s16, 0
    %p58 = por %p56, %p57
    %p59 = scmp.ne.s32.totalorder %s47, %s48
    %p60 = scmp.eq.s32.totalorder %s17, 1
    %p61 = por %p59, %p60
    %p63 = scmp.ne.s32.totalorder %s48, %s62
    %p64 = scmp.eq.s32.totalorder %s17, 0
    %p65 = por %p63, %p64
    %s66 = ssub.s32 %s11, %s18
    %p67 = scmp.eq.s32.totalorder %s66, 0
    %s69 = sadd.s32 %s68, 1
    %s70 = scalar_select %p67, %s68, %s69
    %p73 = pneg %p67
    %p74 = scmp.eq.s32.totalorder %s11, 1
    %p75 = por %p73, %p74
    %p76 = scmp.ne.s32.totalorder %s68, %s71
    %p77 = scmp.eq.s32.totalorder %s11, 0
    %p78 = por %p76, %p77
    %p79 = scmp.ne.s32.totalorder %s68, %s71
    %p80 = scmp.eq.s32.totalorder %s16, 1
    %p81 = por %p79, %p80
    %p82 = scmp.ne.s32.totalorder %s71, %s72
    %p83 = scmp.eq.s32.totalorder %s16, 0
    %p84 = por %p82, %p83
    %p85 = scmp.ne.s32.totalorder %s71, %s72
    %p86 = scmp.eq.s32.totalorder %s17, 1
    %p87 = por %p85, %p86
    %p89 = scmp.ne.s32.totalorder %s72, %s88
    %p90 = scmp.eq.s32.totalorder %s17, 0
    %p91 = por %p89, %p90
    %s92 = ssub.s32 %s11, %s18
    %p93 = scmp.eq.s32.totalorder %s92, 0
    %s95 = sadd.s32 %s94, 1
    %s96 = scalar_select %p93, %s94, %s95
    %p99 = pneg %p93
    %p100 = scmp.eq.s32.totalorder %s11, 1
    %p101 = por %p99, %p100
    %p102 = scmp.ne.s32.totalorder %s94, %s97
    %p103 = scmp.eq.s32.totalorder %s11, 0
    %p104 = por %p102, %p103
    %p105 = scmp.ne.s32.totalorder %s94, %s97
    %p106 = scmp.eq.s32.totalorder %s16, 1
    %p107 = por %p105, %p106
    %p108 = scmp.ne.s32.totalorder %s97, %s98
    %p109 = scmp.eq.s32.totalorder %s16, 0
    %p110 = por %p108, %p109
    %p111 = scmp.ne.s32.totalorder %s97, %s98
    %p112 = scmp.eq.s32.totalorder %s17, 1
    %p113 = por %p111, %p112
    %p115 = scmp.ne.s32.totalorder %s98, %s114
    %p116 = scmp.eq.s32.totalorder %s17, 0
    %p117 = por %p115, %p116
    %s118 = ssub.s32 %s11, %s18
    %p119 = scmp.eq.s32.totalorder %s118, 0
    %s121 = sadd.s32 %s120, 1
    %s122 = scalar_select %p119, %s120, %s121
    %p125 = pneg %p119
    %p126 = scmp.eq.s32.totalorder %s11, 1
    %p127 = por %p125, %p126
    %p128 = scmp.ne.s32.totalorder %s120, %s123
    %p129 = scmp.eq.s32.totalorder %s11, 0
    %p130 = por %p128, %p129
    %p131 = scmp.ne.s32.totalorder %s120, %s123
    %p132 = scmp.eq.s32.totalorder %s16, 1
    %p133 = por %p131, %p132
    %p134 = scmp.ne.s32.totalorder %s123, %s124
    %p135 = scmp.eq.s32.totalorder %s16, 0
    %p136 = por %p134, %p135
    %p137 = scmp.ne.s32.totalorder %s123, %s124
    %p138 = scmp.eq.s32.totalorder %s17, 1
    %p139 = por %p137, %p138
    %p141 = scmp.ne.s32.totalorder %s124, %s140
    %p142 = scmp.eq.s32.totalorder %s17, 0
    %p143 = por %p141, %p142
    %p144 = scmp.le.s32.totalorder 1, %s11
    %p145 = scmp.lt.s32.totalorder %s11, 3
    %p146 = pnand %p144, %p145
    %p147 = pneg %p146
    // Predicated region
    $region9: #{depthwise_separable_conv.3} parent=5 // pred_check
      _
    $region10: #{depthwise_separable_conv.3} parent=5 // pred_check_branch
      %149 = sbr.rel (%p146) target = $region12
    $region11: #{depthwise_separable_conv.3} parent=5 // pred_region
      %s150 = ssub.s32 %s11, 1
      // Predicated region
      $region13: #{depthwise_separable_conv.3} parent=11 // pred_check
        %p151 = pneg %p58
      $region14: #{depthwise_separable_conv.3} parent=11 // pred_check_branch
        %153 = sbr.rel (%p151) target = $region16
      $region15: #{depthwise_separable_conv.3} parent=11 // pred_region
        _
      $region16: #{depthwise_separable_conv.3} parent=11 // pred_fallthru
        _
    $region12: #{depthwise_separable_conv.3} parent=5 // pred_fallthru
      _
    %p154 = scmp.lt.s32.totalorder %s11, 2
    // Predicated region
    $region17: #{depthwise_separable_conv.3} parent=5 // pred_check
      %p155 = pneg %p154
    $region18: #{depthwise_separable_conv.3} parent=5 // pred_check_branch
      %157 = sbr.rel (%p155) target = $region20
    $region19: #{depthwise_separable_conv.3} parent=5 // pred_region
      // Predicated region
      $region21: #{depthwise_separable_conv.3} parent=19 // pred_check
        %p158 = pneg %p31
      $region22: #{depthwise_separable_conv.3} parent=19 // pred_check_branch
        %160 = sbr.rel (%p158) target = $region24
      $region23: #{depthwise_separable_conv.3} parent=19 // pred_region
        %p161 = scmp.lt.s32.totalorder %s11, 1
        %s162 = scalar_select %p161, %s11, 1
        %s163 = smul.addr %s162, 32
        %s164 = smul.addr %s163, 8
        %s165 = scalar_lea.vmem %s0, %s164
      $region24: #{depthwise_separable_conv.3} parent=19 // pred_fallthru
        _
    $region20: #{depthwise_separable_conv.3} parent=5 // pred_fallthru
      _
    %p166 = scmp.le.s32.totalorder 1, %s11
    %p167 = scmp.lt.s32.totalorder %s11, 3
    %p168 = pnand %p166, %p167
    %p169 = pneg %p168
    // Predicated region
    $region25: #{depthwise_separable_conv.3} parent=5 // pred_check
      _
    $region26: #{depthwise_separable_conv.3} parent=5 // pred_check_branch
      %171 = sbr.rel (%p168) target = $region28
    $region27: #{depthwise_separable_conv.3} parent=5 // pred_region
      %s172 = ssub.s32 %s11, 1
      %p173 = scmp.lt.s32.totalorder %s16, 1
      %s174 = scalar_select %p173, %s16, 1
      %s175 = smul.addr %s174, 32
      %s176 = smul.addr %s175, 8
      %s177 = scalar_lea.vmem %s0, %s176
      %p178 = pneg %p37
      %p179 = pneg %p34
      %p180 = pneg %p58
      %p181 = pneg %p55
      %p182 = pneg %p84
      %p183 = pneg %p81
      %p184 = scmp.lt.s32.totalorder %s16, 1
      %s185 = scalar_select %p184, %s16, 1
      %s186 = smul.addr %s185, 32
      %s187 = smul.addr %s186, 8
      %s188 = scalar_lea.vmem %s2, %s187
      %p189 = pneg %p110
      %p190 = pneg %p107
      %p191 = scmp.lt.s32.totalorder %s16, 1
      %s192 = scalar_select %p191, %s16, 1
      %s193 = scalar_lea.vmem %s3, %s192
      %p194 = pneg %p136
      %p195 = pneg %p133
      %p196 = scmp.lt.s32.totalorder %s16, 1
      %s197 = scalar_select %p196, %s16, 1
      %s198 = scalar_lea.vmem %s4, %s197
      %p199 = scmp.lt.s32.totalorder %s16, 1
      %s200 = scalar_select %p199, %s16, 1
      %s201 = smul.addr %s200, 32
      %s202 = smul.addr %s201, 8
      %s203 = scalar_lea.vmem %s0, %s202
      %p204 = scmp.lt.s32.totalorder %s16, 1
      %s205 = scalar_select %p204, %s16, 1
      %s206 = smul.addr %s205, 32
      %s207 = smul.addr %s206, 8
      %s208 = scalar_lea.vmem %s2, %s207
      %p209 = scmp.lt.s32.totalorder %s16, 1
      %s210 = scalar_select %p209, %s16, 1
      %s211 = scalar_lea.vmem %s3, %s210
      %p212 = scmp.lt.s32.totalorder %s16, 1
      %s213 = scalar_select %p212, %s16, 1
      %s214 = scalar_lea.vmem %s4, %s213
      %215 = vst [vmem:[#allocation2] sm:$0xff] 0.0
      %216 = vst [vmem:[#allocation2 + $0x8] sm:$0xff] 0.0
      %217 = vst [vmem:[#allocation2 + $0x10] sm:$0x3] 0.0
      %218 = vst [vmem:[#allocation2 + $0x18] sm:$0xff] 0.0
      %219 = vst [vmem:[#allocation2 + $0x20] sm:$0xff] 0.0
      %220 = vst [vmem:[#allocation2 + $0x28] sm:$0x3] 0.0
      %221 = vst [vmem:[#allocation2 + $0x30] sm:$0xff] 0.0
      %222 = vst [vmem:[#allocation2 + $0x38] sm:$0xff] 0.0
      %223 = vst [vmem:[#allocation2 + $0x40] sm:$0x3] 0.0
      %224 = vst [vmem:[#allocation2 + $0x48] sm:$0xff] 0.0
      %225 = vst [vmem:[#allocation2 + $0x50] sm:$0xff] 0.0
      %226 = vst [vmem:[#allocation2 + $0x58] sm:$0x3] 0.0
      %227 = vst [vmem:[#allocation2 + $0x60] sm:$0xff] 0.0
      %228 = vst [vmem:[#allocation2 + $0x68] sm:$0xff] 0.0
      %229 = vst [vmem:[#allocation2 + $0x70] sm:$0x3] 0.0
      %230 = vst [vmem:[#allocation2 + $0x78] sm:$0xff] 0.0
      %231 = vst [vmem:[#allocation2 + $0x80] sm:$0xff] 0.0
      %232 = vst [vmem:[#allocation2 + $0x88] sm:$0x3] 0.0
      %233 = vst [vmem:[#allocation2 + $0x90] sm:$0xff] 0.0
      %234 = vst [vmem:[#allocation2 + $0x98] sm:$0xff] 0.0
      %235 = vst [vmem:[#allocation2 + $0xa0] sm:$0x3] 0.0
      %236 = vst [vmem:[#allocation2 + $0xa8] sm:$0xff] 0.0
      %237 = vst [vmem:[#allocation2 + $0xb0] sm:$0xff] 0.0
      %238 = vst [vmem:[#allocation2 + $0xb8] sm:$0x3] 0.0
      %239 = vst [vmem:[#allocation2 + $0xc0] sm:$0xff] 0.0
      %240 = vst [vmem:[#allocation2 + $0xc8] sm:$0xff] 0.0
      %241 = vst [vmem:[#allocation2 + $0xd0] sm:$0x3] 0.0
      %242 = vst [vmem:[#allocation2 + $0xd8] sm:$0xff] 0.0
      %243 = vst [vmem:[#allocation2 + $0xe0] sm:$0xff] 0.0
      %244 = vst [vmem:[#allocation2 + $0xe8] sm:$0x3] 0.0
      %245 = vst [vmem:[#allocation2 + $0xf0] sm:$0xff] 0.0
      %246 = vst [vmem:[#allocation2 + $0xf8] sm:$0xff] 0.0
      %247 = vst [vmem:[#allocation2 + $0x100] sm:$0x3] 0.0
      %248 = vst [vmem:[#allocation2 + $0x108] sm:$0xff] 0.0
      %249 = vst [vmem:[#allocation2 + $0x110] sm:$0xff] 0.0
      %250 = vst [vmem:[#allocation2 + $0x118] sm:$0x3] 0.0
      %251 = vst [vmem:[#allocation2 + $0x120] sm:$0xff] 0.0
      %252 = vst [vmem:[#allocation2 + $0x128] sm:$0xff] 0.0
      %253 = vst [vmem:[#allocation2 + $0x130] sm:$0x3] 0.0
      %254 = vst [vmem:[#allocation2 + $0x138] sm:$0xff] 0.0
      %255 = vst [vmem:[#allocation2 + $0x140] sm:$0xff] 0.0
      %256 = vst [vmem:[#allocation2 + $0x148] sm:$0x3] 0.0
      %257 = vst [vmem:[#allocation2 + $0x150] sm:$0xff] 0.0
      %258 = vst [vmem:[#allocation2 + $0x158] sm:$0xff] 0.0
      %259 = vst [vmem:[#allocation2 + $0x160] sm:$0x3] 0.0
      %260 = vst [vmem:[#allocation2 + $0x168] sm:$0xff] 0.0
      %261 = vst [vmem:[#allocation2 + $0x170] sm:$0xff] 0.0
      %262 = vst [vmem:[#allocation2 + $0x178] sm:$0x3] 0.0
      %263 = vst [vmem:[#allocation2 + $0x180] sm:$0xff] 0.0
      %264 = vst [vmem:[#allocation2 + $0x188] sm:$0xff] 0.0
      %265 = vst [vmem:[#allocation2 + $0x190] sm:$0x3] 0.0
      %266 = vst [vmem:[#allocation2 + $0x198] sm:$0xff] 0.0
      %267 = vst [vmem:[#allocation2 + $0x1a0] sm:$0xff] 0.0
      %268 = vst [vmem:[#allocation2 + $0x1a8] sm:$0x3] 0.0
      %v269 = vld [vmem:[%s203] sm:$0xff]
      %v270 = vld [vmem:[%s203 + $0x8] sm:$0xff]
      %v271 = vld [vmem:[%s203 + $0x10] sm:$0xff]
      %v272 = vld [vmem:[%s203 + $0x18] sm:$0xff]
      %v273 = vld [vmem:[%s203 + $0x20] sm:$0xff]
      %v274 = vld [vmem:[%s203 + $0x28] sm:$0xff]
      %v275 = vld [vmem:[%s203 + $0x30] sm:$0xff]
      %v276 = vld [vmem:[%s203 + $0x38] sm:$0xff]
      %v277 = vld [vmem:[%s203 + $0x40] sm:$0xff]
      %v278 = vld [vmem:[%s203 + $0x48] sm:$0xff]
      %v279 = vld [vmem:[%s203 + $0x50] sm:$0xff]
      %v280 = vld [vmem:[%s203 + $0x58] sm:$0xff]
      %v281 = vld [vmem:[%s203 + $0x60] sm:$0xff]
      %v282 = vld [vmem:[%s203 + $0x68] sm:$0xff]
      %v283 = vld [vmem:[%s203 + $0x70] sm:$0xff]
      %v284 = vld [vmem:[%s203 + $0x78] sm:$0xff]
      %v285 = vld [vmem:[%s203 + $0x80] sm:$0xff]
      %v286 = vld [vmem:[%s203 + $0x88] sm:$0xff]
      %v287 = vld [vmem:[%s203 + $0x90] sm:$0xff]
      %v288 = vld [vmem:[%s203 + $0x98] sm:$0xff]
      %v289 = vld [vmem:[%s203 + $0xa0] sm:$0xff]
      %v290 = vld [vmem:[%s203 + $0xa8] sm:$0xff]
      %v291 = vld [vmem:[%s203 + $0xb0] sm:$0xff]
      %v292 = vld [vmem:[%s203 + $0xb8] sm:$0xff]
      %v293 = vld [vmem:[%s203 + $0xc0] sm:$0xff]
      %v294 = vld [vmem:[%s203 + $0xc8] sm:$0xff]
      %v295 = vld [vmem:[%s203 + $0xd0] sm:$0xff]
      %v296 = vld [vmem:[%s203 + $0xd8] sm:$0xff]
      %v297 = vld [vmem:[%s203 + $0xe0] sm:$0xff]
      %v298 = vld [vmem:[%s203 + $0xe8] sm:$0xff]
      %v299 = vld [vmem:[%s203 + $0xf0] sm:$0xff]
      %v300 = vld [vmem:[%s203 + $0xf8] sm:$0xff]
      %s301 = scalar_lea.vmem [#allocation2], 24
      %302 = vst [vmem:[%s301 + $0x1] sm:$0xff] %v269
      %303 = vst [vmem:[%s301 + $0x9] sm:$0xff] %v270
      %304 = vst [vmem:[%s301 + $0x19] sm:$0xff] %v271
      %305 = vst [vmem:[%s301 + $0x21] sm:$0xff] %v272
      %306 = vst [vmem:[%s301 + $0x31] sm:$0xff] %v273
      %307 = vst [vmem:[%s301 + $0x39] sm:$0xff] %v274
      %308 = vst [vmem:[%s301 + $0x49] sm:$0xff] %v275
      %309 = vst [vmem:[%s301 + $0x51] sm:$0xff] %v276
      %310 = vst [vmem:[%s301 + $0x61] sm:$0xff] %v277
      %311 = vst [vmem:[%s301 + $0x69] sm:$0xff] %v278
      %312 = vst [vmem:[%s301 + $0x79] sm:$0xff] %v279
      %313 = vst [vmem:[%s301 + $0x81] sm:$0xff] %v280
      %314 = vst [vmem:[%s301 + $0x91] sm:$0xff] %v281
      %315 = vst [vmem:[%s301 + $0x99] sm:$0xff] %v282
      %316 = vst [vmem:[%s301 + $0xa9] sm:$0xff] %v283
      %317 = vst [vmem:[%s301 + $0xb1] sm:$0xff] %v284
      %318 = vst [vmem:[%s301 + $0xc1] sm:$0xff] %v285
      %319 = vst [vmem:[%s301 + $0xc9] sm:$0xff] %v286
      %320 = vst [vmem:[%s301 + $0xd9] sm:$0xff] %v287
      %321 = vst [vmem:[%s301 + $0xe1] sm:$0xff] %v288
      %322 = vst [vmem:[%s301 + $0xf1] sm:$0xff] %v289
      %323 = vst [vmem:[%s301 + $0xf9] sm:$0xff] %v290
      %324 = vst [vmem:[%s301 + $0x109] sm:$0xff] %v291
      %325 = vst [vmem:[%s301 + $0x111] sm:$0xff] %v292
      %326 = vst [vmem:[%s301 + $0x121] sm:$0xff] %v293
      %327 = vst [vmem:[%s301 + $0x129] sm:$0xff] %v294
      %328 = vst [vmem:[%s301 + $0x139] sm:$0xff] %v295
      %329 = vst [vmem:[%s301 + $0x141] sm:$0xff] %v296
      %330 = vst [vmem:[%s301 + $0x151] sm:$0xff] %v297
      %331 = vst [vmem:[%s301 + $0x159] sm:$0xff] %v298
      %332 = vst [vmem:[%s301 + $0x169] sm:$0xff] %v299
      %333 = vst [vmem:[%s301 + $0x171] sm:$0xff] %v300
      %v334 = vld [vmem:[#allocation2] sm:$0xff]
      %v335 = vld [vmem:[#allocation2 + $0x8] sm:$0xff]
      %v336 = vld [vmem:[#allocation2 + $0x18] sm:$0xff]
      %v337 = vld [vmem:[#allocation2 + $0x20] sm:$0xff]
      %v338 = vld [vmem:[#allocation2 + $0x30] sm:$0xff]
      %v339 = vld [vmem:[#allocation2 + $0x38] sm:$0xff]
      %v340 = vld [vmem:[#allocation2 + $0x48] sm:$0xff]
      %v341 = vld [vmem:[#allocation2 + $0x50] sm:$0xff]
      %v342 = vld [vmem:[#allocation2 + $0x60] sm:$0xff]
      %v343 = vld [vmem:[#allocation2 + $0x68] sm:$0xff]
      %v344 = vld [vmem:[#allocation2 + $0x78] sm:$0xff]
      %v345 = vld [vmem:[#allocation2 + $0x80] sm:$0xff]
      %v346 = vld [vmem:[#allocation2 + $0x90] sm:$0xff]
      %v347 = vld [vmem:[#allocation2 + $0x98] sm:$0xff]
      %v348 = vld [vmem:[#allocation2 + $0xa8] sm:$0xff]
      %v349 = vld [vmem:[#allocation2 + $0xb0] sm:$0xff]
      %v350 = vld [vmem:[#allocation2 + $0xc0] sm:$0xff]
      %v351 = vld [vmem:[#allocation2 + $0xc8] sm:$0xff]
      %v352 = vld [vmem:[#allocation2 + $0xd8] sm:$0xff]
      %v353 = vld [vmem:[#allocation2 + $0xe0] sm:$0xff]
      %v354 = vld [vmem:[#allocation2 + $0xf0] sm:$0xff]
      %v355 = vld [vmem:[#allocation2 + $0xf8] sm:$0xff]
      %v356 = vld [vmem:[#allocation2 + $0x108] sm:$0xff]
      %v357 = vld [vmem:[#allocation2 + $0x110] sm:$0xff]
      %v358 = vld [vmem:[#allocation2 + $0x120] sm:$0xff]
      %v359 = vld [vmem:[#allocation2 + $0x128] sm:$0xff]
      %v360 = vld [vmem:[#allocation2 + $0x138] sm:$0xff]
      %v361 = vld [vmem:[#allocation2 + $0x140] sm:$0xff]
      %v362 = vld [vmem:[#allocation2 + $0x150] sm:$0xff]
      %v363 = vld [vmem:[#allocation2 + $0x158] sm:$0xff]
      %v364 = vld [vmem:[#allocation2 + $0x168] sm:$0xff]
      %v365 = vld [vmem:[#allocation2 + $0x170] sm:$0xff]
      %v366 = vld [vmem:[%s1] sm:$0x1]
      %v367 = vlaneseq
      %v368 = vshrl.u32 %v367, 7
      %v369 = vsub.s32 0, %v368
      %v370 = vrot.slane %v366, %v369
      %v371 = vmul.f32 %v334, %v370
      %v372 = vmul.f32 %v335, %v370
      %v373 = vmul.f32 %v336, %v370
      %v374 = vmul.f32 %v337, %v370
      %v375 = vmul.f32 %v338, %v370
      %v376 = vmul.f32 %v339, %v370
      %v377 = vmul.f32 %v340, %v370
      %v378 = vmul.f32 %v341, %v370
      %v379 = vmul.f32 %v342, %v370
      %v380 = vmul.f32 %v343, %v370
      %v381 = vmul.f32 %v344, %v370
      %v382 = vmul.f32 %v345, %v370
      %v383 = vmul.f32 %v346, %v370
      %v384 = vmul.f32 %v347, %v370
      %v385 = vmul.f32 %v348, %v370
      %v386 = vmul.f32 %v349, %v370
      %v387 = vmul.f32 %v350, %v370
      %v388 = vmul.f32 %v351, %v370
      %v389 = vmul.f32 %v352, %v370
      %v390 = vmul.f32 %v353, %v370
      %v391 = vmul.f32 %v354, %v370
      %v392 = vmul.f32 %v355, %v370
      %v393 = vmul.f32 %v356, %v370
      %v394 = vmul.f32 %v357, %v370
      %v395 = vmul.f32 %v358, %v370
      %v396 = vmul.f32 %v359, %v370
      %v397 = vmul.f32 %v360, %v370
      %v398 = vmul.f32 %v361, %v370
      %v399 = vmul.f32 %v362, %v370
      %v400 = vmul.f32 %v363, %v370
      %v401 = vmul.f32 %v364, %v370
      %v402 = vmul.f32 %v365, %v370
      %v403 = vadd.f32 %v371, 0.0
      %v404 = vadd.f32 %v372, 0.0
      %v405 = vadd.f32 %v373, 0.0
      %v406 = vadd.f32 %v374, 0.0
      %v407 = vadd.f32 %v375, 0.0
      %v408 = vadd.f32 %v376, 0.0
      %v409 = vadd.f32 %v377, 0.0
      %v410 = vadd.f32 %v378, 0.0
      %v411 = vadd.f32 %v379, 0.0
      %v412 = vadd.f32 %v380, 0.0
      %v413 = vadd.f32 %v381, 0.0
      %v414 = vadd.f32 %v382, 0.0
      %v415 = vadd.f32 %v383, 0.0
      %v416 = vadd.f32 %v384, 0.0
      %v417 = vadd.f32 %v385, 0.0
      %v418 = vadd.f32 %v386, 0.0
      %v419 = vadd.f32 %v387, 0.0
      %v420 = vadd.f32 %v388, 0.0
      %v421 = vadd.f32 %v389, 0.0
      %v422 = vadd.f32 %v390, 0.0
      %v423 = vadd.f32 %v391, 0.0
      %v424 = vadd.f32 %v392, 0.0
      %v425 = vadd.f32 %v393, 0.0
      %v426 = vadd.f32 %v394, 0.0
      %v427 = vadd.f32 %v395, 0.0
      %v428 = vadd.f32 %v396, 0.0
      %v429 = vadd.f32 %v397, 0.0
      %v430 = vadd.f32 %v398, 0.0
      %v431 = vadd.f32 %v399, 0.0
      %v432 = vadd.f32 %v400, 0.0
      %v433 = vadd.f32 %v401, 0.0
      %v434 = vadd.f32 %v402, 0.0
      %v435 = vld [vmem:[#allocation2 + $0x1] sm:$0xff]
      %v436 = vld [vmem:[#allocation2 + $0x9] sm:$0xff]
      %v437 = vld [vmem:[#allocation2 + $0x19] sm:$0xff]
      %v438 = vld [vmem:[#allocation2 + $0x21] sm:$0xff]
      %v439 = vld [vmem:[#allocation2 + $0x31] sm:$0xff]
      %v440 = vld [vmem:[#allocation2 + $0x39] sm:$0xff]
      %v441 = vld [vmem:[#allocation2 + $0x49] sm:$0xff]
      %v442 = vld [vmem:[#allocation2 + $0x51] sm:$0xff]
      %v443 = vld [vmem:[#allocation2 + $0x61] sm:$0xff]
      %v444 = vld [vmem:[#allocation2 + $0x69] sm:$0xff]
      %v445 = vld [vmem:[#allocation2 + $0x79] sm:$0xff]
      %v446 = vld [vmem:[#allocation2 + $0x81] sm:$0xff]
      %v447 = vld [vmem:[#allocation2 + $0x91] sm:$0xff]
      %v448 = vld [vmem:[#allocation2 + $0x99] sm:$0xff]
      %v449 = vld [vmem:[#allocation2 + $0xa9] sm:$0xff]
      %v450 = vld [vmem:[#allocation2 + $0xb1] sm:$0xff]
      %v451 = vld [vmem:[#allocation2 + $0xc1] sm:$0xff]
      %v452 = vld [vmem:[#allocation2 + $0xc9] sm:$0xff]
      %v453 = vld [vmem:[#allocation2 + $0xd9] sm:$0xff]
      %v454 = vld [vmem:[#allocation2 + $0xe1] sm:$0xff]
      %v455 = vld [vmem:[#allocation2 + $0xf1] sm:$0xff]
      %v456 = vld [vmem:[#allocation2 + $0xf9] sm:$0xff]
      %v457 = vld [vmem:[#allocation2 + $0x109] sm:$0xff]
      %v458 = vld [vmem:[#allocation2 + $0x111] sm:$0xff]
      %v459 = vld [vmem:[#allocation2 + $0x121] sm:$0xff]
      %v460 = vld [vmem:[#allocation2 + $0x129] sm:$0xff]
      %v461 = vld [vmem:[#allocation2 + $0x139] sm:$0xff]
      %v462 = vld [vmem:[#allocation2 + $0x141] sm:$0xff]
      %v463 = vld [vmem:[#allocation2 + $0x151] sm:$0xff]
      %v464 = vld [vmem:[#allocation2 + $0x159] sm:$0xff]
      %v465 = vld [vmem:[#allocation2 + $0x169] sm:$0xff]
      %v466 = vld [vmem:[#allocation2 + $0x171] sm:$0xff]
      %v467 = vld [vmem:[%s1 + $0x1] sm:$0x1]
      %v468 = vlaneseq
      %v469 = vshrl.u32 %v468, 7
      %v470 = vsub.s32 0, %v469
      %v471 = vrot.slane %v467, %v470
      %v472 = vmul.f32 %v435, %v471
      %v473 = vmul.f32 %v436, %v471
      %v474 = vmul.f32 %v437, %v471
      %v475 = vmul.f32 %v438, %v471
      %v476 = vmul.f32 %v439, %v471
      %v477 = vmul.f32 %v440, %v471
      %v478 = vmul.f32 %v441, %v471
      %v479 = vmul.f32 %v442, %v471
      %v480 = vmul.f32 %v443, %v471
      %v481 = vmul.f32 %v444, %v471
      %v482 = vmul.f32 %v445, %v471
      %v483 = vmul.f32 %v446, %v471
      %v484 = vmul.f32 %v447, %v471
      %v485 = vmul.f32 %v448, %v471
      %v486 = vmul.f32 %v449, %v471
      %v487 = vmul.f32 %v450, %v471
      %v488 = vmul.f32 %v451, %v471
      %v489 = vmul.f32 %v452, %v471
      %v490 = vmul.f32 %v453, %v471
      %v491 = vmul.f32 %v454, %v471
      %v492 = vmul.f32 %v455, %v471
      %v493 = vmul.f32 %v456, %v471
      %v494 = vmul.f32 %v457, %v471
      %v495 = vmul.f32 %v458, %v471
      %v496 = vmul.f32 %v459, %v471
      %v497 = vmul.f32 %v460, %v471
      %v498 = vmul.f32 %v461, %v471
      %v499 = vmul.f32 %v462, %v471
      %v500 = vmul.f32 %v463, %v471
      %v501 = vmul.f32 %v464, %v471
      %v502 = vmul.f32 %v465, %v471
      %v503 = vmul.f32 %v466, %v471
      %v504 = vadd.f32 %v403, %v472
      %v505 = vadd.f32 %v404, %v473
      %v506 = vadd.f32 %v405, %v474
      %v507 = vadd.f32 %v406, %v475
      %v508 = vadd.f32 %v407, %v476
      %v509 = vadd.f32 %v408, %v477
      %v510 = vadd.f32 %v409, %v478
      %v511 = vadd.f32 %v410, %v479
      %v512 = vadd.f32 %v411, %v480
      %v513 = vadd.f32 %v412, %v481
      %v514 = vadd.f32 %v413, %v482
      %v515 = vadd.f32 %v414, %v483
      %v516 = vadd.f32 %v415, %v484
      %v517 = vadd.f32 %v416, %v485
      %v518 = vadd.f32 %v417, %v486
      %v519 = vadd.f32 %v418, %v487
      %v520 = vadd.f32 %v419, %v488
      %v521 = vadd.f32 %v420, %v489
      %v522 = vadd.f32 %v421, %v490
      %v523 = vadd.f32 %v422, %v491
      %v524 = vadd.f32 %v423, %v492
      %v525 = vadd.f32 %v424, %v493
      %v526 = vadd.f32 %v425, %v494
      %v527 = vadd.f32 %v426, %v495
      %v528 = vadd.f32 %v427, %v496
      %v529 = vadd.f32 %v428, %v497
      %v530 = vadd.f32 %v429, %v498
      %v531 = vadd.f32 %v430, %v499
      %v532 = vadd.f32 %v431, %v500
      %v533 = vadd.f32 %v432, %v501
      %v534 = vadd.f32 %v433, %v502
      %v535 = vadd.f32 %v434, %v503
      %v536 = vld [vmem:[#allocation2 + $0x2] sm:$0xff]
      %v537 = vld [vmem:[#allocation2 + $0xa] sm:$0xff]
      %v538 = vld [vmem:[#allocation2 + $0x1a] sm:$0xff]
      %v539 = vld [vmem:[#allocation2 + $0x22] sm:$0xff]
      %v540 = vld [vmem:[#allocation2 + $0x32] sm:$0xff]
      %v541 = vld [vmem:[#allocation2 + $0x3a] sm:$0xff]
      %v542 = vld [vmem:[#allocation2 + $0x4a] sm:$0xff]
      %v543 = vld [vmem:[#allocation2 + $0x52] sm:$0xff]
      %v544 = vld [vmem:[#allocation2 + $0x62] sm:$0xff]
      %v545 = vld [vmem:[#allocation2 + $0x6a] sm:$0xff]
      %v546 = vld [vmem:[#allocation2 + $0x7a] sm:$0xff]
      %v547 = vld [vmem:[#allocation2 + $0x82] sm:$0xff]
      %v548 = vld [vmem:[#allocation2 + $0x92] sm:$0xff]
      %v549 = vld [vmem:[#allocation2 + $0x9a] sm:$0xff]
      %v550 = vld [vmem:[#allocation2 + $0xaa] sm:$0xff]
      %v551 = vld [vmem:[#allocation2 + $0xb2] sm:$0xff]
      %v552 = vld [vmem:[#allocation2 + $0xc2] sm:$0xff]
      %v553 = vld [vmem:[#allocation2 + $0xca] sm:$0xff]
      %v554 = vld [vmem:[#allocation2 + $0xda] sm:$0xff]
      %v555 = vld [vmem:[#allocation2 + $0xe2] sm:$0xff]
      %v556 = vld [vmem:[#allocation2 + $0xf2] sm:$0xff]
      %v557 = vld [vmem:[#allocation2 + $0xfa] sm:$0xff]
      %v558 = vld [vmem:[#allocation2 + $0x10a] sm:$0xff]
      %v559 = vld [vmem:[#allocation2 + $0x112] sm:$0xff]
      %v560 = vld [vmem:[#allocation2 + $0x122] sm:$0xff]
      %v561 = vld [vmem:[#allocation2 + $0x12a] sm:$0xff]
      %v562 = vld [vmem:[#allocation2 + $0x13a] sm:$0xff]
      %v563 = vld [vmem:[#allocation2 + $0x142] sm:$0xff]
      %v564 = vld [vmem:[#allocation2 + $0x152] sm:$0xff]
      %v565 = vld [vmem:[#allocation2 + $0x15a] sm:$0xff]
      %v566 = vld [vmem:[#allocation2 + $0x16a] sm:$0xff]
      %v567 = vld [vmem:[#allocation2 + $0x172] sm:$0xff]
      %v568 = vld [vmem:[%s1 + $0x2] sm:$0x1]
      %v569 = vlaneseq
      %v570 = vshrl.u32 %v569, 7
      %v571 = vsub.s32 0, %v570
      %v572 = vrot.slane %v568, %v571
      %v573 = vmul.f32 %v536, %v572
      %v574 = vmul.f32 %v537, %v572
      %v575 = vmul.f32 %v538, %v572
      %v576 = vmul.f32 %v539, %v572
      %v577 = vmul.f32 %v540, %v572
      %v578 = vmul.f32 %v541, %v572
      %v579 = vmul.f32 %v542, %v572
      %v580 = vmul.f32 %v543, %v572
      %v581 = vmul.f32 %v544, %v572
      %v582 = vmul.f32 %v545, %v572
      %v583 = vmul.f32 %v546, %v572
      %v584 = vmul.f32 %v547, %v572
      %v585 = vmul.f32 %v548, %v572
      %v586 = vmul.f32 %v549, %v572
      %v587 = vmul.f32 %v550, %v572
      %v588 = vmul.f32 %v551, %v572
      %v589 = vmul.f32 %v552, %v572
      %v590 = vmul.f32 %v553, %v572
      %v591 = vmul.f32 %v554, %v572
      %v592 = vmul.f32 %v555, %v572
      %v593 = vmul.f32 %v556, %v572
      %v594 = vmul.f32 %v557, %v572
      %v595 = vmul.f32 %v558, %v572
      %v596 = vmul.f32 %v559, %v572
      %v597 = vmul.f32 %v560, %v572
      %v598 = vmul.f32 %v561, %v572
      %v599 = vmul.f32 %v562, %v572
      %v600 = vmul.f32 %v563, %v572
      %v601 = vmul.f32 %v564, %v572
      %v602 = vmul.f32 %v565, %v572
      %v603 = vmul.f32 %v566, %v572
      %v604 = vmul.f32 %v567, %v572
      %v605 = vadd.f32 %v504, %v573
      %v606 = vadd.f32 %v505, %v574
      %v607 = vadd.f32 %v506, %v575
      %v608 = vadd.f32 %v507, %v576
      %v609 = vadd.f32 %v508, %v577
      %v610 = vadd.f32 %v509, %v578
      %v611 = vadd.f32 %v510, %v579
      %v612 = vadd.f32 %v511, %v580
      %v613 = vadd.f32 %v512, %v581
      %v614 = vadd.f32 %v513, %v582
      %v615 = vadd.f32 %v514, %v583
      %v616 = vadd.f32 %v515, %v584
      %v617 = vadd.f32 %v516, %v585
      %v618 = vadd.f32 %v517, %v586
      %v619 = vadd.f32 %v518, %v587
      %v620 = vadd.f32 %v519, %v588
      %v621 = vadd.f32 %v520, %v589
      %v622 = vadd.f32 %v521, %v590
      %v623 = vadd.f32 %v522, %v591
      %v624 = vadd.f32 %v523, %v592
      %v625 = vadd.f32 %v524, %v593
      %v626 = vadd.f32 %v525, %v594
      %v627 = vadd.f32 %v526, %v595
      %v628 = vadd.f32 %v527, %v596
      %v629 = vadd.f32 %v528, %v597
      %v630 = vadd.f32 %v529, %v598
      %v631 = vadd.f32 %v530, %v599
      %v632 = vadd.f32 %v531, %v600
      %v633 = vadd.f32 %v532, %v601
      %v634 = vadd.f32 %v533, %v602
      %v635 = vadd.f32 %v534, %v603
      %v636 = vadd.f32 %v535, %v604
      %v637 = vld [vmem:[%s301] sm:$0xff]
      %v638 = vld [vmem:[%s301 + $0x8] sm:$0xff]
      %v639 = vld [vmem:[%s301 + $0x18] sm:$0xff]
      %v640 = vld [vmem:[%s301 + $0x20] sm:$0xff]
      %v641 = vld [vmem:[%s301 + $0x30] sm:$0xff]
      %v642 = vld [vmem:[%s301 + $0x38] sm:$0xff]
      %v643 = vld [vmem:[%s301 + $0x48] sm:$0xff]
      %v644 = vld [vmem:[%s301 + $0x50] sm:$0xff]
      %v645 = vld [vmem:[%s301 + $0x60] sm:$0xff]
      %v646 = vld [vmem:[%s301 + $0x68] sm:$0xff]
      %v647 = vld [vmem:[%s301 + $0x78] sm:$0xff]
      %v648 = vld [vmem:[%s301 + $0x80] sm:$0xff]
      %v649 = vld [vmem:[%s301 + $0x90] sm:$0xff]
      %v650 = vld [vmem:[%s301 + $0x98] sm:$0xff]
      %v651 = vld [vmem:[%s301 + $0xa8] sm:$0xff]
      %v652 = vld [vmem:[%s301 + $0xb0] sm:$0xff]
      %v653 = vld [vmem:[%s301 + $0xc0] sm:$0xff]
      %v654 = vld [vmem:[%s301 + $0xc8] sm:$0xff]
      %v655 = vld [vmem:[%s301 + $0xd8] sm:$0xff]
      %v656 = vld [vmem:[%s301 + $0xe0] sm:$0xff]
      %v657 = vld [vmem:[%s301 + $0xf0] sm:$0xff]
      %v658 = vld [vmem:[%s301 + $0xf8] sm:$0xff]
      %v659 = vld [vmem:[%s301 + $0x108] sm:$0xff]
      %v660 = vld [vmem:[%s301 + $0x110] sm:$0xff]
      %v661 = vld [vmem:[%s301 + $0x120] sm:$0xff]
      %v662 = vld [vmem:[%s301 + $0x128] sm:$0xff]
      %v663 = vld [vmem:[%s301 + $0x138] sm:$0xff]
      %v664 = vld [vmem:[%s301 + $0x140] sm:$0xff]
      %v665 = vld [vmem:[%s301 + $0x150] sm:$0xff]
      %v666 = vld [vmem:[%s301 + $0x158] sm:$0xff]
      %v667 = vld [vmem:[%s301 + $0x168] sm:$0xff]
      %v668 = vld [vmem:[%s301 + $0x170] sm:$0xff]
      %v669 = vld [vmem:[%s1 + $0x3] sm:$0x1]
      %v670 = vlaneseq
      %v671 = vshrl.u32 %v670, 7
      %v672 = vsub.s32 0, %v671
      %v673 = vrot.slane %v669, %v672
      %v674 = vmul.f32 %v637, %v673
      %v675 = vmul.f32 %v638, %v673
      %v676 = vmul.f32 %v639, %v673
      %v677 = vmul.f32 %v640, %v673
      %v678 = vmul.f32 %v641, %v673
      %v679 = vmul.f32 %v642, %v673
      %v680 = vmul.f32 %v643, %v673
      %v681 = vmul.f32 %v644, %v673
      %v682 = vmul.f32 %v645, %v673
      %v683 = vmul.f32 %v646, %v673
      %v684 = vmul.f32 %v647, %v673
      %v685 = vmul.f32 %v648, %v673
      %v686 = vmul.f32 %v649, %v673
      %v687 = vmul.f32 %v650, %v673
      %v688 = vmul.f32 %v651, %v673
      %v689 = vmul.f32 %v652, %v673
      %v690 = vmul.f32 %v653, %v673
      %v691 = vmul.f32 %v654, %v673
      %v692 = vmul.f32 %v655, %v673
      %v693 = vmul.f32 %v656, %v673
      %v694 = vmul.f32 %v657, %v673
      %v695 = vmul.f32 %v658, %v673
      %v696 = vmul.f32 %v659, %v673
      %v697 = vmul.f32 %v660, %v673
      %v698 = vmul.f32 %v661, %v673
      %v699 = vmul.f32 %v662, %v673
      %v700 = vmul.f32 %v663, %v673
      %v701 = vmul.f32 %v664, %v673
      %v702 = vmul.f32 %v665, %v673
      %v703 = vmul.f32 %v666, %v673
      %v704 = vmul.f32 %v667, %v673
      %v705 = vmul.f32 %v668, %v673
      %v706 = vadd.f32 %v605, %v674
      %v707 = vadd.f32 %v606, %v675
      %v708 = vadd.f32 %v607, %v676
      %v709 = vadd.f32 %v608, %v677
      %v710 = vadd.f32 %v609, %v678
      %v711 = vadd.f32 %v610, %v679
      %v712 = vadd.f32 %v611, %v680
      %v713 = vadd.f32 %v612, %v681
      %v714 = vadd.f32 %v613, %v682
      %v715 = vadd.f32 %v614, %v683
      %v716 = vadd.f32 %v615, %v684
      %v717 = vadd.f32 %v616, %v685
      %v718 = vadd.f32 %v617, %v686
      %v719 = vadd.f32 %v618, %v687
      %v720 = vadd.f32 %v619, %v688
      %v721 = vadd.f32 %v620, %v689
      %v722 = vadd.f32 %v621, %v690
      %v723 = vadd.f32 %v622, %v691
      %v724 = vadd.f32 %v623, %v692
      %v725 = vadd.f32 %v624, %v693
      %v726 = vadd.f32 %v625, %v694
      %v727 = vadd.f32 %v626, %v695
      %v728 = vadd.f32 %v627, %v696
      %v729 = vadd.f32 %v628, %v697
      %v730 = vadd.f32 %v629, %v698
      %v731 = vadd.f32 %v630, %v699
      %v732 = vadd.f32 %v631, %v700
      %v733 = vadd.f32 %v632, %v701
      %v734 = vadd.f32 %v633, %v702
      %v735 = vadd.f32 %v634, %v703
      %v736 = vadd.f32 %v635, %v704
      %v737 = vadd.f32 %v636, %v705
      %v738 = vld [vmem:[%s301 + $0x1] sm:$0xff]
      %v739 = vld [vmem:[%s301 + $0x9] sm:$0xff]
      %v740 = vld [vmem:[%s301 + $0x19] sm:$0xff]
      %v741 = vld [vmem:[%s301 + $0x21] sm:$0xff]
      %v742 = vld [vmem:[%s301 + $0x31] sm:$0xff]
      %v743 = vld [vmem:[%s301 + $0x39] sm:$0xff]
      %v744 = vld [vmem:[%s301 + $0x49] sm:$0xff]
      %v745 = vld [vmem:[%s301 + $0x51] sm:$0xff]
      %v746 = vld [vmem:[%s301 + $0x61] sm:$0xff]
      %v747 = vld [vmem:[%s301 + $0x69] sm:$0xff]
      %v748 = vld [vmem:[%s301 + $0x79] sm:$0xff]
      %v749 = vld [vmem:[%s301 + $0x81] sm:$0xff]
      %v750 = vld [vmem:[%s301 + $0x91] sm:$0xff]
      %v751 = vld [vmem:[%s301 + $0x99] sm:$0xff]
      %v752 = vld [vmem:[%s301 + $0xa9] sm:$0xff]
      %v753 = vld [vmem:[%s301 + $0xb1] sm:$0xff]
      %v754 = vld [vmem:[%s301 + $0xc1] sm:$0xff]
      %v755 = vld [vmem:[%s301 + $0xc9] sm:$0xff]
      %v756 = vld [vmem:[%s301 + $0xd9] sm:$0xff]
      %v757 = vld [vmem:[%s301 + $0xe1] sm:$0xff]
      %v758 = vld [vmem:[%s301 + $0xf1] sm:$0xff]
      %v759 = vld [vmem:[%s301 + $0xf9] sm:$0xff]
      %v760 = vld [vmem:[%s301 + $0x109] sm:$0xff]
      %v761 = vld [vmem:[%s301 + $0x111] sm:$0xff]
      %v762 = vld [vmem:[%s301 + $0x121] sm:$0xff]
      %v763 = vld [vmem:[%s301 + $0x129] sm:$0xff]
      %v764 = vld [vmem:[%s301 + $0x139] sm:$0xff]
      %v765 = vld [vmem:[%s301 + $0x141] sm:$0xff]
      %v766 = vld [vmem:[%s301 + $0x151] sm:$0xff]
      %v767 = vld [vmem:[%s301 + $0x159] sm:$0xff]
      %v768 = vld [vmem:[%s301 + $0x169] sm:$0xff]
      %v769 = vld [vmem:[%s301 + $0x171] sm:$0xff]
      %v770 = vld [vmem:[%s1 + $0x4] sm:$0x1]
      %v771 = vlaneseq
      %v772 = vshrl.u32 %v771, 7
      %v773 = vsub.s32 0, %v772
      %v774 = vrot.slane %v770, %v773
      %v775 = vmul.f32 %v738, %v774
      %v776 = vmul.f32 %v739, %v774
      %v777 = vmul.f32 %v740, %v774
      %v778 = vmul.f32 %v741, %v774
      %v779 = vmul.f32 %v742, %v774
      %v780 = vmul.f32 %v743, %v774
      %v781 = vmul.f32 %v744, %v774
      %v782 = vmul.f32 %v745, %v774
      %v783 = vmul.f32 %v746, %v774
      %v784 = vmul.f32 %v747, %v774
      %v785 = vmul.f32 %v748, %v774
      %v786 = vmul.f32 %v749, %v774
      %v787 = vmul.f32 %v750, %v774
      %v788 = vmul.f32 %v751, %v774
      %v789 = vmul.f32 %v752, %v774
      %v790 = vmul.f32 %v753, %v774
      %v791 = vmul.f32 %v754, %v774
      %v792 = vmul.f32 %v755, %v774
      %v793 = vmul.f32 %v756, %v774
      %v794 = vmul.f32 %v757, %v774
      %v795 = vmul.f32 %v758, %v774
      %v796 = vmul.f32 %v759, %v774
      %v797 = vmul.f32 %v760, %v774
      %v798 = vmul.f32 %v761, %v774
      %v799 = vmul.f32 %v762, %v774
      %v800 = vmul.f32 %v763, %v774
      %v801 = vmul.f32 %v764, %v774
      %v802 = vmul.f32 %v765, %v774
      %v803 = vmul.f32 %v766, %v774
      %v804 = vmul.f32 %v767, %v774
      %v805 = vmul.f32 %v768, %v774
      %v806 = vmul.f32 %v769, %v774
      %v807 = vadd.f32 %v706, %v775
      %v808 = vadd.f32 %v707, %v776
      %v809 = vadd.f32 %v708, %v777
      %v810 = vadd.f32 %v709, %v778
      %v811 = vadd.f32 %v710, %v779
      %v812 = vadd.f32 %v711, %v780
      %v813 = vadd.f32 %v712, %v781
      %v814 = vadd.f32 %v713, %v782
      %v815 = vadd.f32 %v714, %v783
      %v816 = vadd.f32 %v715, %v784
      %v817 = vadd.f32 %v716, %v785
      %v818 = vadd.f32 %v717, %v786
      %v819 = vadd.f32 %v718, %v787
      %v820 = vadd.f32 %v719, %v788
      %v821 = vadd.f32 %v720, %v789
      %v822 = vadd.f32 %v721, %v790
      %v823 = vadd.f32 %v722, %v791
      %v824 = vadd.f32 %v723, %v792
      %v825 = vadd.f32 %v724, %v793
      %v826 = vadd.f32 %v725, %v794
      %v827 = vadd.f32 %v726, %v795
      %v828 = vadd.f32 %v727, %v796
      %v829 = vadd.f32 %v728, %v797
      %v830 = vadd.f32 %v729, %v798
      %v831 = vadd.f32 %v730, %v799
      %v832 = vadd.f32 %v731, %v800
      %v833 = vadd.f32 %v732, %v801
      %v834 = vadd.f32 %v733, %v802
      %v835 = vadd.f32 %v734, %v803
      %v836 = vadd.f32 %v735, %v804
      %v837 = vadd.f32 %v736, %v805
      %v838 = vadd.f32 %v737, %v806
      %v839 = vld [vmem:[%s301 + $0x2] sm:$0xff]
      %v840 = vld [vmem:[%s301 + $0xa] sm:$0xff]
      %v841 = vld [vmem:[%s301 + $0x1a] sm:$0xff]
      %v842 = vld [vmem:[%s301 + $0x22] sm:$0xff]
      %v843 = vld [vmem:[%s301 + $0x32] sm:$0xff]
      %v844 = vld [vmem:[%s301 + $0x3a] sm:$0xff]
      %v845 = vld [vmem:[%s301 + $0x4a] sm:$0xff]
      %v846 = vld [vmem:[%s301 + $0x52] sm:$0xff]
      %v847 = vld [vmem:[%s301 + $0x62] sm:$0xff]
      %v848 = vld [vmem:[%s301 + $0x6a] sm:$0xff]
      %v849 = vld [vmem:[%s301 + $0x7a] sm:$0xff]
      %v850 = vld [vmem:[%s301 + $0x82] sm:$0xff]
      %v851 = vld [vmem:[%s301 + $0x92] sm:$0xff]
      %v852 = vld [vmem:[%s301 + $0x9a] sm:$0xff]
      %v853 = vld [vmem:[%s301 + $0xaa] sm:$0xff]
      %v854 = vld [vmem:[%s301 + $0xb2] sm:$0xff]
      %v855 = vld [vmem:[%s301 + $0xc2] sm:$0xff]
      %v856 = vld [vmem:[%s301 + $0xca] sm:$0xff]
      %v857 = vld [vmem:[%s301 + $0xda] sm:$0xff]
      %v858 = vld [vmem:[%s301 + $0xe2] sm:$0xff]
      %v859 = vld [vmem:[%s301 + $0xf2] sm:$0xff]
      %v860 = vld [vmem:[%s301 + $0xfa] sm:$0xff]
      %v861 = vld [vmem:[%s301 + $0x10a] sm:$0xff]
      %v862 = vld [vmem:[%s301 + $0x112] sm:$0xff]
      %v863 = vld [vmem:[%s301 + $0x122] sm:$0xff]
      %v864 = vld [vmem:[%s301 + $0x12a] sm:$0xff]
      %v865 = vld [vmem:[%s301 + $0x13a] sm:$0xff]
      %v866 = vld [vmem:[%s301 + $0x142] sm:$0xff]
      %v867 = vld [vmem:[%s301 + $0x152] sm:$0xff]
      %v868 = vld [vmem:[%s301 + $0x15a] sm:$0xff]
      %v869 = vld [vmem:[%s301 + $0x16a] sm:$0xff]
      %v870 = vld [vmem:[%s301 + $0x172] sm:$0xff]
      %v871 = vld [vmem:[%s1 + $0x5] sm:$0x1]
      %v872 = vlaneseq
      %v873 = vshrl.u32 %v872, 7
      %v874 = vsub.s32 0, %v873
      %v875 = vrot.slane %v871, %v874
      %v876 = vmul.f32 %v839, %v875
      %v877 = vmul.f32 %v840, %v875
      %v878 = vmul.f32 %v841, %v875
      %v879 = vmul.f32 %v842, %v875
      %v880 = vmul.f32 %v843, %v875
      %v881 = vmul.f32 %v844, %v875
      %v882 = vmul.f32 %v845, %v875
      %v883 = vmul.f32 %v846, %v875
      %v884 = vmul.f32 %v847, %v875
      %v885 = vmul.f32 %v848, %v875
      %v886 = vmul.f32 %v849, %v875
      %v887 = vmul.f32 %v850, %v875
      %v888 = vmul.f32 %v851, %v875
      %v889 = vmul.f32 %v852, %v875
      %v890 = vmul.f32 %v853, %v875
      %v891 = vmul.f32 %v854, %v875
      %v892 = vmul.f32 %v855, %v875
      %v893 = vmul.f32 %v856, %v875
      %v894 = vmul.f32 %v857, %v875
      %v895 = vmul.f32 %v858, %v875
      %v896 = vmul.f32 %v859, %v875
      %v897 = vmul.f32 %v860, %v875
      %v898 = vmul.f32 %v861, %v875
      %v899 = vmul.f32 %v862, %v875
      %v900 = vmul.f32 %v863, %v875
      %v901 = vmul.f32 %v864, %v875
      %v902 = vmul.f32 %v865, %v875
      %v903 = vmul.f32 %v866, %v875
      %v904 = vmul.f32 %v867, %v875
      %v905 = vmul.f32 %v868, %v875
      %v906 = vmul.f32 %v869, %v875
      %v907 = vmul.f32 %v870, %v875
      %v908 = vadd.f32 %v807, %v876
      %v909 = vadd.f32 %v808, %v877
      %v910 = vadd.f32 %v809, %v878
      %v911 = vadd.f32 %v810, %v879
      %v912 = vadd.f32 %v811, %v880
      %v913 = vadd.f32 %v812, %v881
      %v914 = vadd.f32 %v813, %v882
      %v915 = vadd.f32 %v814, %v883
      %v916 = vadd.f32 %v815, %v884
      %v917 = vadd.f32 %v816, %v885
      %v918 = vadd.f32 %v817, %v886
      %v919 = vadd.f32 %v818, %v887
      %v920 = vadd.f32 %v819, %v888
      %v921 = vadd.f32 %v820, %v889
      %v922 = vadd.f32 %v821, %v890
      %v923 = vadd.f32 %v822, %v891
      %v924 = vadd.f32 %v823, %v892
      %v925 = vadd.f32 %v824, %v893
      %v926 = vadd.f32 %v825, %v894
      %v927 = vadd.f32 %v826, %v895
      %v928 = vadd.f32 %v827, %v896
      %v929 = vadd.f32 %v828, %v897
      %v930 = vadd.f32 %v829, %v898
      %v931 = vadd.f32 %v830, %v899
      %v932 = vadd.f32 %v831, %v900
      %v933 = vadd.f32 %v832, %v901
      %v934 = vadd.f32 %v833, %v902
      %v935 = vadd.f32 %v834, %v903
      %v936 = vadd.f32 %v835, %v904
      %v937 = vadd.f32 %v836, %v905
      %v938 = vadd.f32 %v837, %v906
      %v939 = vadd.f32 %v838, %v907
      %s940 = scalar_lea.vmem [#allocation2], 48
      %v941 = vld [vmem:[%s940] sm:$0xff]
      %v942 = vld [vmem:[%s940 + $0x8] sm:$0xff]
      %v943 = vld [vmem:[%s940 + $0x18] sm:$0xff]
      %v944 = vld [vmem:[%s940 + $0x20] sm:$0xff]
      %v945 = vld [vmem:[%s940 + $0x30] sm:$0xff]
      %v946 = vld [vmem:[%s940 + $0x38] sm:$0xff]
      %v947 = vld [vmem:[%s940 + $0x48] sm:$0xff]
      %v948 = vld [vmem:[%s940 + $0x50] sm:$0xff]
      %v949 = vld [vmem:[%s940 + $0x60] sm:$0xff]
      %v950 = vld [vmem:[%s940 + $0x68] sm:$0xff]
      %v951 = vld [vmem:[%s940 + $0x78] sm:$0xff]
      %v952 = vld [vmem:[%s940 + $0x80] sm:$0xff]
      %v953 = vld [vmem:[%s940 + $0x90] sm:$0xff]
      %v954 = vld [vmem:[%s940 + $0x98] sm:$0xff]
      %v955 = vld [vmem:[%s940 + $0xa8] sm:$0xff]
      %v956 = vld [vmem:[%s940 + $0xb0] sm:$0xff]
      %v957 = vld [vmem:[%s940 + $0xc0] sm:$0xff]
      %v958 = vld [vmem:[%s940 + $0xc8] sm:$0xff]
      %v959 = vld [vmem:[%s940 + $0xd8] sm:$0xff]
      %v960 = vld [vmem:[%s940 + $0xe0] sm:$0xff]
      %v961 = vld [vmem:[%s940 + $0xf0] sm:$0xff]
      %v962 = vld [vmem:[%s940 + $0xf8] sm:$0xff]
      %v963 = vld [vmem:[%s940 + $0x108] sm:$0xff]
      %v964 = vld [vmem:[%s940 + $0x110] sm:$0xff]
      %v965 = vld [vmem:[%s940 + $0x120] sm:$0xff]
      %v966 = vld [vmem:[%s940 + $0x128] sm:$0xff]
      %v967 = vld [vmem:[%s940 + $0x138] sm:$0xff]
      %v968 = vld [vmem:[%s940 + $0x140] sm:$0xff]
      %v969 = vld [vmem:[%s940 + $0x150] sm:$0xff]
      %v970 = vld [vmem:[%s940 + $0x158] sm:$0xff]
      %v971 = vld [vmem:[%s940 + $0x168] sm:$0xff]
      %v972 = vld [vmem:[%s940 + $0x170] sm:$0xff]
      %v973 = vld [vmem:[%s1 + $0x6] sm:$0x1]
      %v974 = vlaneseq
      %v975 = vshrl.u32 %v974, 7
      %v976 = vsub.s32 0, %v975
      %v977 = vrot.slane %v973, %v976
      %v978 = vmul.f32 %v941, %v977
      %v979 = vmul.f32 %v942, %v977
      %v980 = vmul.f32 %v943, %v977
      %v981 = vmul.f32 %v944, %v977
      %v982 = vmul.f32 %v945, %v977
      %v983 = vmul.f32 %v946, %v977
      %v984 = vmul.f32 %v947, %v977
      %v985 = vmul.f32 %v948, %v977
      %v986 = vmul.f32 %v949, %v977
      %v987 = vmul.f32 %v950, %v977
      %v988 = vmul.f32 %v951, %v977
      %v989 = vmul.f32 %v952, %v977
      %v990 = vmul.f32 %v953, %v977
      %v991 = vmul.f32 %v954, %v977
      %v992 = vmul.f32 %v955, %v977
      %v993 = vmul.f32 %v956, %v977
      %v994 = vmul.f32 %v957, %v977
      %v995 = vmul.f32 %v958, %v977
      %v996 = vmul.f32 %v959, %v977
      %v997 = vmul.f32 %v960, %v977
      %v998 = vmul.f32 %v961, %v977
      %v999 = vmul.f32 %v962, %v977
      %v1000 = vmul.f32 %v963, %v977
      %v1001 = vmul.f32 %v964, %v977
      %v1002 = vmul.f32 %v965, %v977
      %v1003 = vmul.f32 %v966, %v977
      %v1004 = vmul.f32 %v967, %v977
      %v1005 = vmul.f32 %v968, %v977
      %v1006 = vmul.f32 %v969, %v977
      %v1007 = vmul.f32 %v970, %v977
      %v1008 = vmul.f32 %v971, %v977
      %v1009 = vmul.f32 %v972, %v977
      %v1010 = vadd.f32 %v908, %v978
      %v1011 = vadd.f32 %v909, %v979
      %v1012 = vadd.f32 %v910, %v980
      %v1013 = vadd.f32 %v911, %v981
      %v1014 = vadd.f32 %v912, %v982
      %v1015 = vadd.f32 %v913, %v983
      %v1016 = vadd.f32 %v914, %v984
      %v1017 = vadd.f32 %v915, %v985
      %v1018 = vadd.f32 %v916, %v986
      %v1019 = vadd.f32 %v917, %v987
      %v1020 = vadd.f32 %v918, %v988
      %v1021 = vadd.f32 %v919, %v989
      %v1022 = vadd.f32 %v920, %v990
      %v1023 = vadd.f32 %v921, %v991
      %v1024 = vadd.f32 %v922, %v992
      %v1025 = vadd.f32 %v923, %v993
      %v1026 = vadd.f32 %v924, %v994
      %v1027 = vadd.f32 %v925, %v995
      %v1028 = vadd.f32 %v926, %v996
      %v1029 = vadd.f32 %v927, %v997
      %v1030 = vadd.f32 %v928, %v998
      %v1031 = vadd.f32 %v929, %v999
      %v1032 = vadd.f32 %v930, %v1000
      %v1033 = vadd.f32 %v931, %v1001
      %v1034 = vadd.f32 %v932, %v1002
      %v1035 = vadd.f32 %v933, %v1003
      %v1036 = vadd.f32 %v934, %v1004
      %v1037 = vadd.f32 %v935, %v1005
      %v1038 = vadd.f32 %v936, %v1006
      %v1039 = vadd.f32 %v937, %v1007
      %v1040 = vadd.f32 %v938, %v1008
      %v1041 = vadd.f32 %v939, %v1009
      %v1042 = vld [vmem:[%s940 + $0x1] sm:$0xff]
      %v1043 = vld [vmem:[%s940 + $0x9] sm:$0xff]
      %v1044 = vld [vmem:[%s940 + $0x19] sm:$0xff]
      %v1045 = vld [vmem:[%s940 + $0x21] sm:$0xff]
      %v1046 = vld [vmem:[%s940 + $0x31] sm:$0xff]
      %v1047 = vld [vmem:[%s940 + $0x39] sm:$0xff]
      %v1048 = vld [vmem:[%s940 + $0x49] sm:$0xff]
      %v1049 = vld [vmem:[%s940 + $0x51] sm:$0xff]
      %v1050 = vld [vmem:[%s940 + $0x61] sm:$0xff]
      %v1051 = vld [vmem:[%s940 + $0x69] sm:$0xff]
      %v1052 = vld [vmem:[%s940 + $0x79] sm:$0xff]
      %v1053 = vld [vmem:[%s940 + $0x81] sm:$0xff]
      %v1054 = vld [vmem:[%s940 + $0x91] sm:$0xff]
      %v1055 = vld [vmem:[%s940 + $0x99] sm:$0xff]
      %v1056 = vld [vmem:[%s940 + $0xa9] sm:$0xff]
      %v1057 = vld [vmem:[%s940 + $0xb1] sm:$0xff]
      %v1058 = vld [vmem:[%s940 + $0xc1] sm:$0xff]
      %v1059 = vld [vmem:[%s940 + $0xc9] sm:$0xff]
      %v1060 = vld [vmem:[%s940 + $0xd9] sm:$0xff]
      %v1061 = vld [vmem:[%s940 + $0xe1] sm:$0xff]
      %v1062 = vld [vmem:[%s940 + $0xf1] sm:$0xff]
      %v1063 = vld [vmem:[%s940 + $0xf9] sm:$0xff]
      %v1064 = vld [vmem:[%s940 + $0x109] sm:$0xff]
      %v1065 = vld [vmem:[%s940 + $0x111] sm:$0xff]
      %v1066 = vld [vmem:[%s940 + $0x121] sm:$0xff]
      %v1067 = vld [vmem:[%s940 + $0x129] sm:$0xff]
      %v1068 = vld [vmem:[%s940 + $0x139] sm:$0xff]
      %v1069 = vld [vmem:[%s940 + $0x141] sm:$0xff]
      %v1070 = vld [vmem:[%s940 + $0x151] sm:$0xff]
      %v1071 = vld [vmem:[%s940 + $0x159] sm:$0xff]
      %v1072 = vld [vmem:[%s940 + $0x169] sm:$0xff]
      %v1073 = vld [vmem:[%s940 + $0x171] sm:$0xff]
      %v1074 = vld [vmem:[%s1 + $0x7] sm:$0x1]
      %v1075 = vlaneseq
      %v1076 = vshrl.u32 %v1075, 7
      %v1077 = vsub.s32 0, %v1076
      %v1078 = vrot.slane %v1074, %v1077
      %v1079 = vmul.f32 %v1042, %v1078
      %v1080 = vmul.f32 %v1043, %v1078
      %v1081 = vmul.f32 %v1044, %v1078
      %v1082 = vmul.f32 %v1045, %v1078
      %v1083 = vmul.f32 %v1046, %v1078
      %v1084 = vmul.f32 %v1047, %v1078
      %v1085 = vmul.f32 %v1048, %v1078
      %v1086 = vmul.f32 %v1049, %v1078
      %v1087 = vmul.f32 %v1050, %v1078
      %v1088 = vmul.f32 %v1051, %v1078
      %v1089 = vmul.f32 %v1052, %v1078
      %v1090 = vmul.f32 %v1053, %v1078
      %v1091 = vmul.f32 %v1054, %v1078
      %v1092 = vmul.f32 %v1055, %v1078
      %v1093 = vmul.f32 %v1056, %v1078
      %v1094 = vmul.f32 %v1057, %v1078
      %v1095 = vmul.f32 %v1058, %v1078
      %v1096 = vmul.f32 %v1059, %v1078
      %v1097 = vmul.f32 %v1060, %v1078
      %v1098 = vmul.f32 %v1061, %v1078
      %v1099 = vmul.f32 %v1062, %v1078
      %v1100 = vmul.f32 %v1063, %v1078
      %v1101 = vmul.f32 %v1064, %v1078
      %v1102 = vmul.f32 %v1065, %v1078
      %v1103 = vmul.f32 %v1066, %v1078
      %v1104 = vmul.f32 %v1067, %v1078
      %v1105 = vmul.f32 %v1068, %v1078
      %v1106 = vmul.f32 %v1069, %v1078
      %v1107 = vmul.f32 %v1070, %v1078
      %v1108 = vmul.f32 %v1071, %v1078
      %v1109 = vmul.f32 %v1072, %v1078
      %v1110 = vmul.f32 %v1073, %v1078
      %v1111 = vadd.f32 %v1010, %v1079
      %v1112 = vadd.f32 %v1011, %v1080
      %v1113 = vadd.f32 %v1012, %v1081
      %v1114 = vadd.f32 %v1013, %v1082
      %v1115 = vadd.f32 %v1014, %v1083
      %v1116 = vadd.f32 %v1015, %v1084
      %v1117 = vadd.f32 %v1016, %v1085
      %v1118 = vadd.f32 %v1017, %v1086
      %v1119 = vadd.f32 %v1018, %v1087
      %v1120 = vadd.f32 %v1019, %v1088
      %v1121 = vadd.f32 %v1020, %v1089
      %v1122 = vadd.f32 %v1021, %v1090
      %v1123 = vadd.f32 %v1022, %v1091
      %v1124 = vadd.f32 %v1023, %v1092
      %v1125 = vadd.f32 %v1024, %v1093
      %v1126 = vadd.f32 %v1025, %v1094
      %v1127 = vadd.f32 %v1026, %v1095
      %v1128 = vadd.f32 %v1027, %v1096
      %v1129 = vadd.f32 %v1028, %v1097
      %v1130 = vadd.f32 %v1029, %v1098
      %v1131 = vadd.f32 %v1030, %v1099
      %v1132 = vadd.f32 %v1031, %v1100
      %v1133 = vadd.f32 %v1032, %v1101
      %v1134 = vadd.f32 %v1033, %v1102
      %v1135 = vadd.f32 %v1034, %v1103
      %v1136 = vadd.f32 %v1035, %v1104
      %v1137 = vadd.f32 %v1036, %v1105
      %v1138 = vadd.f32 %v1037, %v1106
      %v1139 = vadd.f32 %v1038, %v1107
      %v1140 = vadd.f32 %v1039, %v1108
      %v1141 = vadd.f32 %v1040, %v1109
      %v1142 = vadd.f32 %v1041, %v1110
      %v1143 = vld [vmem:[%s940 + $0x2] sm:$0xff]
      %v1144 = vld [vmem:[%s940 + $0xa] sm:$0xff]
      %v1145 = vld [vmem:[%s940 + $0x1a] sm:$0xff]
      %v1146 = vld [vmem:[%s940 + $0x22] sm:$0xff]
      %v1147 = vld [vmem:[%s940 + $0x32] sm:$0xff]
      %v1148 = vld [vmem:[%s940 + $0x3a] sm:$0xff]
      %v1149 = vld [vmem:[%s940 + $0x4a] sm:$0xff]
      %v1150 = vld [vmem:[%s940 + $0x52] sm:$0xff]
      %v1151 = vld [vmem:[%s940 + $0x62] sm:$0xff]
      %v1152 = vld [vmem:[%s940 + $0x6a] sm:$0xff]
      %v1153 = vld [vmem:[%s940 + $0x7a] sm:$0xff]
      %v1154 = vld [vmem:[%s940 + $0x82] sm:$0xff]
      %v1155 = vld [vmem:[%s940 + $0x92] sm:$0xff]
      %v1156 = vld [vmem:[%s940 + $0x9a] sm:$0xff]
      %v1157 = vld [vmem:[%s940 + $0xaa] sm:$0xff]
      %v1158 = vld [vmem:[%s940 + $0xb2] sm:$0xff]
      %v1159 = vld [vmem:[%s940 + $0xc2] sm:$0xff]
      %v1160 = vld [vmem:[%s940 + $0xca] sm:$0xff]
      %v1161 = vld [vmem:[%s940 + $0xda] sm:$0xff]
      %v1162 = vld [vmem:[%s940 + $0xe2] sm:$0xff]
      %v1163 = vld [vmem:[%s940 + $0xf2] sm:$0xff]
      %v1164 = vld [vmem:[%s940 + $0xfa] sm:$0xff]
      %v1165 = vld [vmem:[%s940 + $0x10a] sm:$0xff]
      %v1166 = vld [vmem:[%s940 + $0x112] sm:$0xff]
      %v1167 = vld [vmem:[%s940 + $0x122] sm:$0xff]
      %v1168 = vld [vmem:[%s940 + $0x12a] sm:$0xff]
      %v1169 = vld [vmem:[%s940 + $0x13a] sm:$0xff]
      %v1170 = vld [vmem:[%s940 + $0x142] sm:$0xff]
      %v1171 = vld [vmem:[%s940 + $0x152] sm:$0xff]
      %v1172 = vld [vmem:[%s940 + $0x15a] sm:$0xff]
      %v1173 = vld [vmem:[%s940 + $0x16a] sm:$0xff]
      %v1174 = vld [vmem:[%s940 + $0x172] sm:$0xff]
      %v1175 = vld [vmem:[%s1 + $0x8] sm:$0x1]
      %v1176 = vlaneseq
      %v1177 = vshrl.u32 %v1176, 7
      %v1178 = vsub.s32 0, %v1177
      %v1179 = vrot.slane %v1175, %v1178
      %v1180 = vmul.f32 %v1143, %v1179
      %v1181 = vmul.f32 %v1144, %v1179
      %v1182 = vmul.f32 %v1145, %v1179
      %v1183 = vmul.f32 %v1146, %v1179
      %v1184 = vmul.f32 %v1147, %v1179
      %v1185 = vmul.f32 %v1148, %v1179
      %v1186 = vmul.f32 %v1149, %v1179
      %v1187 = vmul.f32 %v1150, %v1179
      %v1188 = vmul.f32 %v1151, %v1179
      %v1189 = vmul.f32 %v1152, %v1179
      %v1190 = vmul.f32 %v1153, %v1179
      %v1191 = vmul.f32 %v1154, %v1179
      %v1192 = vmul.f32 %v1155, %v1179
      %v1193 = vmul.f32 %v1156, %v1179
      %v1194 = vmul.f32 %v1157, %v1179
      %v1195 = vmul.f32 %v1158, %v1179
      %v1196 = vmul.f32 %v1159, %v1179
      %v1197 = vmul.f32 %v1160, %v1179
      %v1198 = vmul.f32 %v1161, %v1179
      %v1199 = vmul.f32 %v1162, %v1179
      %v1200 = vmul.f32 %v1163, %v1179
      %v1201 = vmul.f32 %v1164, %v1179
      %v1202 = vmul.f32 %v1165, %v1179
      %v1203 = vmul.f32 %v1166, %v1179
      %v1204 = vmul.f32 %v1167, %v1179
      %v1205 = vmul.f32 %v1168, %v1179
      %v1206 = vmul.f32 %v1169, %v1179
      %v1207 = vmul.f32 %v1170, %v1179
      %v1208 = vmul.f32 %v1171, %v1179
      %v1209 = vmul.f32 %v1172, %v1179
      %v1210 = vmul.f32 %v1173, %v1179
      %v1211 = vmul.f32 %v1174, %v1179
      %v1212 = vadd.f32 %v1111, %v1180
      %v1213 = vadd.f32 %v1112, %v1181
      %v1214 = vadd.f32 %v1113, %v1182
      %v1215 = vadd.f32 %v1114, %v1183
      %v1216 = vadd.f32 %v1115, %v1184
      %v1217 = vadd.f32 %v1116, %v1185
      %v1218 = vadd.f32 %v1117, %v1186
      %v1219 = vadd.f32 %v1118, %v1187
      %v1220 = vadd.f32 %v1119, %v1188
      %v1221 = vadd.f32 %v1120, %v1189
      %v1222 = vadd.f32 %v1121, %v1190
      %v1223 = vadd.f32 %v1122, %v1191
      %v1224 = vadd.f32 %v1123, %v1192
      %v1225 = vadd.f32 %v1124, %v1193
      %v1226 = vadd.f32 %v1125, %v1194
      %v1227 = vadd.f32 %v1126, %v1195
      %v1228 = vadd.f32 %v1127, %v1196
      %v1229 = vadd.f32 %v1128, %v1197
      %v1230 = vadd.f32 %v1129, %v1198
      %v1231 = vadd.f32 %v1130, %v1199
      %v1232 = vadd.f32 %v1131, %v1200
      %v1233 = vadd.f32 %v1132, %v1201
      %v1234 = vadd.f32 %v1133, %v1202
      %v1235 = vadd.f32 %v1134, %v1203
      %v1236 = vadd.f32 %v1135, %v1204
      %v1237 = vadd.f32 %v1136, %v1205
      %v1238 = vadd.f32 %v1137, %v1206
      %v1239 = vadd.f32 %v1138, %v1207
      %v1240 = vadd.f32 %v1139, %v1208
      %v1241 = vadd.f32 %v1140, %v1209
      %v1242 = vadd.f32 %v1141, %v1210
      %v1243 = vadd.f32 %v1142, %v1211
      %1244 = vst [vmem:[%s208] sm:$0xff] %v1212
      %1245 = vst [vmem:[%s208 + $0x8] sm:$0xff] %v1213
      %1246 = vst [vmem:[%s208 + $0x10] sm:$0xff] %v1214
      %1247 = vst [vmem:[%s208 + $0x18] sm:$0xff] %v1215
      %1248 = vst [vmem:[%s208 + $0x20] sm:$0xff] %v1216
      %1249 = vst [vmem:[%s208 + $0x28] sm:$0xff] %v1217
      %1250 = vst [vmem:[%s208 + $0x30] sm:$0xff] %v1218
      %1251 = vst [vmem:[%s208 + $0x38] sm:$0xff] %v1219
      %1252 = vst [vmem:[%s208 + $0x40] sm:$0xff] %v1220
      %1253 = vst [vmem:[%s208 + $0x48] sm:$0xff] %v1221
      %1254 = vst [vmem:[%s208 + $0x50] sm:$0xff] %v1222
      %1255 = vst [vmem:[%s208 + $0x58] sm:$0xff] %v1223
      %1256 = vst [vmem:[%s208 + $0x60] sm:$0xff] %v1224
      %1257 = vst [vmem:[%s208 + $0x68] sm:$0xff] %v1225
      %1258 = vst [vmem:[%s208 + $0x70] sm:$0xff] %v1226
      %1259 = vst [vmem:[%s208 + $0x78] sm:$0xff] %v1227
      %1260 = vst [vmem:[%s208 + $0x80] sm:$0xff] %v1228
      %1261 = vst [vmem:[%s208 + $0x88] sm:$0xff] %v1229
      %1262 = vst [vmem:[%s208 + $0x90] sm:$0xff] %v1230
      %1263 = vst [vmem:[%s208 + $0x98] sm:$0xff] %v1231
      %1264 = vst [vmem:[%s208 + $0xa0] sm:$0xff] %v1232
      %1265 = vst [vmem:[%s208 + $0xa8] sm:$0xff] %v1233
      %1266 = vst [vmem:[%s208 + $0xb0] sm:$0xff] %v1234
      %1267 = vst [vmem:[%s208 + $0xb8] sm:$0xff] %v1235
      %1268 = vst [vmem:[%s208 + $0xc0] sm:$0xff] %v1236
      %1269 = vst [vmem:[%s208 + $0xc8] sm:$0xff] %v1237
      %1270 = vst [vmem:[%s208 + $0xd0] sm:$0xff] %v1238
      %1271 = vst [vmem:[%s208 + $0xd8] sm:$0xff] %v1239
      %1272 = vst [vmem:[%s208 + $0xe0] sm:$0xff] %v1240
      %1273 = vst [vmem:[%s208 + $0xe8] sm:$0xff] %v1241
      %1274 = vst [vmem:[%s208 + $0xf0] sm:$0xff] %v1242
      %1275 = vst [vmem:[%s208 + $0xf8] sm:$0xff] %v1243
      %v1276 = vadd.f32 %v1212, %v1213
      %v1277 = vadd.f32 %v1276, %v1214
      %v1278 = vadd.f32 %v1277, %v1215
      %v1279 = vadd.f32 %v1278, %v1216
      %v1280 = vadd.f32 %v1279, %v1217
      %v1281 = vadd.f32 %v1280, %v1218
      %v1282 = vadd.f32 %v1281, %v1219
      %v1283 = vadd.f32 %v1282, %v1220
      %v1284 = vadd.f32 %v1283, %v1221
      %v1285 = vadd.f32 %v1284, %v1222
      %v1286 = vadd.f32 %v1285, %v1223
      %v1287 = vadd.f32 %v1286, %v1224
      %v1288 = vadd.f32 %v1287, %v1225
      %v1289 = vadd.f32 %v1288, %v1226
      %v1290 = vadd.f32 %v1289, %v1227
      %v1291 = vadd.f32 %v1290, %v1228
      %v1292 = vadd.f32 %v1291, %v1229
      %v1293 = vadd.f32 %v1292, %v1230
      %v1294 = vadd.f32 %v1293, %v1231
      %v1295 = vadd.f32 %v1294, %v1232
      %v1296 = vadd.f32 %v1295, %v1233
      %v1297 = vadd.f32 %v1296, %v1234
      %v1298 = vadd.f32 %v1297, %v1235
      %v1299 = vadd.f32 %v1298, %v1236
      %v1300 = vadd.f32 %v1299, %v1237
      %v1301 = vadd.f32 %v1300, %v1238
      %v1302 = vadd.f32 %v1301, %v1239
      %v1303 = vadd.f32 %v1302, %v1240
      %v1304 = vadd.f32 %v1303, %v1241
      %v1305 = vadd.f32 %v1304, %v1242
      %v1306 = vadd.f32 %v1305, %v1243
      %v1307 = vrot.slane %v1306, 4
      %v1308 = vadd.f32 %v1306, %v1307
      %v1309 = vrot.slane %v1308, 2
      %v1310 = vadd.f32 %v1308, %v1309
      %v1311 = vrot.slane %v1310, 1
      %v1312 = vadd.f32 %v1310, %v1311
      %1313 = vst [vmem:[%s211] sm:$0x1] %v1312
      %v1314 = vmul.f32 %v1212, %v1212
      %v1315 = vmul.f32 %v1213, %v1213
      %v1316 = vmul.f32 %v1214, %v1214
      %v1317 = vmul.f32 %v1215, %v1215
      %v1318 = vmul.f32 %v1216, %v1216
      %v1319 = vmul.f32 %v1217, %v1217
      %v1320 = vmul.f32 %v1218, %v1218
      %v1321 = vmul.f32 %v1219, %v1219
      %v1322 = vmul.f32 %v1220, %v1220
      %v1323 = vmul.f32 %v1221, %v1221
      %v1324 = vmul.f32 %v1222, %v1222
      %v1325 = vmul.f32 %v1223, %v1223
      %v1326 = vmul.f32 %v1224, %v1224
      %v1327 = vmul.f32 %v1225, %v1225
      %v1328 = vmul.f32 %v1226, %v1226
      %v1329 = vmul.f32 %v1227, %v1227
      %v1330 = vmul.f32 %v1228, %v1228
      %v1331 = vmul.f32 %v1229, %v1229
      %v1332 = vmul.f32 %v1230, %v1230
      %v1333 = vmul.f32 %v1231, %v1231
      %v1334 = vmul.f32 %v1232, %v1232
      %v1335 = vmul.f32 %v1233, %v1233
      %v1336 = vmul.f32 %v1234, %v1234
      %v1337 = vmul.f32 %v1235, %v1235
      %v1338 = vmul.f32 %v1236, %v1236
      %v1339 = vmul.f32 %v1237, %v1237
      %v1340 = vmul.f32 %v1238, %v1238
      %v1341 = vmul.f32 %v1239, %v1239
      %v1342 = vmul.f32 %v1240, %v1240
      %v1343 = vmul.f32 %v1241, %v1241
      %v1344 = vmul.f32 %v1242, %v1242
      %v1345 = vmul.f32 %v1243, %v1243
      %v1346 = vadd.f32 %v1314, %v1315
      %v1347 = vadd.f32 %v1346, %v1316
      %v1348 = vadd.f32 %v1347, %v1317
      %v1349 = vadd.f32 %v1348, %v1318
      %v1350 = vadd.f32 %v1349, %v1319
      %v1351 = vadd.f32 %v1350, %v1320
      %v1352 = vadd.f32 %v1351, %v1321
      %v1353 = vadd.f32 %v1352, %v1322
      %v1354 = vadd.f32 %v1353, %v1323
      %v1355 = vadd.f32 %v1354, %v1324
      %v1356 = vadd.f32 %v1355, %v1325
      %v1357 = vadd.f32 %v1356, %v1326
      %v1358 = vadd.f32 %v1357, %v1327
      %v1359 = vadd.f32 %v1358, %v1328
      %v1360 = vadd.f32 %v1359, %v1329
      %v1361 = vadd.f32 %v1360, %v1330
      %v1362 = vadd.f32 %v1361, %v1331
      %v1363 = vadd.f32 %v1362, %v1332
      %v1364 = vadd.f32 %v1363, %v1333
      %v1365 = vadd.f32 %v1364, %v1334
      %v1366 = vadd.f32 %v1365, %v1335
      %v1367 = vadd.f32 %v1366, %v1336
      %v1368 = vadd.f32 %v1367, %v1337
      %v1369 = vadd.f32 %v1368, %v1338
      %v1370 = vadd.f32 %v1369, %v1339
      %v1371 = vadd.f32 %v1370, %v1340
      %v1372 = vadd.f32 %v1371, %v1341
      %v1373 = vadd.f32 %v1372, %v1342
      %v1374 = vadd.f32 %v1373, %v1343
      %v1375 = vadd.f32 %v1374, %v1344
      %v1376 = vadd.f32 %v1375, %v1345
      %v1377 = vrot.slane %v1376, 4
      %v1378 = vadd.f32 %v1376, %v1377
      %v1379 = vrot.slane %v1378, 2
      %v1380 = vadd.f32 %v1378, %v1379
      %v1381 = vrot.slane %v1380, 1
      %v1382 = vadd.f32 %v1380, %v1381
      %1383 = vst [vmem:[%s214] sm:$0x1] %v1382
      %p1384 = scmp.lt.s32.totalorder %s16, 1
      %s1385 = scalar_select %p1384, %s16, 1
      %s1386 = smul.addr %s1385, 32
      %s1387 = smul.addr %s1386, 8
      %s1388 = scalar_lea.vmem %s2, %s1387
      %p1389 = scmp.lt.s32.totalorder %s16, 1
      %s1390 = scalar_select %p1389, %s16, 1
      %s1391 = scalar_lea.vmem %s3, %s1390
      %p1392 = scmp.lt.s32.totalorder %s16, 1
      %s1393 = scalar_select %p1392, %s16, 1
      %s1394 = scalar_lea.vmem %s4, %s1393
      // Predicated region
      $region29: #{depthwise_separable_conv.3} parent=27 // pred_check
        %p1395 = pneg %p81
      $region30: #{depthwise_separable_conv.3} parent=27 // pred_check_branch
        %1397 = sbr.rel (%p1395) target = $region32
      $region31: #{depthwise_separable_conv.3} parent=27 // pred_region
        _
      $region32: #{depthwise_separable_conv.3} parent=27 // pred_fallthru
        _
      // Predicated region
      $region33: #{depthwise_separable_conv.3} parent=27 // pred_check
        %p1398 = pneg %p107
      $region34: #{depthwise_separable_conv.3} parent=27 // pred_check_branch
        %1400 = sbr.rel (%p1398) target = $region36
      $region35: #{depthwise_separable_conv.3} parent=27 // pred_region
        _
      $region36: #{depthwise_separable_conv.3} parent=27 // pred_fallthru
        _
      // Predicated region
      $region37: #{depthwise_separable_conv.3} parent=27 // pred_check
        %p1401 = pneg %p133
      $region38: #{depthwise_separable_conv.3} parent=27 // pred_check_branch
        %1403 = sbr.rel (%p1401) target = $region40
      $region39: #{depthwise_separable_conv.3} parent=27 // pred_region
        _
      $region40: #{depthwise_separable_conv.3} parent=27 // pred_fallthru
        _
    $region28: #{depthwise_separable_conv.3} parent=5 // pred_fallthru
      _
    %p1404 = scmp.le.s32.totalorder 2, %s11
    // Predicated region
    $region41: #{depthwise_separable_conv.3} parent=5 // pred_check
      %p1405 = pneg %p1404
    $region42: #{depthwise_separable_conv.3} parent=5 // pred_check_branch
      %1407 = sbr.rel (%p1405) target = $region44
    $region43: #{depthwise_separable_conv.3} parent=5 // pred_region
      %s1408 = ssub.s32 %s11, 2
      // Predicated region
      $region45: #{depthwise_separable_conv.3} parent=43 // pred_check
        %p1409 = pneg %p87
      $region46: #{depthwise_separable_conv.3} parent=43 // pred_check_branch
        %1411 = sbr.rel (%p1409) target = $region48
      $region47: #{depthwise_separable_conv.3} parent=43 // pred_region
        %p1412 = scmp.lt.s32.totalorder %s17, 1
        %s1413 = scalar_select %p1412, %s17, 1
        %s1414 = smul.addr %s1413, 32
        %s1415 = smul.addr %s1414, 8
        %s1416 = scalar_lea.vmem %s2, %s1415
      $region48: #{depthwise_separable_conv.3} parent=43 // pred_fallthru
        _
      // Predicated region
      $region49: #{depthwise_separable_conv.3} parent=43 // pred_check
        %p1417 = pneg %p113
      $region50: #{depthwise_separable_conv.3} parent=43 // pred_check_branch
        %1419 = sbr.rel (%p1417) target = $region52
      $region51: #{depthwise_separable_conv.3} parent=43 // pred_region
        %p1420 = scmp.lt.s32.totalorder %s17, 1
        %s1421 = scalar_select %p1420, %s17, 1
        %s1422 = scalar_lea.vmem %s3, %s1421
      $region52: #{depthwise_separable_conv.3} parent=43 // pred_fallthru
        _
      // Predicated region
      $region53: #{depthwise_separable_conv.3} parent=43 // pred_check
        %p1423 = pneg %p139
      $region54: #{depthwise_separable_conv.3} parent=43 // pred_check_branch
        %1425 = sbr.rel (%p1423) target = $region56
      $region55: #{depthwise_separable_conv.3} parent=43 // pred_region
        %p1426 = scmp.lt.s32.totalorder %s17, 1
        %s1427 = scalar_select %p1426, %s17, 1
        %s1428 = scalar_lea.vmem %s4, %s1427
      $region56: #{depthwise_separable_conv.3} parent=43 // pred_fallthru
        _
    $region44: #{depthwise_separable_conv.3} parent=5 // pred_fallthru
      _
  $region6: #{depthwise_separable_conv.3} parent=0 // loop_footer
    %s15 = sadd.s32 1, %s11
  $region7: #{depthwise_separable_conv.3} parent=0 // loop_footer_branch
    %10 = sbr.rel target = $region3
  $region8: #{depthwise_separable_conv.3} parent=0 // loop_exit
    _

// kernel: depthwise_separable_conv.4
$region0: #{depthwise_separable_conv.4}
  #allocation0 [shape = 'u32[]', space=smem, size = 0x4, offset = 0x4, fixed_abs, tag = 'smem constant byte address 0x4 - core index']
  #allocation1 [shape = 'u32[144,128]{1,0:T(1,128)}', space=vmem, size = 0x12000, scoped, tag = 'internal scratch']
  #allocation2 [shape = 'f32[1,1]{1,0:T(1,128)S(1)}', space=vmem, size = 0x200, scoped, tag = 'scoped memory for depthwise_separable_conv.4']
  %s0 = inlined_call_operand.vmem [shape: f32[2,256,128], index: 0, kind: input, shape index: {}]
  %s1 = inlined_call_operand.vmem [shape: f32[1,128], index: 1, kind: input, shape index: {}]
  %s2 = inlined_call_operand.vmem [shape: f32[1,128], index: 2, kind: input, shape index: {}]
  %s3 = inlined_call_operand.vmem [shape: f32[1,128], index: 3, kind: input, shape index: {}]
  %s4 = inlined_call_operand.<no memory space> [shape: f32[1,1], index: 4, kind: input, shape index: {}]
  %s5 = inlined_call_operand.vmem [shape: f32[1,128], index: 5, kind: input, shape index: {}]
  %s6 = inlined_call_operand.vmem [shape: f32[1,128], index: 6, kind: input, shape index: {}]
  %s7 = inlined_call_operand.vmem [shape: bf16[128,128], index: 7, kind: input, shape index: {}]
  %s8 = inlined_call_operand.vmem [shape: f32[2,256,128], index: 8, kind: output, shape index: {0}]
  %s9 = inlined_call_operand.vmem [shape: f32[2,1,128], index: 9, kind: output, shape index: {1}]
  %s10 = inlined_call_operand.vmem [shape: f32[2,1,128], index: 10, kind: output, shape index: {2}]
  %11 = xla_tuple %s8, %s9, %s10
  %s12 = sld [smem:[#allocation0]]
  $region81: #{depthwise_separable_conv.4} parent=0
    _
  %s14 = ssub.s32 1, %s12
  %s15 = scalar_select 0, %s14, %s12
  %v16 = vstv %s4
  %17 = vst [vmem:[#allocation2] sm:$0x1] %v16
  loop: start=0, step=1, limit=4
  $region2: #{depthwise_separable_conv.4} parent=0 // loop_pre_header
    _
  $region3: #{depthwise_separable_conv.4} parent=0 // loop_header
    %s19 = sphi 0, %s23
    %p20 = scmp.ge.s32.totalorder %s19, 4
    %s29 = sphi 0, %s31
    %s32 = sphi 0, %s29
    %s33 = sphi 0, %s32
    %s49 = sphi 0, %s33
    %s53 = sphi 0, %s53
    %s55 = sphi 0, %s53
    %s56 = sphi 0, %s55
    %s70 = sphi 0, %s56
    %s74 = sphi 0, %s74
    %s76 = sphi 0, %s74
    %s77 = sphi 0, %s76
    %s91 = sphi 0, %s77
    %s95 = sphi 0, %s95
    %s97 = sphi 0, %s95
    %s98 = sphi 0, %s97
    %s112 = sphi 0, %s98
    %s116 = sphi 0, %s116
    %s118 = sphi 0, %s116
    %s119 = sphi 0, %s118
    %s133 = sphi 0, %s119
    %s137 = sphi 0, %s137
    %s139 = sphi 0, %s137
    %s140 = sphi 0, %s139
    %s154 = sphi 0, %s140
    %s158 = sphi 0, %s158
    %s160 = sphi 0, %s158
    %s161 = sphi 0, %s160
    %s175 = sphi 0, %s161
    %s179 = sphi 0, %s179
    %s181 = sphi 0, %s179
    %s182 = sphi 0, %s181
    %s196 = sphi 0, %s182
    %s202 = sphi 0, %s204
    %s205 = sphi 0, %s202
    %s206 = sphi 0, %s205
    %s222 = sphi 0, %s206
    %s228 = sphi 0, %s230
    %s231 = sphi 0, %s228
    %s232 = sphi 0, %s231
    %s248 = sphi 0, %s232
    %s254 = sphi 0, %s256
    %s257 = sphi 0, %s254
    %s258 = sphi 0, %s257
    %s274 = sphi 0, %s258
  $region4: #{depthwise_separable_conv.4} parent=0 // loop_header_branch
    %22 = sbr.rel (%p20) target = $region8
  $region5: #{depthwise_separable_conv.4} parent=0 // loop_body
    %s24 = ssub.s32 %s19, 1
    %s25 = ssub.s32 %s19, 2
    %s26 = sadd.s32 %s19, 1
    %s27 = ssub.s32 %s19, %s26
    %p28 = scmp.eq.s32.totalorder %s27, 0
    %s30 = sadd.s32 %s29, 1
    %s31 = scalar_select %p28, %s29, %s30
    %p34 = pneg %p28
    %p35 = scmp.eq.s32.totalorder %s19, 1
    %p36 = por %p34, %p35
    %p37 = scmp.ne.s32.totalorder %s29, %s32
    %p38 = scmp.eq.s32.totalorder %s19, 0
    %p39 = por %p37, %p38
    %p40 = scmp.ne.s32.totalorder %s29, %s32
    %p41 = scmp.eq.s32.totalorder %s24, 1
    %p42 = por %p40, %p41
    %p43 = scmp.ne.s32.totalorder %s32, %s33
    %p44 = scmp.eq.s32.totalorder %s24, 0
    %p45 = por %p43, %p44
    %p46 = scmp.ne.s32.totalorder %s32, %s33
    %p47 = scmp.eq.s32.totalorder %s25, 1
    %p48 = por %p46, %p47
    %p50 = scmp.ne.s32.totalorder %s33, %s49
    %p51 = scmp.eq.s32.totalorder %s25, 0
    %p52 = por %p50, %p51
    %s54 = sadd.s32 %s53, 1
    %p57 = scmp.eq.s32.totalorder %s19, 1
    %p58 = scmp.ne.s32.totalorder %s53, %s55
    %p59 = scmp.eq.s32.totalorder %s19, 0
    %p60 = por %p58, %p59
    %p61 = scmp.ne.s32.totalorder %s53, %s55
    %p62 = scmp.eq.s32.totalorder %s24, 1
    %p63 = por %p61, %p62
    %p64 = scmp.ne.s32.totalorder %s55, %s56
    %p65 = scmp.eq.s32.totalorder %s24, 0
    %p66 = por %p64, %p65
    %p67 = scmp.ne.s32.totalorder %s55, %s56
    %p68 = scmp.eq.s32.totalorder %s25, 1
    %p69 = por %p67, %p68
    %p71 = scmp.ne.s32.totalorder %s56, %s70
    %p72 = scmp.eq.s32.totalorder %s25, 0
    %p73 = por %p71, %p72
    %s75 = sadd.s32 %s74, 1
    %p78 = scmp.eq.s32.totalorder %s19, 1
    %p79 = scmp.ne.s32.totalorder %s74, %s76
    %p80 = scmp.eq.s32.totalorder %s19, 0
    %p81 = por %p79, %p80
    %p82 = scmp.ne.s32.totalorder %s74, %s76
    %p83 = scmp.eq.s32.totalorder %s24, 1
    %p84 = por %p82, %p83
    %p85 = scmp.ne.s32.totalorder %s76, %s77
    %p86 = scmp.eq.s32.totalorder %s24, 0
    %p87 = por %p85, %p86
    %p88 = scmp.ne.s32.totalorder %s76, %s77
    %p89 = scmp.eq.s32.totalorder %s25, 1
    %p90 = por %p88, %p89
    %p92 = scmp.ne.s32.totalorder %s77, %s91
    %p93 = scmp.eq.s32.totalorder %s25, 0
    %p94 = por %p92, %p93
    %s96 = sadd.s32 %s95, 1
    %p99 = scmp.eq.s32.totalorder %s19, 1
    %p100 = scmp.ne.s32.totalorder %s95, %s97
    %p101 = scmp.eq.s32.totalorder %s19, 0
    %p102 = por %p100, %p101
    %p103 = scmp.ne.s32.totalorder %s95, %s97
    %p104 = scmp.eq.s32.totalorder %s24, 1
    %p105 = por %p103, %p104
    %p106 = scmp.ne.s32.totalorder %s97, %s98
    %p107 = scmp.eq.s32.totalorder %s24, 0
    %p108 = por %p106, %p107
    %p109 = scmp.ne.s32.totalorder %s97, %s98
    %p110 = scmp.eq.s32.totalorder %s25, 1
    %p111 = por %p109, %p110
    %p113 = scmp.ne.s32.totalorder %s98, %s112
    %p114 = scmp.eq.s32.totalorder %s25, 0
    %p115 = por %p113, %p114
    %s117 = sadd.s32 %s116, 1
    %p120 = scmp.eq.s32.totalorder %s19, 1
    %p121 = scmp.ne.s32.totalorder %s116, %s118
    %p122 = scmp.eq.s32.totalorder %s19, 0
    %p123 = por %p121, %p122
    %p124 = scmp.ne.s32.totalorder %s116, %s118
    %p125 = scmp.eq.s32.totalorder %s24, 1
    %p126 = por %p124, %p125
    %p127 = scmp.ne.s32.totalorder %s118, %s119
    %p128 = scmp.eq.s32.totalorder %s24, 0
    %p129 = por %p127, %p128
    %p130 = scmp.ne.s32.totalorder %s118, %s119
    %p131 = scmp.eq.s32.totalorder %s25, 1
    %p132 = por %p130, %p131
    %p134 = scmp.ne.s32.totalorder %s119, %s133
    %p135 = scmp.eq.s32.totalorder %s25, 0
    %p136 = por %p134, %p135
    %s138 = sadd.s32 %s137, 1
    %p141 = scmp.eq.s32.totalorder %s19, 1
    %p142 = scmp.ne.s32.totalorder %s137, %s139
    %p143 = scmp.eq.s32.totalorder %s19, 0
    %p144 = por %p142, %p143
    %p145 = scmp.ne.s32.totalorder %s137, %s139
    %p146 = scmp.eq.s32.totalorder %s24, 1
    %p147 = por %p145, %p146
    %p148 = scmp.ne.s32.totalorder %s139, %s140
    %p149 = scmp.eq.s32.totalorder %s24, 0
    %p150 = por %p148, %p149
    %p151 = scmp.ne.s32.totalorder %s139, %s140
    %p152 = scmp.eq.s32.totalorder %s25, 1
    %p153 = por %p151, %p152
    %p155 = scmp.ne.s32.totalorder %s140, %s154
    %p156 = scmp.eq.s32.totalorder %s25, 0
    %p157 = por %p155, %p156
    %s159 = sadd.s32 %s158, 1
    %p162 = scmp.eq.s32.totalorder %s19, 1
    %p163 = scmp.ne.s32.totalorder %s158, %s160
    %p164 = scmp.eq.s32.totalorder %s19, 0
    %p165 = por %p163, %p164
    %p166 = scmp.ne.s32.totalorder %s158, %s160
    %p167 = scmp.eq.s32.totalorder %s24, 1
    %p168 = por %p166, %p167
    %p169 = scmp.ne.s32.totalorder %s160, %s161
    %p170 = scmp.eq.s32.totalorder %s24, 0
    %p171 = por %p169, %p170
    %p172 = scmp.ne.s32.totalorder %s160, %s161
    %p173 = scmp.eq.s32.totalorder %s25, 1
    %p174 = por %p172, %p173
    %p176 = scmp.ne.s32.totalorder %s161, %s175
    %p177 = scmp.eq.s32.totalorder %s25, 0
    %p178 = por %p176, %p177
    %s180 = sadd.s32 %s179, 1
    %p183 = scmp.eq.s32.totalorder %s19, 1
    %p184 = scmp.ne.s32.totalorder %s179, %s181
    %p185 = scmp.eq.s32.totalorder %s19, 0
    %p186 = por %p184, %p185
    %p187 = scmp.ne.s32.totalorder %s179, %s181
    %p188 = scmp.eq.s32.totalorder %s24, 1
    %p189 = por %p187, %p188
    %p190 = scmp.ne.s32.totalorder %s181, %s182
    %p191 = scmp.eq.s32.totalorder %s24, 0
    %p192 = por %p190, %p191
    %p193 = scmp.ne.s32.totalorder %s181, %s182
    %p194 = scmp.eq.s32.totalorder %s25, 1
    %p195 = por %p193, %p194
    %p197 = scmp.ne.s32.totalorder %s182, %s196
    %p198 = scmp.eq.s32.totalorder %s25, 0
    %p199 = por %p197, %p198
    %s200 = ssub.s32 %s19, %s26
    %p201 = scmp.eq.s32.totalorder %s200, 0
    %s203 = sadd.s32 %s202, 1
    %s204 = scalar_select %p201, %s202, %s203
    %p207 = pneg %p201
    %p208 = scmp.eq.s32.totalorder %s19, 1
    %p209 = por %p207, %p208
    %p210 = scmp.ne.s32.totalorder %s202, %s205
    %p211 = scmp.eq.s32.totalorder %s19, 0
    %p212 = por %p210, %p211
    %p213 = scmp.ne.s32.totalorder %s202, %s205
    %p214 = scmp.eq.s32.totalorder %s24, 1
    %p215 = por %p213, %p214
    %p216 = scmp.ne.s32.totalorder %s205, %s206
    %p217 = scmp.eq.s32.totalorder %s24, 0
    %p218 = por %p216, %p217
    %p219 = scmp.ne.s32.totalorder %s205, %s206
    %p220 = scmp.eq.s32.totalorder %s25, 1
    %p221 = por %p219, %p220
    %p223 = scmp.ne.s32.totalorder %s206, %s222
    %p224 = scmp.eq.s32.totalorder %s25, 0
    %p225 = por %p223, %p224
    %s226 = ssub.s32 %s19, %s26
    %p227 = scmp.eq.s32.totalorder %s226, 0
    %s229 = sadd.s32 %s228, 1
    %s230 = scalar_select %p227, %s228, %s229
    %p233 = pneg %p227
    %p234 = scmp.eq.s32.totalorder %s19, 1
    %p235 = por %p233, %p234
    %p236 = scmp.ne.s32.totalorder %s228, %s231
    %p237 = scmp.eq.s32.totalorder %s19, 0
    %p238 = por %p236, %p237
    %p239 = scmp.ne.s32.totalorder %s228, %s231
    %p240 = scmp.eq.s32.totalorder %s24, 1
    %p241 = por %p239, %p240
    %p242 = scmp.ne.s32.totalorder %s231, %s232
    %p243 = scmp.eq.s32.totalorder %s24, 0
    %p244 = por %p242, %p243
    %p245 = scmp.ne.s32.totalorder %s231, %s232
    %p246 = scmp.eq.s32.totalorder %s25, 1
    %p247 = por %p245, %p246
    %p249 = scmp.ne.s32.totalorder %s232, %s248
    %p250 = scmp.eq.s32.totalorder %s25, 0
    %p251 = por %p249, %p250
    %s252 = ssub.s32 %s19, %s26
    %p253 = scmp.eq.s32.totalorder %s252, 0
    %s255 = sadd.s32 %s254, 1
    %s256 = scalar_select %p253, %s254, %s255
    %p259 = pneg %p253
    %p260 = scmp.eq.s32.totalorder %s19, 1
    %p261 = por %p259, %p260
    %p262 = scmp.ne.s32.totalorder %s254, %s257
    %p263 = scmp.eq.s32.totalorder %s19, 0
    %p264 = por %p262, %p263
    %p265 = scmp.ne.s32.totalorder %s254, %s257
    %p266 = scmp.eq.s32.totalorder %s24, 1
    %p267 = por %p265, %p266
    %p268 = scmp.ne.s32.totalorder %s257, %s258
    %p269 = scmp.eq.s32.totalorder %s24, 0
    %p270 = por %p268, %p269
    %p271 = scmp.ne.s32.totalorder %s257, %s258
    %p272 = scmp.eq.s32.totalorder %s25, 1
    %p273 = por %p271, %p272
    %p275 = scmp.ne.s32.totalorder %s258, %s274
    %p276 = scmp.eq.s32.totalorder %s25, 0
    %p277 = por %p275, %p276
    %p278 = scmp.le.s32.totalorder 1, %s19
    %p279 = scmp.lt.s32.totalorder %s19, 3
    %p280 = pnand %p278, %p279
    %p281 = pneg %p280
    // Predicated region
    $region9: #{depthwise_separable_conv.4} parent=5 // pred_check
      _
    $region10: #{depthwise_separable_conv.4} parent=5 // pred_check_branch
      %283 = sbr.rel (%p280) target = $region12
    $region11: #{depthwise_separable_conv.4} parent=5 // pred_region
      %s284 = ssub.s32 %s19, 1
      // Predicated region
      $region13: #{depthwise_separable_conv.4} parent=11 // pred_check
        %p285 = pneg %p66
      $region14: #{depthwise_separable_conv.4} parent=11 // pred_check_branch
        %287 = sbr.rel (%p285) target = $region16
      $region15: #{depthwise_separable_conv.4} parent=11 // pred_region
        _
      $region16: #{depthwise_separable_conv.4} parent=11 // pred_fallthru
        _
      // Predicated region
      $region17: #{depthwise_separable_conv.4} parent=11 // pred_check
        %p288 = pneg %p87
      $region18: #{depthwise_separable_conv.4} parent=11 // pred_check_branch
        %290 = sbr.rel (%p288) target = $region20
      $region19: #{depthwise_separable_conv.4} parent=11 // pred_region
        _
      $region20: #{depthwise_separable_conv.4} parent=11 // pred_fallthru
        _
      // Predicated region
      $region21: #{depthwise_separable_conv.4} parent=11 // pred_check
        %p291 = pneg %p108
      $region22: #{depthwise_separable_conv.4} parent=11 // pred_check_branch
        %293 = sbr.rel (%p291) target = $region24
      $region23: #{depthwise_separable_conv.4} parent=11 // pred_region
        _
      $region24: #{depthwise_separable_conv.4} parent=11 // pred_fallthru
        _
      // Predicated region
      $region25: #{depthwise_separable_conv.4} parent=11 // pred_check
        %p294 = pneg %p129
      $region26: #{depthwise_separable_conv.4} parent=11 // pred_check_branch
        %296 = sbr.rel (%p294) target = $region28
      $region27: #{depthwise_separable_conv.4} parent=11 // pred_region
        _
      $region28: #{depthwise_separable_conv.4} parent=11 // pred_fallthru
        _
      // Predicated region
      $region29: #{depthwise_separable_conv.4} parent=11 // pred_check
        %p297 = pneg %p150
      $region30: #{depthwise_separable_conv.4} parent=11 // pred_check_branch
        %299 = sbr.rel (%p297) target = $region32
      $region31: #{depthwise_separable_conv.4} parent=11 // pred_region
        _
      $region32: #{depthwise_separable_conv.4} parent=11 // pred_fallthru
        _
      // Predicated region
      $region33: #{depthwise_separable_conv.4} parent=11 // pred_check
        %p300 = pneg %p171
      $region34: #{depthwise_separable_conv.4} parent=11 // pred_check_branch
        %302 = sbr.rel (%p300) target = $region36
      $region35: #{depthwise_separable_conv.4} parent=11 // pred_region
        _
      $region36: #{depthwise_separable_conv.4} parent=11 // pred_fallthru
        _
      // Predicated region
      $region37: #{depthwise_separable_conv.4} parent=11 // pred_check
        %p303 = pneg %p192
      $region38: #{depthwise_separable_conv.4} parent=11 // pred_check_branch
        %305 = sbr.rel (%p303) target = $region40
      $region39: #{depthwise_separable_conv.4} parent=11 // pred_region
        _
      $region40: #{depthwise_separable_conv.4} parent=11 // pred_fallthru
        _
    $region12: #{depthwise_separable_conv.4} parent=5 // pred_fallthru
      _
    %p306 = scmp.lt.s32.totalorder %s19, 2
    // Predicated region
    $region41: #{depthwise_separable_conv.4} parent=5 // pred_check
      %p307 = pneg %p306
    $region42: #{depthwise_separable_conv.4} parent=5 // pred_check_branch
      %309 = sbr.rel (%p307) target = $region44
    $region43: #{depthwise_separable_conv.4} parent=5 // pred_region
      // Predicated region
      $region45: #{depthwise_separable_conv.4} parent=43 // pred_check
        %p310 = pneg %p39
      $region46: #{depthwise_separable_conv.4} parent=43 // pred_check_branch
        %312 = sbr.rel (%p310) target = $region48
      $region47: #{depthwise_separable_conv.4} parent=43 // pred_region
        %p313 = scmp.lt.s32.totalorder %s19, 1
        %s314 = scalar_select %p313, %s19, 1
        %s315 = smul.addr %s314, 32
        %s316 = smul.addr %s315, 8
        %s317 = scalar_lea.vmem %s0, %s316
      $region48: #{depthwise_separable_conv.4} parent=43 // pred_fallthru
        _
    $region44: #{depthwise_separable_conv.4} parent=5 // pred_fallthru
      _
    %p318 = scmp.le.s32.totalorder 1, %s19
    %p319 = scmp.lt.s32.totalorder %s19, 3
    %p320 = pnand %p318, %p319
    %p321 = pneg %p320
    // Predicated region
    $region49: #{depthwise_separable_conv.4} parent=5 // pred_check
      _
    $region50: #{depthwise_separable_conv.4} parent=5 // pred_check_branch
      %323 = sbr.rel (%p320) target = $region52
    $region51: #{depthwise_separable_conv.4} parent=5 // pred_region
      %s324 = ssub.s32 %s19, 1
      %p325 = scmp.lt.s32.totalorder %s24, 1
      %s326 = scalar_select %p325, %s24, 1
      %s327 = smul.addr %s326, 32
      %s328 = smul.addr %s327, 8
      %s329 = scalar_lea.vmem %s0, %s328
      %p330 = pneg %p45
      %p331 = pneg %p42
      %p332 = pneg %p66
      %p333 = pneg %p63
      %p334 = pneg %p87
      %p335 = pneg %p84
      %p336 = pneg %p108
      %p337 = pneg %p105
      %p338 = pneg %p129
      %p339 = pneg %p126
      %p340 = pneg %p150
      %p341 = pneg %p147
      %p342 = pneg %p171
      %p343 = pneg %p168
      %p344 = pneg %p192
      %p345 = pneg %p189
      %p346 = pneg %p218
      %p347 = pneg %p215
      %p348 = scmp.lt.s32.totalorder %s24, 1
      %s349 = scalar_select %p348, %s24, 1
      %s350 = smul.addr %s349, 32
      %s351 = smul.addr %s350, 8
      %s352 = scalar_lea.vmem %s8, %s351
      %p353 = pneg %p244
      %p354 = pneg %p241
      %p355 = scmp.lt.s32.totalorder %s24, 1
      %s356 = scalar_select %p355, %s24, 1
      %s357 = scalar_lea.vmem %s9, %s356
      %p358 = pneg %p270
      %p359 = pneg %p267
      %p360 = scmp.lt.s32.totalorder %s24, 1
      %s361 = scalar_select %p360, %s24, 1
      %s362 = scalar_lea.vmem %s10, %s361
      %p363 = scmp.lt.s32.totalorder %s24, 1
      %s364 = scalar_select %p363, %s24, 1
      %s365 = smul.addr %s364, 32
      %s366 = smul.addr %s365, 8
      %s367 = scalar_lea.vmem %s0, %s366
      %p368 = scmp.lt.s32.totalorder %s24, 1
      %s369 = scalar_select %p368, %s24, 1
      %s370 = smul.addr %s369, 32
      %s371 = smul.addr %s370, 8
      %s372 = scalar_lea.vmem %s8, %s371
      %p373 = scmp.lt.s32.totalorder %s24, 1
      %s374 = scalar_select %p373, %s24, 1
      %s375 = scalar_lea.vmem %s9, %s374
      %p376 = scmp.lt.s32.totalorder %s24, 1
      %s377 = scalar_select %p376, %s24, 1
      %s378 = scalar_lea.vmem %s10, %s377
      %v380 = vld [vmem:[%s367] sm:$0xff]
      %v381 = vld [vmem:[%s367 + $0x8] sm:$0xff]
      %v382 = vld [vmem:[%s367 + $0x10] sm:$0xff]
      %v383 = vld [vmem:[%s367 + $0x18] sm:$0xff]
      %v384 = vld [vmem:[%s367 + $0x20] sm:$0xff]
      %v385 = vld [vmem:[%s367 + $0x28] sm:$0xff]
      %v386 = vld [vmem:[%s367 + $0x30] sm:$0xff]
      %v387 = vld [vmem:[%s367 + $0x38] sm:$0xff]
      %v388 = vld [vmem:[%s367 + $0x40] sm:$0xff]
      %v389 = vld [vmem:[%s367 + $0x48] sm:$0xff]
      %v390 = vld [vmem:[%s367 + $0x50] sm:$0xff]
      %v391 = vld [vmem:[%s367 + $0x58] sm:$0xff]
      %v392 = vld [vmem:[%s367 + $0x60] sm:$0xff]
      %v393 = vld [vmem:[%s367 + $0x68] sm:$0xff]
      %v394 = vld [vmem:[%s367 + $0x70] sm:$0xff]
      %v395 = vld [vmem:[%s367 + $0x78] sm:$0xff]
      %v396 = vld [vmem:[%s367 + $0x80] sm:$0xff]
      %v397 = vld [vmem:[%s367 + $0x88] sm:$0xff]
      %v398 = vld [vmem:[%s367 + $0x90] sm:$0xff]
      %v399 = vld [vmem:[%s367 + $0x98] sm:$0xff]
      %v400 = vld [vmem:[%s367 + $0xa0] sm:$0xff]
      %v401 = vld [vmem:[%s367 + $0xa8] sm:$0xff]
      %v402 = vld [vmem:[%s367 + $0xb0] sm:$0xff]
      %v403 = vld [vmem:[%s367 + $0xb8] sm:$0xff]
      %v404 = vld [vmem:[%s367 + $0xc0] sm:$0xff]
      %v405 = vld [vmem:[%s367 + $0xc8] sm:$0xff]
      %v406 = vld [vmem:[%s367 + $0xd0] sm:$0xff]
      %v407 = vld [vmem:[%s367 + $0xd8] sm:$0xff]
      %v408 = vld [vmem:[%s367 + $0xe0] sm:$0xff]
      %v409 = vld [vmem:[%s367 + $0xe8] sm:$0xff]
      %v410 = vld [vmem:[%s367 + $0xf0] sm:$0xff]
      %v411 = vld [vmem:[%s367 + $0xf8] sm:$0xff]
      %v412 = vld [vmem:[%s1] sm:$0x1]
      %v414 = vlaneseq
      %v415 = vshrl.u32 %v414, 7
      %v416 = vsub.s32 0, %v415
      %v417 = vrot.slane %v412, %v416
      %v419 = vmul.f32 %v380, %v417
      %v420 = vmul.f32 %v381, %v417
      %v421 = vmul.f32 %v382, %v417
      %v422 = vmul.f32 %v383, %v417
      %v423 = vmul.f32 %v384, %v417
      %v424 = vmul.f32 %v385, %v417
      %v425 = vmul.f32 %v386, %v417
      %v426 = vmul.f32 %v387, %v417
      %v427 = vmul.f32 %v388, %v417
      %v428 = vmul.f32 %v389, %v417
      %v429 = vmul.f32 %v390, %v417
      %v430 = vmul.f32 %v391, %v417
      %v431 = vmul.f32 %v392, %v417
      %v432 = vmul.f32 %v393, %v417
      %v433 = vmul.f32 %v394, %v417
      %v434 = vmul.f32 %v395, %v417
      %v435 = vmul.f32 %v396, %v417
      %v436 = vmul.f32 %v397, %v417
      %v437 = vmul.f32 %v398, %v417
      %v438 = vmul.f32 %v399, %v417
      %v439 = vmul.f32 %v400, %v417
      %v440 = vmul.f32 %v401, %v417
      %v441 = vmul.f32 %v402, %v417
      %v442 = vmul.f32 %v403, %v417
      %v443 = vmul.f32 %v404, %v417
      %v444 = vmul.f32 %v405, %v417
      %v445 = vmul.f32 %v406, %v417
      %v446 = vmul.f32 %v407, %v417
      %v447 = vmul.f32 %v408, %v417
      %v448 = vmul.f32 %v409, %v417
      %v449 = vmul.f32 %v410, %v417
      %v450 = vmul.f32 %v411, %v417
      %v451 = vld [vmem:[%s2] sm:$0x1]
      %v453 = vlaneseq
      %v454 = vshrl.u32 %v453, 7
      %v455 = vsub.s32 0, %v454
      %v456 = vrot.slane %v451, %v455
      %v458 = vadd.f32 %v419, %v456
      %v459 = vadd.f32 %v420, %v456
      %v460 = vadd.f32 %v421, %v456
      %v461 = vadd.f32 %v422, %v456
      %v462 = vadd.f32 %v423, %v456
      %v463 = vadd.f32 %v424, %v456
      %v464 = vadd.f32 %v425, %v456
      %v465 = vadd.f32 %v426, %v456
      %v466 = vadd.f32 %v427, %v456
      %v467 = vadd.f32 %v428, %v456
      %v468 = vadd.f32 %v429, %v456
      %v469 = vadd.f32 %v430, %v456
      %v470 = vadd.f32 %v431, %v456
      %v471 = vadd.f32 %v432, %v456
      %v472 = vadd.f32 %v433, %v456
      %v473 = vadd.f32 %v434, %v456
      %v474 = vadd.f32 %v435, %v456
      %v475 = vadd.f32 %v436, %v456
      %v476 = vadd.f32 %v437, %v456
      %v477 = vadd.f32 %v438, %v456
      %v478 = vadd.f32 %v439, %v456
      %v479 = vadd.f32 %v440, %v456
      %v480 = vadd.f32 %v441, %v456
      %v481 = vadd.f32 %v442, %v456
      %v482 = vadd.f32 %v443, %v456
      %v483 = vadd.f32 %v444, %v456
      %v484 = vadd.f32 %v445, %v456
      %v485 = vadd.f32 %v446, %v456
      %v486 = vadd.f32 %v447, %v456
      %v487 = vadd.f32 %v448, %v456
      %v488 = vadd.f32 %v449, %v456
      %v489 = vadd.f32 %v450, %v456
      %v490 = vxor.u32 %v458, 2147483648
      %v491 = vxor.u32 %v459, 2147483648
      %v492 = vxor.u32 %v460, 2147483648
      %v493 = vxor.u32 %v461, 2147483648
      %v494 = vxor.u32 %v462, 2147483648
      %v495 = vxor.u32 %v463, 2147483648
      %v496 = vxor.u32 %v464, 2147483648
      %v497 = vxor.u32 %v465, 2147483648
      %v498 = vxor.u32 %v466, 2147483648
      %v499 = vxor.u32 %v467, 2147483648
      %v500 = vxor.u32 %v468, 2147483648
      %v501 = vxor.u32 %v469, 2147483648
      %v502 = vxor.u32 %v470, 2147483648
      %v503 = vxor.u32 %v471, 2147483648
      %v504 = vxor.u32 %v472, 2147483648
      %v505 = vxor.u32 %v473, 2147483648
      %v506 = vxor.u32 %v474, 2147483648
      %v507 = vxor.u32 %v475, 2147483648
      %v508 = vxor.u32 %v476, 2147483648
      %v509 = vxor.u32 %v477, 2147483648
      %v510 = vxor.u32 %v478, 2147483648
      %v511 = vxor.u32 %v479, 2147483648
      %v512 = vxor.u32 %v480, 2147483648
      %v513 = vxor.u32 %v481, 2147483648
      %v514 = vxor.u32 %v482, 2147483648
      %v515 = vxor.u32 %v483, 2147483648
      %v516 = vxor.u32 %v484, 2147483648
      %v517 = vxor.u32 %v485, 2147483648
      %v518 = vxor.u32 %v486, 2147483648
      %v519 = vxor.u32 %v487, 2147483648
      %v520 = vxor.u32 %v488, 2147483648
      %v521 = vxor.u32 %v489, 2147483648
      %v522 = vmul.f32 %v490, 1.442695
      %v523 = vpow.pop %v522
      %v524 = vmul.f32 %v491, 1.442695
      %v525 = vpow.pop %v524
      %v526 = vmul.f32 %v492, 1.442695
      %v527 = vpow.pop %v526
      %v528 = vmul.f32 %v493, 1.442695
      %v529 = vpow.pop %v528
      %v530 = vmul.f32 %v494, 1.442695
      %v531 = vpow.pop %v530
      %v532 = vmul.f32 %v495, 1.442695
      %v533 = vpow.pop %v532
      %v534 = vmul.f32 %v496, 1.442695
      %v535 = vpow.pop %v534
      %v536 = vmul.f32 %v497, 1.442695
      %v537 = vpow.pop %v536
      %v538 = vmul.f32 %v498, 1.442695
      %v539 = vpow.pop %v538
      %v540 = vmul.f32 %v499, 1.442695
      %v541 = vpow.pop %v540
      %v542 = vmul.f32 %v500, 1.442695
      %v543 = vpow.pop %v542
      %v544 = vmul.f32 %v501, 1.442695
      %v545 = vpow.pop %v544
      %v546 = vmul.f32 %v502, 1.442695
      %v547 = vpow.pop %v546
      %v548 = vmul.f32 %v503, 1.442695
      %v549 = vpow.pop %v548
      %v550 = vmul.f32 %v504, 1.442695
      %v551 = vpow.pop %v550
      %v552 = vmul.f32 %v505, 1.442695
      %v553 = vpow.pop %v552
      %v554 = vmul.f32 %v506, 1.442695
      %v555 = vpow.pop %v554
      %v556 = vmul.f32 %v507, 1.442695
      %v557 = vpow.pop %v556
      %v558 = vmul.f32 %v508, 1.442695
      %v559 = vpow.pop %v558
      %v560 = vmul.f32 %v509, 1.442695
      %v561 = vpow.pop %v560
      %v562 = vmul.f32 %v510, 1.442695
      %v563 = vpow.pop %v562
      %v564 = vmul.f32 %v511, 1.442695
      %v565 = vpow.pop %v564
      %v566 = vmul.f32 %v512, 1.442695
      %v567 = vpow.pop %v566
      %v568 = vmul.f32 %v513, 1.442695
      %v569 = vpow.pop %v568
      %v570 = vmul.f32 %v514, 1.442695
      %v571 = vpow.pop %v570
      %v572 = vmul.f32 %v515, 1.442695
      %v573 = vpow.pop %v572
      %v574 = vmul.f32 %v516, 1.442695
      %v575 = vpow.pop %v574
      %v576 = vmul.f32 %v517, 1.442695
      %v577 = vpow.pop %v576
      %v578 = vmul.f32 %v518, 1.442695
      %v579 = vpow.pop %v578
      %v580 = vmul.f32 %v519, 1.442695
      %v581 = vpow.pop %v580
      %v582 = vmul.f32 %v520, 1.442695
      %v583 = vpow.pop %v582
      %v584 = vmul.f32 %v521, 1.442695
      %v585 = vpow.pop %v584
      %v586 = vadd.f32 %v523, 1.0
      %v587 = vadd.f32 %v525, 1.0
      %v588 = vadd.f32 %v527, 1.0
      %v589 = vadd.f32 %v529, 1.0
      %v590 = vadd.f32 %v531, 1.0
      %v591 = vadd.f32 %v533, 1.0
      %v592 = vadd.f32 %v535, 1.0
      %v593 = vadd.f32 %v537, 1.0
      %v594 = vadd.f32 %v539, 1.0
      %v595 = vadd.f32 %v541, 1.0
      %v596 = vadd.f32 %v543, 1.0
      %v597 = vadd.f32 %v545, 1.0
      %v598 = vadd.f32 %v547, 1.0
      %v599 = vadd.f32 %v549, 1.0
      %v600 = vadd.f32 %v551, 1.0
      %v601 = vadd.f32 %v553, 1.0
      %v602 = vadd.f32 %v555, 1.0
      %v603 = vadd.f32 %v557, 1.0
      %v604 = vadd.f32 %v559, 1.0
      %v605 = vadd.f32 %v561, 1.0
      %v606 = vadd.f32 %v563, 1.0
      %v607 = vadd.f32 %v565, 1.0
      %v608 = vadd.f32 %v567, 1.0
      %v609 = vadd.f32 %v569, 1.0
      %v610 = vadd.f32 %v571, 1.0
      %v611 = vadd.f32 %v573, 1.0
      %v612 = vadd.f32 %v575, 1.0
      %v613 = vadd.f32 %v577, 1.0
      %v614 = vadd.f32 %v579, 1.0
      %v615 = vadd.f32 %v581, 1.0
      %v616 = vadd.f32 %v583, 1.0
      %v617 = vadd.f32 %v585, 1.0
      %v618 = vrcp.pop %v586
      %v619 = vmul.f32 1.0, %v618
      %v620 = vrcp.pop %v587
      %v621 = vmul.f32 1.0, %v620
      %v622 = vrcp.pop %v588
      %v623 = vmul.f32 1.0, %v622
      %v624 = vrcp.pop %v589
      %v625 = vmul.f32 1.0, %v624
      %v626 = vrcp.pop %v590
      %v627 = vmul.f32 1.0, %v626
      %v628 = vrcp.pop %v591
      %v629 = vmul.f32 1.0, %v628
      %v630 = vrcp.pop %v592
      %v631 = vmul.f32 1.0, %v630
      %v632 = vrcp.pop %v593
      %v633 = vmul.f32 1.0, %v632
      %v634 = vrcp.pop %v594
      %v635 = vmul.f32 1.0, %v634
      %v636 = vrcp.pop %v595
      %v637 = vmul.f32 1.0, %v636
      %v638 = vrcp.pop %v596
      %v639 = vmul.f32 1.0, %v638
      %v640 = vrcp.pop %v597
      %v641 = vmul.f32 1.0, %v640
      %v642 = vrcp.pop %v598
      %v643 = vmul.f32 1.0, %v642
      %v644 = vrcp.pop %v599
      %v645 = vmul.f32 1.0, %v644
      %v646 = vrcp.pop %v600
      %v647 = vmul.f32 1.0, %v646
      %v648 = vrcp.pop %v601
      %v649 = vmul.f32 1.0, %v648
      %v650 = vrcp.pop %v602
      %v651 = vmul.f32 1.0, %v650
      %v652 = vrcp.pop %v603
      %v653 = vmul.f32 1.0, %v652
      %v654 = vrcp.pop %v604
      %v655 = vmul.f32 1.0, %v654
      %v656 = vrcp.pop %v605
      %v657 = vmul.f32 1.0, %v656
      %v658 = vrcp.pop %v606
      %v659 = vmul.f32 1.0, %v658
      %v660 = vrcp.pop %v607
      %v661 = vmul.f32 1.0, %v660
      %v662 = vrcp.pop %v608
      %v663 = vmul.f32 1.0, %v662
      %v664 = vrcp.pop %v609
      %v665 = vmul.f32 1.0, %v664
      %v666 = vrcp.pop %v610
      %v667 = vmul.f32 1.0, %v666
      %v668 = vrcp.pop %v611
      %v669 = vmul.f32 1.0, %v668
      %v670 = vrcp.pop %v612
      %v671 = vmul.f32 1.0, %v670
      %v672 = vrcp.pop %v613
      %v673 = vmul.f32 1.0, %v672
      %v674 = vrcp.pop %v614
      %v675 = vmul.f32 1.0, %v674
      %v676 = vrcp.pop %v615
      %v677 = vmul.f32 1.0, %v676
      %v678 = vrcp.pop %v616
      %v679 = vmul.f32 1.0, %v678
      %v680 = vrcp.pop %v617
      %v681 = vmul.f32 1.0, %v680
      %v682 = vmul.f32 %v458, %v619
      %v683 = vmul.f32 %v459, %v621
      %v684 = vmul.f32 %v460, %v623
      %v685 = vmul.f32 %v461, %v625
      %v686 = vmul.f32 %v462, %v627
      %v687 = vmul.f32 %v463, %v629
      %v688 = vmul.f32 %v464, %v631
      %v689 = vmul.f32 %v465, %v633
      %v690 = vmul.f32 %v466, %v635
      %v691 = vmul.f32 %v467, %v637
      %v692 = vmul.f32 %v468, %v639
      %v693 = vmul.f32 %v469, %v641
      %v694 = vmul.f32 %v470, %v643
      %v695 = vmul.f32 %v471, %v645
      %v696 = vmul.f32 %v472, %v647
      %v697 = vmul.f32 %v473, %v649
      %v698 = vmul.f32 %v474, %v651
      %v699 = vmul.f32 %v475, %v653
      %v700 = vmul.f32 %v476, %v655
      %v701 = vmul.f32 %v477, %v657
      %v702 = vmul.f32 %v478, %v659
      %v703 = vmul.f32 %v479, %v661
      %v704 = vmul.f32 %v480, %v663
      %v705 = vmul.f32 %v481, %v665
      %v706 = vmul.f32 %v482, %v667
      %v707 = vmul.f32 %v483, %v669
      %v708 = vmul.f32 %v484, %v671
      %v709 = vmul.f32 %v485, %v673
      %v710 = vmul.f32 %v486, %v675
      %v711 = vmul.f32 %v487, %v677
      %v712 = vmul.f32 %v488, %v679
      %v713 = vmul.f32 %v489, %v681
      %v714 = vadd.f32 %v682, %v683
      %v715 = vadd.f32 %v714, %v684
      %v716 = vadd.f32 %v715, %v685
      %v717 = vadd.f32 %v716, %v686
      %v718 = vadd.f32 %v717, %v687
      %v719 = vadd.f32 %v718, %v688
      %v720 = vadd.f32 %v719, %v689
      %v721 = vadd.f32 %v720, %v690
      %v722 = vadd.f32 %v721, %v691
      %v723 = vadd.f32 %v722, %v692
      %v724 = vadd.f32 %v723, %v693
      %v725 = vadd.f32 %v724, %v694
      %v726 = vadd.f32 %v725, %v695
      %v727 = vadd.f32 %v726, %v696
      %v728 = vadd.f32 %v727, %v697
      %v729 = vadd.f32 %v728, %v698
      %v730 = vadd.f32 %v729, %v699
      %v731 = vadd.f32 %v730, %v700
      %v732 = vadd.f32 %v731, %v701
      %v733 = vadd.f32 %v732, %v702
      %v734 = vadd.f32 %v733, %v703
      %v735 = vadd.f32 %v734, %v704
      %v736 = vadd.f32 %v735, %v705
      %v737 = vadd.f32 %v736, %v706
      %v738 = vadd.f32 %v737, %v707
      %v739 = vadd.f32 %v738, %v708
      %v740 = vadd.f32 %v739, %v709
      %v741 = vadd.f32 %v740, %v710
      %v742 = vadd.f32 %v741, %v711
      %v743 = vadd.f32 %v742, %v712
      %v744 = vadd.f32 %v743, %v713
      %v745 = vrot.slane %v744, 4
      %v746 = vadd.f32 %v744, %v745
      %v747 = vrot.slane %v746, 2
      %v748 = vadd.f32 %v746, %v747
      %v749 = vrot.slane %v748, 1
      %v750 = vadd.f32 %v748, %v749
      %v751 = vrcp.pop 256.0
      %v752 = vmul.f32 %v750, %v751
      %v753 = vld [vmem:[%s3] sm:$0x1]
      %v754 = vmul.f32 %v752, %v753
      %vm755 = vcmask 1040384
      %v756 = vsel %vm755, %v754, 0.0
      %757 = vadd.xlane.f32.xlu0 %v756
      %v758 = vpop.xlane.xlu0 %757
      %v759 = vld [vmem:[#allocation2] sm:$0x1]
      %v760 = vadd.f32 %v758, %v759
      %v761 = vxor.u32 %v760, 2147483648
      %v762 = vmul.f32 %v761, 1.442695
      %v763 = vpow.pop %v762
      %v764 = vadd.f32 %v763, 1.0
      %v765 = vrcp.pop %v764
      %v766 = vmul.f32 1.0, %v765
      %v767 = vmul.f32 %v760, %v766
      %v768 = vld [vmem:[%s5] sm:$0x1]
      %770 = vset.pattern.permute.xlu0 0
      %771 = vperm.xlu0 %770, %v767
      %v772 = vpop.permute.xlu0 %771
      %v774 = vmul.f32 %v772, %v768
      %v775 = vadd.f32 %v774, 0.0
      %v776 = vld [vmem:[%s6] sm:$0x1]
      %v777 = vadd.f32 %v775, %v776
      %v778 = vxor.u32 %v777, 2147483648
      %v779 = vmul.f32 %v778, 1.442695
      %v780 = vpow.pop %v779
      %v781 = vadd.f32 %v780, 1.0
      %v782 = vrcp.pop %v781
      %v783 = vmul.f32 1.0, %v782
      %v784 = vlaneseq
      %v785 = vshrl.u32 %v784, 7
      %v786 = vsub.s32 0, %v785
      %v787 = vrot.slane %v783, %v786
      %v788 = vmul.f32 %v682, %v787
      %v789 = vmul.f32 %v683, %v787
      %v790 = vmul.f32 %v684, %v787
      %v791 = vmul.f32 %v685, %v787
      %v792 = vmul.f32 %v686, %v787
      %v793 = vmul.f32 %v687, %v787
      %v794 = vmul.f32 %v688, %v787
      %v795 = vmul.f32 %v689, %v787
      %v796 = vmul.f32 %v690, %v787
      %v797 = vmul.f32 %v691, %v787
      %v798 = vmul.f32 %v692, %v787
      %v799 = vmul.f32 %v693, %v787
      %v800 = vmul.f32 %v694, %v787
      %v801 = vmul.f32 %v695, %v787
      %v802 = vmul.f32 %v696, %v787
      %v803 = vmul.f32 %v697, %v787
      %v804 = vmul.f32 %v698, %v787
      %v805 = vmul.f32 %v699, %v787
      %v806 = vmul.f32 %v700, %v787
      %v807 = vmul.f32 %v701, %v787
      %v808 = vmul.f32 %v702, %v787
      %v809 = vmul.f32 %v703, %v787
      %v810 = vmul.f32 %v704, %v787
      %v811 = vmul.f32 %v705, %v787
      %v812 = vmul.f32 %v706, %v787
      %v813 = vmul.f32 %v707, %v787
      %v814 = vmul.f32 %v708, %v787
      %v815 = vmul.f32 %v709, %v787
      %v816 = vmul.f32 %v710, %v787
      %v817 = vmul.f32 %v711, %v787
      %v818 = vmul.f32 %v712, %v787
      %v819 = vmul.f32 %v713, %v787
      %v820 = vpack.c.bf16 %v789, %v788
      %v821 = vpack.c.bf16 %v791, %v790
      %v822 = vpack.c.bf16 %v793, %v792
      %v823 = vpack.c.bf16 %v795, %v794
      %v824 = vpack.c.bf16 %v797, %v796
      %v825 = vpack.c.bf16 %v799, %v798
      %v826 = vpack.c.bf16 %v801, %v800
      %v827 = vpack.c.bf16 %v803, %v802
      %v828 = vpack.c.bf16 %v805, %v804
      %v829 = vpack.c.bf16 %v807, %v806
      %v830 = vpack.c.bf16 %v809, %v808
      %v831 = vpack.c.bf16 %v811, %v810
      %v832 = vpack.c.bf16 %v813, %v812
      %v833 = vpack.c.bf16 %v815, %v814
      %v834 = vpack.c.bf16 %v817, %v816
      %v835 = vpack.c.bf16 %v819, %v818
      %v836 = vld [vmem:[%s7] sm:$0xf]
      %v837 = vld [vmem:[%s7 + $0x4] sm:$0xf]
      %v838 = vld [vmem:[%s7 + $0x8] sm:$0xf]
      %v839 = vld [vmem:[%s7 + $0xc] sm:$0xf]
      %v840 = vld [vmem:[%s7 + $0x10] sm:$0xf]
      %v841 = vld [vmem:[%s7 + $0x14] sm:$0xf]
      %v842 = vld [vmem:[%s7 + $0x18] sm:$0xf]
      %v843 = vld [vmem:[%s7 + $0x1c] sm:$0xf]
      %v844 = vld [vmem:[%s7 + $0x20] sm:$0xf]
      %v845 = vld [vmem:[%s7 + $0x24] sm:$0xf]
      %v846 = vld [vmem:[%s7 + $0x28] sm:$0xf]
      %v847 = vld [vmem:[%s7 + $0x2c] sm:$0xf]
      %v848 = vld [vmem:[%s7 + $0x30] sm:$0xf]
      %v849 = vld [vmem:[%s7 + $0x34] sm:$0xf]
      %v850 = vld [vmem:[%s7 + $0x38] sm:$0xf]
      %v851 = vld [vmem:[%s7 + $0x3c] sm:$0xf]
      %v868 = vunpack.c.l.b16 %v836
      %v869 = vunpack.c.l.b16 %v837
      %v870 = vunpack.c.l.b16 %v838
      %v871 = vunpack.c.l.b16 %v839
      %v872 = vunpack.c.l.b16 %v840
      %v873 = vunpack.c.l.b16 %v841
      %v874 = vunpack.c.l.b16 %v842
      %v875 = vunpack.c.l.b16 %v843
      %v876 = vunpack.c.l.b16 %v844
      %v877 = vunpack.c.l.b16 %v845
      %v878 = vunpack.c.l.b16 %v846
      %v879 = vunpack.c.l.b16 %v847
      %v880 = vunpack.c.l.b16 %v848
      %v881 = vunpack.c.l.b16 %v849
      %v882 = vunpack.c.l.b16 %v850
      %v883 = vunpack.c.l.b16 %v851
      %v884 = vpack.c.b16 %v869, %v868
      %v885 = vpack.c.b16 %v871, %v870
      %v886 = vpack.c.b16 %v873, %v872
      %v887 = vpack.c.b16 %v875, %v874
      %v888 = vpack.c.b16 %v877, %v876
      %v889 = vpack.c.b16 %v879, %v878
      %v890 = vpack.c.b16 %v881, %v880
      %v891 = vpack.c.b16 %v883, %v882
      %900 = vmatprep.subr.bf16.mxu0 0
      %901 = vmatpush1.bf16.msra.mxu0 %v884
      %902 = vmatprep.subr.bf16.mxu0 0
      %903 = vmatpush1.bf16.msra.mxu0 %v885
      %904 = vmatprep.subr.bf16.mxu0 0
      %905 = vmatpush1.bf16.msra.mxu0 %v886
      %906 = vmatprep.subr.bf16.mxu0 0
      %907 = vmatpush1.bf16.msra.mxu0 %v887
      %908 = vmatprep.subr.bf16.mxu0 0
      %909 = vmatpush1.bf16.msra.mxu0 %v888
      %910 = vmatprep.subr.bf16.mxu0 0
      %911 = vmatpush1.bf16.msra.mxu0 %v889
      %912 = vmatprep.subr.bf16.mxu0 0
      %913 = vmatpush1.bf16.msra.mxu0 %v890
      %914 = vmatprep.subr.bf16.mxu0 0
      %915 = vmatpush1.bf16.msra.mxu0 %v891
      %916 = vmatprep.subr.bf16.mxu0 0
      %917 = vmatpush1.bf16.msra.mxu0 0
      %918 = vmatprep.subr.bf16.mxu0 0
      %919 = vmatpush1.bf16.msra.mxu0 0
      %920 = vmatprep.subr.bf16.mxu0 0
      %921 = vmatpush1.bf16.msra.mxu0 0
      %922 = vmatprep.subr.bf16.mxu0 0
      %923 = vmatpush1.bf16.msra.mxu0 0
      %924 = vmatprep.subr.bf16.mxu0 0
      %925 = vmatpush1.bf16.msra.mxu0 0
      %926 = vmatprep.subr.bf16.mxu0 0
      %927 = vmatpush1.bf16.msra.mxu0 0
      %928 = vmatprep.subr.bf16.mxu0 0
      %929 = vmatpush1.bf16.msra.mxu0 0
      %930 = vmatprep.subr.bf16.mxu0 0
      %931 = vmatpush1.bf16.msra.mxu0 0
      %932 = vmatprep.mubr.bf16.mxu0 0
      %933 = vmatmul.mubr.bf16.gmra.mrb[0].mxu0 %v820
      %v934 = vpop.f32.mrb[0].mxu0
      %v935 = vadd.f32 0.0, %v934
      %v936 = vpop.f32.mrb[0].mxu0
      %v937 = vpop.f32.mrb[0].mxu0
      %v938 = vadd.f32 0.0, %v937
      %v939 = vpop.f32.mrb[0].mxu0
      %940 = vmatprep.mubr.bf16.mxu0 0
      %941 = vmatmul.mubr.bf16.gmra.mrb[0].mxu0 %v821
      %v942 = vpop.f32.mrb[0].mxu0
      %v943 = vadd.f32 0.0, %v942
      %v944 = vpop.f32.mrb[0].mxu0
      %v945 = vpop.f32.mrb[0].mxu0
      %v946 = vadd.f32 0.0, %v945
      %v947 = vpop.f32.mrb[0].mxu0
      %948 = vmatprep.mubr.bf16.mxu0 0
      %949 = vmatmul.mubr.bf16.gmra.mrb[0].mxu0 %v822
      %v950 = vpop.f32.mrb[0].mxu0
      %v951 = vadd.f32 0.0, %v950
      %v952 = vpop.f32.mrb[0].mxu0
      %v953 = vpop.f32.mrb[0].mxu0
      %v954 = vadd.f32 0.0, %v953
      %v955 = vpop.f32.mrb[0].mxu0
      %956 = vmatprep.mubr.bf16.mxu0 0
      %957 = vmatmul.mubr.bf16.gmra.mrb[0].mxu0 %v823
      %v958 = vpop.f32.mrb[0].mxu0
      %v959 = vadd.f32 0.0, %v958
      %v960 = vpop.f32.mrb[0].mxu0
      %v961 = vpop.f32.mrb[0].mxu0
      %v962 = vadd.f32 0.0, %v961
      %v963 = vpop.f32.mrb[0].mxu0
      %964 = vmatprep.mubr.bf16.mxu0 0
      %965 = vmatmul.mubr.bf16.gmra.mrb[0].mxu0 %v824
      %v966 = vpop.f32.mrb[0].mxu0
      %v967 = vadd.f32 0.0, %v966
      %v968 = vpop.f32.mrb[0].mxu0
      %v969 = vpop.f32.mrb[0].mxu0
      %v970 = vadd.f32 0.0, %v969
      %v971 = vpop.f32.mrb[0].mxu0
      %972 = vmatprep.mubr.bf16.mxu0 0
      %973 = vmatmul.mubr.bf16.gmra.mrb[0].mxu0 %v825
      %v974 = vpop.f32.mrb[0].mxu0
      %v975 = vadd.f32 0.0, %v974
      %v976 = vpop.f32.mrb[0].mxu0
      %v977 = vpop.f32.mrb[0].mxu0
      %v978 = vadd.f32 0.0, %v977
      %v979 = vpop.f32.mrb[0].mxu0
      %980 = vmatprep.mubr.bf16.mxu0 0
      %981 = vmatmul.mubr.bf16.gmra.mrb[0].mxu0 %v826
      %v982 = vpop.f32.mrb[0].mxu0
      %v983 = vadd.f32 0.0, %v982
      %v984 = vpop.f32.mrb[0].mxu0
      %v985 = vpop.f32.mrb[0].mxu0
      %v986 = vadd.f32 0.0, %v985
      %v987 = vpop.f32.mrb[0].mxu0
      %988 = vmatprep.mubr.bf16.mxu0 0
      %989 = vmatmul.mubr.bf16.gmra.mrb[0].mxu0 %v827
      %v990 = vpop.f32.mrb[0].mxu0
      %v991 = vadd.f32 0.0, %v990
      %v992 = vpop.f32.mrb[0].mxu0
      %v993 = vpop.f32.mrb[0].mxu0
      %v994 = vadd.f32 0.0, %v993
      %v995 = vpop.f32.mrb[0].mxu0
      %996 = vmatprep.mubr.bf16.mxu0 0
      %997 = vmatmul.mubr.bf16.gmra.mrb[0].mxu0 %v828
      %v998 = vpop.f32.mrb[0].mxu0
      %v999 = vadd.f32 0.0, %v998
      %v1000 = vpop.f32.mrb[0].mxu0
      %v1001 = vpop.f32.mrb[0].mxu0
      %v1002 = vadd.f32 0.0, %v1001
      %v1003 = vpop.f32.mrb[0].mxu0
      %1004 = vmatprep.mubr.bf16.mxu0 0
      %1005 = vmatmul.mubr.bf16.gmra.mrb[0].mxu0 %v829
      %v1006 = vpop.f32.mrb[0].mxu0
      %v1007 = vadd.f32 0.0, %v1006
      %v1008 = vpop.f32.mrb[0].mxu0
      %v1009 = vpop.f32.mrb[0].mxu0
      %v1010 = vadd.f32 0.0, %v1009
      %v1011 = vpop.f32.mrb[0].mxu0
      %1012 = vmatprep.mubr.bf16.mxu0 0
      %1013 = vmatmul.mubr.bf16.gmra.mrb[0].mxu0 %v830
      %v1014 = vpop.f32.mrb[0].mxu0
      %v1015 = vadd.f32 0.0, %v1014
      %v1016 = vpop.f32.mrb[0].mxu0
      %v1017 = vpop.f32.mrb[0].mxu0
      %v1018 = vadd.f32 0.0, %v1017
      %v1019 = vpop.f32.mrb[0].mxu0
      %1020 = vmatprep.mubr.bf16.mxu0 0
      %1021 = vmatmul.mubr.bf16.gmra.mrb[0].mxu0 %v831
      %v1022 = vpop.f32.mrb[0].mxu0
      %v1023 = vadd.f32 0.0, %v1022
      %v1024 = vpop.f32.mrb[0].mxu0
      %v1025 = vpop.f32.mrb[0].mxu0
      %v1026 = vadd.f32 0.0, %v1025
      %v1027 = vpop.f32.mrb[0].mxu0
      %1028 = vmatprep.mubr.bf16.mxu0 0
      %1029 = vmatmul.mubr.bf16.gmra.mrb[0].mxu0 %v832
      %v1030 = vpop.f32.mrb[0].mxu0
      %v1031 = vadd.f32 0.0, %v1030
      %v1032 = vpop.f32.mrb[0].mxu0
      %v1033 = vpop.f32.mrb[0].mxu0
      %v1034 = vadd.f32 0.0, %v1033
      %v1035 = vpop.f32.mrb[0].mxu0
      %1036 = vmatprep.mubr.bf16.mxu0 0
      %1037 = vmatmul.mubr.bf16.gmra.mrb[0].mxu0 %v833
      %v1038 = vpop.f32.mrb[0].mxu0
      %v1039 = vadd.f32 0.0, %v1038
      %v1040 = vpop.f32.mrb[0].mxu0
      %v1041 = vpop.f32.mrb[0].mxu0
      %v1042 = vadd.f32 0.0, %v1041
      %v1043 = vpop.f32.mrb[0].mxu0
      %1044 = vmatprep.mubr.bf16.mxu0 0
      %1045 = vmatmul.mubr.bf16.gmra.mrb[0].mxu0 %v834
      %v1046 = vpop.f32.mrb[0].mxu0
      %v1047 = vadd.f32 0.0, %v1046
      %v1048 = vpop.f32.mrb[0].mxu0
      %v1049 = vpop.f32.mrb[0].mxu0
      %v1050 = vadd.f32 0.0, %v1049
      %v1051 = vpop.f32.mrb[0].mxu0
      %1052 = vmatprep.mubr.bf16.mxu0 0
      %1053 = vmatmul.mubr.bf16.gmra.mrb[0].mxu0 %v835
      %v1054 = vpop.f32.mrb[0].mxu0
      %v1055 = vadd.f32 0.0, %v1054
      %v1056 = vpop.f32.mrb[0].mxu0
      %v1057 = vpop.f32.mrb[0].mxu0
      %v1058 = vadd.f32 0.0, %v1057
      %v1059 = vpop.f32.mrb[0].mxu0
      %1060 = vdwg.mxu0
      %1061 = vst [vmem:[%s372] sm:$0xff] %v935
      %1062 = vst [vmem:[%s372 + $0x8] sm:$0xff] %v938
      %1063 = vst [vmem:[%s372 + $0x10] sm:$0xff] %v943
      %1064 = vst [vmem:[%s372 + $0x18] sm:$0xff] %v946
      %1065 = vst [vmem:[%s372 + $0x20] sm:$0xff] %v951
      %1066 = vst [vmem:[%s372 + $0x28] sm:$0xff] %v954
      %1067 = vst [vmem:[%s372 + $0x30] sm:$0xff] %v959
      %1068 = vst [vmem:[%s372 + $0x38] sm:$0xff] %v962
      %1069 = vst [vmem:[%s372 + $0x40] sm:$0xff] %v967
      %1070 = vst [vmem:[%s372 + $0x48] sm:$0xff] %v970
      %1071 = vst [vmem:[%s372 + $0x50] sm:$0xff] %v975
      %1072 = vst [vmem:[%s372 + $0x58] sm:$0xff] %v978
      %1073 = vst [vmem:[%s372 + $0x60] sm:$0xff] %v983
      %1074 = vst [vmem:[%s372 + $0x68] sm:$0xff] %v986
      %1075 = vst [vmem:[%s372 + $0x70] sm:$0xff] %v991
      %1076 = vst [vmem:[%s372 + $0x78] sm:$0xff] %v994
      %1077 = vst [vmem:[%s372 + $0x80] sm:$0xff] %v999
      %1078 = vst [vmem:[%s372 + $0x88] sm:$0xff] %v1002
      %1079 = vst [vmem:[%s372 + $0x90] sm:$0xff] %v1007
      %1080 = vst [vmem:[%s372 + $0x98] sm:$0xff] %v1010
      %1081 = vst [vmem:[%s372 + $0xa0] sm:$0xff] %v1015
      %1082 = vst [vmem:[%s372 + $0xa8] sm:$0xff] %v1018
      %1083 = vst [vmem:[%s372 + $0xb0] sm:$0xff] %v1023
      %1084 = vst [vmem:[%s372 + $0xb8] sm:$0xff] %v1026
      %1085 = vst [vmem:[%s372 + $0xc0] sm:$0xff] %v1031
      %1086 = vst [vmem:[%s372 + $0xc8] sm:$0xff] %v1034
      %1087 = vst [vmem:[%s372 + $0xd0] sm:$0xff] %v1039
      %1088 = vst [vmem:[%s372 + $0xd8] sm:$0xff] %v1042
      %1089 = vst [vmem:[%s372 + $0xe0] sm:$0xff] %v1047
      %1090 = vst [vmem:[%s372 + $0xe8] sm:$0xff] %v1050
      %1091 = vst [vmem:[%s372 + $0xf0] sm:$0xff] %v1055
      %1092 = vst [vmem:[%s372 + $0xf8] sm:$0xff] %v1058
      %v1093 = vadd.f32 %v935, %v938
      %v1094 = vadd.f32 %v1093, %v943
      %v1095 = vadd.f32 %v1094, %v946
      %v1096 = vadd.f32 %v1095, %v951
      %v1097 = vadd.f32 %v1096, %v954
      %v1098 = vadd.f32 %v1097, %v959
      %v1099 = vadd.f32 %v1098, %v962
      %v1100 = vadd.f32 %v1099, %v967
      %v1101 = vadd.f32 %v1100, %v970
      %v1102 = vadd.f32 %v1101, %v975
      %v1103 = vadd.f32 %v1102, %v978
      %v1104 = vadd.f32 %v1103, %v983
      %v1105 = vadd.f32 %v1104, %v986
      %v1106 = vadd.f32 %v1105, %v991
      %v1107 = vadd.f32 %v1106, %v994
      %v1108 = vadd.f32 %v1107, %v999
      %v1109 = vadd.f32 %v1108, %v1002
      %v1110 = vadd.f32 %v1109, %v1007
      %v1111 = vadd.f32 %v1110, %v1010
      %v1112 = vadd.f32 %v1111, %v1015
      %v1113 = vadd.f32 %v1112, %v1018
      %v1114 = vadd.f32 %v1113, %v1023
      %v1115 = vadd.f32 %v1114, %v1026
      %v1116 = vadd.f32 %v1115, %v1031
      %v1117 = vadd.f32 %v1116, %v1034
      %v1118 = vadd.f32 %v1117, %v1039
      %v1119 = vadd.f32 %v1118, %v1042
      %v1120 = vadd.f32 %v1119, %v1047
      %v1121 = vadd.f32 %v1120, %v1050
      %v1122 = vadd.f32 %v1121, %v1055
      %v1123 = vadd.f32 %v1122, %v1058
      %v1124 = vrot.slane %v1123, 4
      %v1125 = vadd.f32 %v1123, %v1124
      %v1126 = vrot.slane %v1125, 2
      %v1127 = vadd.f32 %v1125, %v1126
      %v1128 = vrot.slane %v1127, 1
      %v1129 = vadd.f32 %v1127, %v1128
      %1130 = vst [vmem:[%s375] sm:$0x1] %v1129
      %v1131 = vmul.f32 %v935, %v935
      %v1132 = vmul.f32 %v938, %v938
      %v1133 = vmul.f32 %v943, %v943
      %v1134 = vmul.f32 %v946, %v946
      %v1135 = vmul.f32 %v951, %v951
      %v1136 = vmul.f32 %v954, %v954
      %v1137 = vmul.f32 %v959, %v959
      %v1138 = vmul.f32 %v962, %v962
      %v1139 = vmul.f32 %v967, %v967
      %v1140 = vmul.f32 %v970, %v970
      %v1141 = vmul.f32 %v975, %v975
      %v1142 = vmul.f32 %v978, %v978
      %v1143 = vmul.f32 %v983, %v983
      %v1144 = vmul.f32 %v986, %v986
      %v1145 = vmul.f32 %v991, %v991
      %v1146 = vmul.f32 %v994, %v994
      %v1147 = vmul.f32 %v999, %v999
      %v1148 = vmul.f32 %v1002, %v1002
      %v1149 = vmul.f32 %v1007, %v1007
      %v1150 = vmul.f32 %v1010, %v1010
      %v1151 = vmul.f32 %v1015, %v1015
      %v1152 = vmul.f32 %v1018, %v1018
      %v1153 = vmul.f32 %v1023, %v1023
      %v1154 = vmul.f32 %v1026, %v1026
      %v1155 = vmul.f32 %v1031, %v1031
      %v1156 = vmul.f32 %v1034, %v1034
      %v1157 = vmul.f32 %v1039, %v1039
      %v1158 = vmul.f32 %v1042, %v1042
      %v1159 = vmul.f32 %v1047, %v1047
      %v1160 = vmul.f32 %v1050, %v1050
      %v1161 = vmul.f32 %v1055, %v1055
      %v1162 = vmul.f32 %v1058, %v1058
      %v1163 = vadd.f32 %v1131, %v1132
      %v1164 = vadd.f32 %v1163, %v1133
      %v1165 = vadd.f32 %v1164, %v1134
      %v1166 = vadd.f32 %v1165, %v1135
      %v1167 = vadd.f32 %v1166, %v1136
      %v1168 = vadd.f32 %v1167, %v1137
      %v1169 = vadd.f32 %v1168, %v1138
      %v1170 = vadd.f32 %v1169, %v1139
      %v1171 = vadd.f32 %v1170, %v1140
      %v1172 = vadd.f32 %v1171, %v1141
      %v1173 = vadd.f32 %v1172, %v1142
      %v1174 = vadd.f32 %v1173, %v1143
      %v1175 = vadd.f32 %v1174, %v1144
      %v1176 = vadd.f32 %v1175, %v1145
      %v1177 = vadd.f32 %v1176, %v1146
      %v1178 = vadd.f32 %v1177, %v1147
      %v1179 = vadd.f32 %v1178, %v1148
      %v1180 = vadd.f32 %v1179, %v1149
      %v1181 = vadd.f32 %v1180, %v1150
      %v1182 = vadd.f32 %v1181, %v1151
      %v1183 = vadd.f32 %v1182, %v1152
      %v1184 = vadd.f32 %v1183, %v1153
      %v1185 = vadd.f32 %v1184, %v1154
      %v1186 = vadd.f32 %v1185, %v1155
      %v1187 = vadd.f32 %v1186, %v1156
      %v1188 = vadd.f32 %v1187, %v1157
      %v1189 = vadd.f32 %v1188, %v1158
      %v1190 = vadd.f32 %v1189, %v1159
      %v1191 = vadd.f32 %v1190, %v1160
      %v1192 = vadd.f32 %v1191, %v1161
      %v1193 = vadd.f32 %v1192, %v1162
      %v1194 = vrot.slane %v1193, 4
      %v1195 = vadd.f32 %v1193, %v1194
      %v1196 = vrot.slane %v1195, 2
      %v1197 = vadd.f32 %v1195, %v1196
      %v1198 = vrot.slane %v1197, 1
      %v1199 = vadd.f32 %v1197, %v1198
      %1200 = vst [vmem:[%s378] sm:$0x1] %v1199
      %p1201 = scmp.lt.s32.totalorder %s24, 1
      %s1202 = scalar_select %p1201, %s24, 1
      %s1203 = smul.addr %s1202, 32
      %s1204 = smul.addr %s1203, 8
      %s1205 = scalar_lea.vmem %s8, %s1204
      %p1206 = scmp.lt.s32.totalorder %s24, 1
      %s1207 = scalar_select %p1206, %s24, 1
      %s1208 = scalar_lea.vmem %s9, %s1207
      %p1209 = scmp.lt.s32.totalorder %s24, 1
      %s1210 = scalar_select %p1209, %s24, 1
      %s1211 = scalar_lea.vmem %s10, %s1210
      // Predicated region
      $region53: #{depthwise_separable_conv.4} parent=51 // pred_check
        %p1212 = pneg %p215
      $region54: #{depthwise_separable_conv.4} parent=51 // pred_check_branch
        %1214 = sbr.rel (%p1212) target = $region56
      $region55: #{depthwise_separable_conv.4} parent=51 // pred_region
        _
      $region56: #{depthwise_separable_conv.4} parent=51 // pred_fallthru
        _
      // Predicated region
      $region57: #{depthwise_separable_conv.4} parent=51 // pred_check
        %p1215 = pneg %p241
      $region58: #{depthwise_separable_conv.4} parent=51 // pred_check_branch
        %1217 = sbr.rel (%p1215) target = $region60
      $region59: #{depthwise_separable_conv.4} parent=51 // pred_region
        _
      $region60: #{depthwise_separable_conv.4} parent=51 // pred_fallthru
        _
      // Predicated region
      $region61: #{depthwise_separable_conv.4} parent=51 // pred_check
        %p1218 = pneg %p267
      $region62: #{depthwise_separable_conv.4} parent=51 // pred_check_branch
        %1220 = sbr.rel (%p1218) target = $region64
      $region63: #{depthwise_separable_conv.4} parent=51 // pred_region
        _
      $region64: #{depthwise_separable_conv.4} parent=51 // pred_fallthru
        _
    $region52: #{depthwise_separable_conv.4} parent=5 // pred_fallthru
      _
    %p1221 = scmp.le.s32.totalorder 2, %s19
    // Predicated region
    $region65: #{depthwise_separable_conv.4} parent=5 // pred_check
      %p1222 = pneg %p1221
    $region66: #{depthwise_separable_conv.4} parent=5 // pred_check_branch
      %1224 = sbr.rel (%p1222) target = $region68
    $region67: #{depthwise_separable_conv.4} parent=5 // pred_region
      %s1225 = ssub.s32 %s19, 2
      // Predicated region
      $region69: #{depthwise_separable_conv.4} parent=67 // pred_check
        %p1226 = pneg %p221
      $region70: #{depthwise_separable_conv.4} parent=67 // pred_check_branch
        %1228 = sbr.rel (%p1226) target = $region72
      $region71: #{depthwise_separable_conv.4} parent=67 // pred_region
        %p1229 = scmp.lt.s32.totalorder %s25, 1
        %s1230 = scalar_select %p1229, %s25, 1
        %s1231 = smul.addr %s1230, 32
        %s1232 = smul.addr %s1231, 8
        %s1233 = scalar_lea.vmem %s8, %s1232
      $region72: #{depthwise_separable_conv.4} parent=67 // pred_fallthru
        _
      // Predicated region
      $region73: #{depthwise_separable_conv.4} parent=67 // pred_check
        %p1234 = pneg %p247
      $region74: #{depthwise_separable_conv.4} parent=67 // pred_check_branch
        %1236 = sbr.rel (%p1234) target = $region76
      $region75: #{depthwise_separable_conv.4} parent=67 // pred_region
        %p1237 = scmp.lt.s32.totalorder %s25, 1
        %s1238 = scalar_select %p1237, %s25, 1
        %s1239 = scalar_lea.vmem %s9, %s1238
      $region76: #{depthwise_separable_conv.4} parent=67 // pred_fallthru
        _
      // Predicated region
      $region77: #{depthwise_separable_conv.4} parent=67 // pred_check
        %p1240 = pneg %p273
      $region78: #{depthwise_separable_conv.4} parent=67 // pred_check_branch
        %1242 = sbr.rel (%p1240) target = $region80
      $region79: #{depthwise_separable_conv.4} parent=67 // pred_region
        %p1243 = scmp.lt.s32.totalorder %s25, 1
        %s1244 = scalar_select %p1243, %s25, 1
        %s1245 = scalar_lea.vmem %s10, %s1244
      $region80: #{depthwise_separable_conv.4} parent=67 // pred_fallthru
        _
    $region68: #{depthwise_separable_conv.4} parent=5 // pred_fallthru
      _
  $region6: #{depthwise_separable_conv.4} parent=0 // loop_footer
    %s23 = sadd.s32 1, %s19
  $region7: #{depthwise_separable_conv.4} parent=0 // loop_footer_branch
    %18 = sbr.rel target = $region3
  $region8: #{depthwise_separable_conv.4} parent=0 // loop_exit
    _

// kernel: depthwise_separable_conv.5
$region0: #{depthwise_separable_conv.5}
  #allocation0 [shape = 'u32[]', space=smem, size = 0x4, offset = 0x4, fixed_abs, tag = 'smem constant byte address 0x4 - core index']
  #allocation1 [shape = 'u32[144,128]{1,0:T(1,128)}', space=vmem, size = 0x12000, scoped, tag = 'internal scratch']
  %s0 = inlined_call_operand.vmem [shape: f32[512,128], index: 0, kind: input, shape index: {}]
  %s1 = inlined_call_operand.vmem [shape: f32[1,128], index: 1, kind: input, shape index: {}]
  %s2 = inlined_call_operand.vmem [shape: f32[1,128], index: 2, kind: input, shape index: {}]
  %s3 = inlined_call_operand.vmem [shape: f32[512,128], index: 3, kind: output, shape index: {}]
  %s4 = sld [smem:[#allocation0]]
  $region45: #{depthwise_separable_conv.5} parent=0
    _
  %s6 = ssub.s32 1, %s4
  %s7 = scalar_select 0, %s6, %s4
  loop: start=0, step=1, limit=4
  $region2: #{depthwise_separable_conv.5} parent=0 // loop_pre_header
    _
  $region3: #{depthwise_separable_conv.5} parent=0 // loop_header
    %s9 = sphi 0, %s13
    %p10 = scmp.ge.s32.totalorder %s9, 4
    %s19 = sphi 0, %s21
    %s22 = sphi 0, %s19
    %s23 = sphi 0, %s22
    %s39 = sphi 0, %s23
    %s43 = sphi 0, %s43
    %s45 = sphi 0, %s43
    %s46 = sphi 0, %s45
    %s60 = sphi 0, %s46
    %s64 = sphi 0, %s64
    %s66 = sphi 0, %s64
    %s67 = sphi 0, %s66
    %s81 = sphi 0, %s67
    %s87 = sphi 0, %s89
    %s90 = sphi 0, %s87
    %s91 = sphi 0, %s90
    %s107 = sphi 0, %s91
  $region4: #{depthwise_separable_conv.5} parent=0 // loop_header_branch
    %12 = sbr.rel (%p10) target = $region8
  $region5: #{depthwise_separable_conv.5} parent=0 // loop_body
    %s14 = ssub.s32 %s9, 1
    %s15 = ssub.s32 %s9, 2
    %s16 = sadd.s32 %s9, 1
    %s17 = ssub.s32 %s9, %s16
    %p18 = scmp.eq.s32.totalorder %s17, 0
    %s20 = sadd.s32 %s19, 1
    %s21 = scalar_select %p18, %s19, %s20
    %p24 = pneg %p18
    %p25 = scmp.eq.s32.totalorder %s9, 1
    %p26 = por %p24, %p25
    %p27 = scmp.ne.s32.totalorder %s19, %s22
    %p28 = scmp.eq.s32.totalorder %s9, 0
    %p29 = por %p27, %p28
    %p30 = scmp.ne.s32.totalorder %s19, %s22
    %p31 = scmp.eq.s32.totalorder %s14, 1
    %p32 = por %p30, %p31
    %p33 = scmp.ne.s32.totalorder %s22, %s23
    %p34 = scmp.eq.s32.totalorder %s14, 0
    %p35 = por %p33, %p34
    %p36 = scmp.ne.s32.totalorder %s22, %s23
    %p37 = scmp.eq.s32.totalorder %s15, 1
    %p38 = por %p36, %p37
    %p40 = scmp.ne.s32.totalorder %s23, %s39
    %p41 = scmp.eq.s32.totalorder %s15, 0
    %p42 = por %p40, %p41
    %s44 = sadd.s32 %s43, 1
    %p47 = scmp.eq.s32.totalorder %s9, 1
    %p48 = scmp.ne.s32.totalorder %s43, %s45
    %p49 = scmp.eq.s32.totalorder %s9, 0
    %p50 = por %p48, %p49
    %p51 = scmp.ne.s32.totalorder %s43, %s45
    %p52 = scmp.eq.s32.totalorder %s14, 1
    %p53 = por %p51, %p52
    %p54 = scmp.ne.s32.totalorder %s45, %s46
    %p55 = scmp.eq.s32.totalorder %s14, 0
    %p56 = por %p54, %p55
    %p57 = scmp.ne.s32.totalorder %s45, %s46
    %p58 = scmp.eq.s32.totalorder %s15, 1
    %p59 = por %p57, %p58
    %p61 = scmp.ne.s32.totalorder %s46, %s60
    %p62 = scmp.eq.s32.totalorder %s15, 0
    %p63 = por %p61, %p62
    %s65 = sadd.s32 %s64, 1
    %p68 = scmp.eq.s32.totalorder %s9, 1
    %p69 = scmp.ne.s32.totalorder %s64, %s66
    %p70 = scmp.eq.s32.totalorder %s9, 0
    %p71 = por %p69, %p70
    %p72 = scmp.ne.s32.totalorder %s64, %s66
    %p73 = scmp.eq.s32.totalorder %s14, 1
    %p74 = por %p72, %p73
    %p75 = scmp.ne.s32.totalorder %s66, %s67
    %p76 = scmp.eq.s32.totalorder %s14, 0
    %p77 = por %p75, %p76
    %p78 = scmp.ne.s32.totalorder %s66, %s67
    %p79 = scmp.eq.s32.totalorder %s15, 1
    %p80 = por %p78, %p79
    %p82 = scmp.ne.s32.totalorder %s67, %s81
    %p83 = scmp.eq.s32.totalorder %s15, 0
    %p84 = por %p82, %p83
    %s85 = ssub.s32 %s9, %s16
    %p86 = scmp.eq.s32.totalorder %s85, 0
    %s88 = sadd.s32 %s87, 1
    %s89 = scalar_select %p86, %s87, %s88
    %p92 = pneg %p86
    %p93 = scmp.eq.s32.totalorder %s9, 1
    %p94 = por %p92, %p93
    %p95 = scmp.ne.s32.totalorder %s87, %s90
    %p96 = scmp.eq.s32.totalorder %s9, 0
    %p97 = por %p95, %p96
    %p98 = scmp.ne.s32.totalorder %s87, %s90
    %p99 = scmp.eq.s32.totalorder %s14, 1
    %p100 = por %p98, %p99
    %p101 = scmp.ne.s32.totalorder %s90, %s91
    %p102 = scmp.eq.s32.totalorder %s14, 0
    %p103 = por %p101, %p102
    %p104 = scmp.ne.s32.totalorder %s90, %s91
    %p105 = scmp.eq.s32.totalorder %s15, 1
    %p106 = por %p104, %p105
    %p108 = scmp.ne.s32.totalorder %s91, %s107
    %p109 = scmp.eq.s32.totalorder %s15, 0
    %p110 = por %p108, %p109
    %p111 = scmp.le.s32.totalorder 1, %s9
    %p112 = scmp.lt.s32.totalorder %s9, 3
    %p113 = pnand %p111, %p112
    %p114 = pneg %p113
    // Predicated region
    $region9: #{depthwise_separable_conv.5} parent=5 // pred_check
      _
    $region10: #{depthwise_separable_conv.5} parent=5 // pred_check_branch
      %116 = sbr.rel (%p113) target = $region12
    $region11: #{depthwise_separable_conv.5} parent=5 // pred_region
      %s117 = ssub.s32 %s9, 1
      // Predicated region
      $region13: #{depthwise_separable_conv.5} parent=11 // pred_check
        %p118 = pneg %p56
      $region14: #{depthwise_separable_conv.5} parent=11 // pred_check_branch
        %120 = sbr.rel (%p118) target = $region16
      $region15: #{depthwise_separable_conv.5} parent=11 // pred_region
        _
      $region16: #{depthwise_separable_conv.5} parent=11 // pred_fallthru
        _
      // Predicated region
      $region17: #{depthwise_separable_conv.5} parent=11 // pred_check
        %p121 = pneg %p77
      $region18: #{depthwise_separable_conv.5} parent=11 // pred_check_branch
        %123 = sbr.rel (%p121) target = $region20
      $region19: #{depthwise_separable_conv.5} parent=11 // pred_region
        _
      $region20: #{depthwise_separable_conv.5} parent=11 // pred_fallthru
        _
    $region12: #{depthwise_separable_conv.5} parent=5 // pred_fallthru
      _
    %p124 = scmp.lt.s32.totalorder %s9, 2
    // Predicated region
    $region21: #{depthwise_separable_conv.5} parent=5 // pred_check
      %p125 = pneg %p124
    $region22: #{depthwise_separable_conv.5} parent=5 // pred_check_branch
      %127 = sbr.rel (%p125) target = $region24
    $region23: #{depthwise_separable_conv.5} parent=5 // pred_region
      // Predicated region
      $region25: #{depthwise_separable_conv.5} parent=23 // pred_check
        %p128 = pneg %p29
      $region26: #{depthwise_separable_conv.5} parent=23 // pred_check_branch
        %130 = sbr.rel (%p128) target = $region28
      $region27: #{depthwise_separable_conv.5} parent=23 // pred_region
        %s131 = smul.u32 32, %s9
        %p132 = scmp.lt.s32.totalorder %s131, 63
        %s133 = scalar_select %p132, %s131, 63
        %s134 = smul.addr %s133, 8
        %s135 = scalar_lea.vmem %s0, %s134
        %s136 = smul.u32 32, %s9
      $region28: #{depthwise_separable_conv.5} parent=23 // pred_fallthru
        _
    $region24: #{depthwise_separable_conv.5} parent=5 // pred_fallthru
      _
    %p137 = scmp.le.s32.totalorder 1, %s9
    %p138 = scmp.lt.s32.totalorder %s9, 3
    %p139 = pnand %p137, %p138
    %p140 = pneg %p139
    // Predicated region
    $region29: #{depthwise_separable_conv.5} parent=5 // pred_check
      _
    $region30: #{depthwise_separable_conv.5} parent=5 // pred_check_branch
      %142 = sbr.rel (%p139) target = $region32
    $region31: #{depthwise_separable_conv.5} parent=5 // pred_region
      %s143 = ssub.s32 %s9, 1
      %s144 = smul.u32 32, %s14
      %p145 = scmp.lt.s32.totalorder %s144, 63
      %s146 = scalar_select %p145, %s144, 63
      %s147 = smul.addr %s146, 8
      %s148 = scalar_lea.vmem %s0, %s147
      %p149 = pneg %p35
      %p150 = pneg %p32
      %p151 = pneg %p56
      %p152 = pneg %p53
      %p153 = pneg %p77
      %p154 = pneg %p74
      %p155 = pneg %p103
      %p156 = pneg %p100
      %s157 = smul.u32 32, %s14
      %p158 = scmp.lt.s32.totalorder %s157, 63
      %s159 = scalar_select %p158, %s157, 63
      %s160 = smul.addr %s159, 8
      %s161 = scalar_lea.vmem %s3, %s160
      %s162 = smul.u32 32, %s14
      %p163 = scmp.lt.s32.totalorder %s162, 63
      %s164 = scalar_select %p163, %s162, 63
      %s165 = smul.addr %s164, 8
      %s166 = scalar_lea.vmem %s0, %s165
      %s167 = smul.u32 32, %s14
      %s168 = smul.u32 32, %s14
      %p169 = scmp.lt.s32.totalorder %s168, 63
      %s170 = scalar_select %p169, %s168, 63
      %s171 = smul.addr %s170, 8
      %s172 = scalar_lea.vmem %s3, %s171
      %s173 = smul.u32 32, %s14
      %v174 = vld [vmem:[%s166] sm:$0xff]
      %v175 = vld [vmem:[%s166 + $0x8] sm:$0xff]
      %v176 = vld [vmem:[%s166 + $0x10] sm:$0xff]
      %v177 = vld [vmem:[%s166 + $0x18] sm:$0xff]
      %v178 = vld [vmem:[%s166 + $0x20] sm:$0xff]
      %v179 = vld [vmem:[%s166 + $0x28] sm:$0xff]
      %v180 = vld [vmem:[%s166 + $0x30] sm:$0xff]
      %v181 = vld [vmem:[%s166 + $0x38] sm:$0xff]
      %v182 = vld [vmem:[%s166 + $0x40] sm:$0xff]
      %v183 = vld [vmem:[%s166 + $0x48] sm:$0xff]
      %v184 = vld [vmem:[%s166 + $0x50] sm:$0xff]
      %v185 = vld [vmem:[%s166 + $0x58] sm:$0xff]
      %v186 = vld [vmem:[%s166 + $0x60] sm:$0xff]
      %v187 = vld [vmem:[%s166 + $0x68] sm:$0xff]
      %v188 = vld [vmem:[%s166 + $0x70] sm:$0xff]
      %v189 = vld [vmem:[%s166 + $0x78] sm:$0xff]
      %v190 = vld [vmem:[%s166 + $0x80] sm:$0xff]
      %v191 = vld [vmem:[%s166 + $0x88] sm:$0xff]
      %v192 = vld [vmem:[%s166 + $0x90] sm:$0xff]
      %v193 = vld [vmem:[%s166 + $0x98] sm:$0xff]
      %v194 = vld [vmem:[%s166 + $0xa0] sm:$0xff]
      %v195 = vld [vmem:[%s166 + $0xa8] sm:$0xff]
      %v196 = vld [vmem:[%s166 + $0xb0] sm:$0xff]
      %v197 = vld [vmem:[%s166 + $0xb8] sm:$0xff]
      %v198 = vld [vmem:[%s166 + $0xc0] sm:$0xff]
      %v199 = vld [vmem:[%s166 + $0xc8] sm:$0xff]
      %v200 = vld [vmem:[%s166 + $0xd0] sm:$0xff]
      %v201 = vld [vmem:[%s166 + $0xd8] sm:$0xff]
      %v202 = vld [vmem:[%s166 + $0xe0] sm:$0xff]
      %v203 = vld [vmem:[%s166 + $0xe8] sm:$0xff]
      %v204 = vld [vmem:[%s166 + $0xf0] sm:$0xff]
      %v205 = vld [vmem:[%s166 + $0xf8] sm:$0xff]
      %v206 = vld [vmem:[%s1] sm:$0x1]
      %v208 = vlaneseq
      %v209 = vshrl.u32 %v208, 7
      %v210 = vsub.s32 0, %v209
      %v211 = vrot.slane %v206, %v210
      %v213 = vmul.f32 %v174, %v211
      %v214 = vmul.f32 %v175, %v211
      %v215 = vmul.f32 %v176, %v211
      %v216 = vmul.f32 %v177, %v211
      %v217 = vmul.f32 %v178, %v211
      %v218 = vmul.f32 %v179, %v211
      %v219 = vmul.f32 %v180, %v211
      %v220 = vmul.f32 %v181, %v211
      %v221 = vmul.f32 %v182, %v211
      %v222 = vmul.f32 %v183, %v211
      %v223 = vmul.f32 %v184, %v211
      %v224 = vmul.f32 %v185, %v211
      %v225 = vmul.f32 %v186, %v211
      %v226 = vmul.f32 %v187, %v211
      %v227 = vmul.f32 %v188, %v211
      %v228 = vmul.f32 %v189, %v211
      %v229 = vmul.f32 %v190, %v211
      %v230 = vmul.f32 %v191, %v211
      %v231 = vmul.f32 %v192, %v211
      %v232 = vmul.f32 %v193, %v211
      %v233 = vmul.f32 %v194, %v211
      %v234 = vmul.f32 %v195, %v211
      %v235 = vmul.f32 %v196, %v211
      %v236 = vmul.f32 %v197, %v211
      %v237 = vmul.f32 %v198, %v211
      %v238 = vmul.f32 %v199, %v211
      %v239 = vmul.f32 %v200, %v211
      %v240 = vmul.f32 %v201, %v211
      %v241 = vmul.f32 %v202, %v211
      %v242 = vmul.f32 %v203, %v211
      %v243 = vmul.f32 %v204, %v211
      %v244 = vmul.f32 %v205, %v211
      %v245 = vld [vmem:[%s2] sm:$0x1]
      %v247 = vlaneseq
      %v248 = vshrl.u32 %v247, 7
      %v249 = vsub.s32 0, %v248
      %v250 = vrot.slane %v245, %v249
      %v252 = vadd.f32 %v213, %v250
      %v253 = vadd.f32 %v214, %v250
      %v254 = vadd.f32 %v215, %v250
      %v255 = vadd.f32 %v216, %v250
      %v256 = vadd.f32 %v217, %v250
      %v257 = vadd.f32 %v218, %v250
      %v258 = vadd.f32 %v219, %v250
      %v259 = vadd.f32 %v220, %v250
      %v260 = vadd.f32 %v221, %v250
      %v261 = vadd.f32 %v222, %v250
      %v262 = vadd.f32 %v223, %v250
      %v263 = vadd.f32 %v224, %v250
      %v264 = vadd.f32 %v225, %v250
      %v265 = vadd.f32 %v226, %v250
      %v266 = vadd.f32 %v227, %v250
      %v267 = vadd.f32 %v228, %v250
      %v268 = vadd.f32 %v229, %v250
      %v269 = vadd.f32 %v230, %v250
      %v270 = vadd.f32 %v231, %v250
      %v271 = vadd.f32 %v232, %v250
      %v272 = vadd.f32 %v233, %v250
      %v273 = vadd.f32 %v234, %v250
      %v274 = vadd.f32 %v235, %v250
      %v275 = vadd.f32 %v236, %v250
      %v276 = vadd.f32 %v237, %v250
      %v277 = vadd.f32 %v238, %v250
      %v278 = vadd.f32 %v239, %v250
      %v279 = vadd.f32 %v240, %v250
      %v280 = vadd.f32 %v241, %v250
      %v281 = vadd.f32 %v242, %v250
      %v282 = vadd.f32 %v243, %v250
      %v283 = vadd.f32 %v244, %v250
      %v284 = vxor.u32 %v252, 2147483648
      %v285 = vxor.u32 %v253, 2147483648
      %v286 = vxor.u32 %v254, 2147483648
      %v287 = vxor.u32 %v255, 2147483648
      %v288 = vxor.u32 %v256, 2147483648
      %v289 = vxor.u32 %v257, 2147483648
      %v290 = vxor.u32 %v258, 2147483648
      %v291 = vxor.u32 %v259, 2147483648
      %v292 = vxor.u32 %v260, 2147483648
      %v293 = vxor.u32 %v261, 2147483648
      %v294 = vxor.u32 %v262, 2147483648
      %v295 = vxor.u32 %v263, 2147483648
      %v296 = vxor.u32 %v264, 2147483648
      %v297 = vxor.u32 %v265, 2147483648
      %v298 = vxor.u32 %v266, 2147483648
      %v299 = vxor.u32 %v267, 2147483648
      %v300 = vxor.u32 %v268, 2147483648
      %v301 = vxor.u32 %v269, 2147483648
      %v302 = vxor.u32 %v270, 2147483648
      %v303 = vxor.u32 %v271, 2147483648
      %v304 = vxor.u32 %v272, 2147483648
      %v305 = vxor.u32 %v273, 2147483648
      %v306 = vxor.u32 %v274, 2147483648
      %v307 = vxor.u32 %v275, 2147483648
      %v308 = vxor.u32 %v276, 2147483648
      %v309 = vxor.u32 %v277, 2147483648
      %v310 = vxor.u32 %v278, 2147483648
      %v311 = vxor.u32 %v279, 2147483648
      %v312 = vxor.u32 %v280, 2147483648
      %v313 = vxor.u32 %v281, 2147483648
      %v314 = vxor.u32 %v282, 2147483648
      %v315 = vxor.u32 %v283, 2147483648
      %v316 = vmul.f32 %v284, 1.442695
      %v317 = vpow.pop %v316
      %v318 = vmul.f32 %v285, 1.442695
      %v319 = vpow.pop %v318
      %v320 = vmul.f32 %v286, 1.442695
      %v321 = vpow.pop %v320
      %v322 = vmul.f32 %v287, 1.442695
      %v323 = vpow.pop %v322
      %v324 = vmul.f32 %v288, 1.442695
      %v325 = vpow.pop %v324
      %v326 = vmul.f32 %v289, 1.442695
      %v327 = vpow.pop %v326
      %v328 = vmul.f32 %v290, 1.442695
      %v329 = vpow.pop %v328
      %v330 = vmul.f32 %v291, 1.442695
      %v331 = vpow.pop %v330
      %v332 = vmul.f32 %v292, 1.442695
      %v333 = vpow.pop %v332
      %v334 = vmul.f32 %v293, 1.442695
      %v335 = vpow.pop %v334
      %v336 = vmul.f32 %v294, 1.442695
      %v337 = vpow.pop %v336
      %v338 = vmul.f32 %v295, 1.442695
      %v339 = vpow.pop %v338
      %v340 = vmul.f32 %v296, 1.442695
      %v341 = vpow.pop %v340
      %v342 = vmul.f32 %v297, 1.442695
      %v343 = vpow.pop %v342
      %v344 = vmul.f32 %v298, 1.442695
      %v345 = vpow.pop %v344
      %v346 = vmul.f32 %v299, 1.442695
      %v347 = vpow.pop %v346
      %v348 = vmul.f32 %v300, 1.442695
      %v349 = vpow.pop %v348
      %v350 = vmul.f32 %v301, 1.442695
      %v351 = vpow.pop %v350
      %v352 = vmul.f32 %v302, 1.442695
      %v353 = vpow.pop %v352
      %v354 = vmul.f32 %v303, 1.442695
      %v355 = vpow.pop %v354
      %v356 = vmul.f32 %v304, 1.442695
      %v357 = vpow.pop %v356
      %v358 = vmul.f32 %v305, 1.442695
      %v359 = vpow.pop %v358
      %v360 = vmul.f32 %v306, 1.442695
      %v361 = vpow.pop %v360
      %v362 = vmul.f32 %v307, 1.442695
      %v363 = vpow.pop %v362
      %v364 = vmul.f32 %v308, 1.442695
      %v365 = vpow.pop %v364
      %v366 = vmul.f32 %v309, 1.442695
      %v367 = vpow.pop %v366
      %v368 = vmul.f32 %v310, 1.442695
      %v369 = vpow.pop %v368
      %v370 = vmul.f32 %v311, 1.442695
      %v371 = vpow.pop %v370
      %v372 = vmul.f32 %v312, 1.442695
      %v373 = vpow.pop %v372
      %v374 = vmul.f32 %v313, 1.442695
      %v375 = vpow.pop %v374
      %v376 = vmul.f32 %v314, 1.442695
      %v377 = vpow.pop %v376
      %v378 = vmul.f32 %v315, 1.442695
      %v379 = vpow.pop %v378
      %v380 = vadd.f32 %v317, 1.0
      %v381 = vadd.f32 %v319, 1.0
      %v382 = vadd.f32 %v321, 1.0
      %v383 = vadd.f32 %v323, 1.0
      %v384 = vadd.f32 %v325, 1.0
      %v385 = vadd.f32 %v327, 1.0
      %v386 = vadd.f32 %v329, 1.0
      %v387 = vadd.f32 %v331, 1.0
      %v388 = vadd.f32 %v333, 1.0
      %v389 = vadd.f32 %v335, 1.0
      %v390 = vadd.f32 %v337, 1.0
      %v391 = vadd.f32 %v339, 1.0
      %v392 = vadd.f32 %v341, 1.0
      %v393 = vadd.f32 %v343, 1.0
      %v394 = vadd.f32 %v345, 1.0
      %v395 = vadd.f32 %v347, 1.0
      %v396 = vadd.f32 %v349, 1.0
      %v397 = vadd.f32 %v351, 1.0
      %v398 = vadd.f32 %v353, 1.0
      %v399 = vadd.f32 %v355, 1.0
      %v400 = vadd.f32 %v357, 1.0
      %v401 = vadd.f32 %v359, 1.0
      %v402 = vadd.f32 %v361, 1.0
      %v403 = vadd.f32 %v363, 1.0
      %v404 = vadd.f32 %v365, 1.0
      %v405 = vadd.f32 %v367, 1.0
      %v406 = vadd.f32 %v369, 1.0
      %v407 = vadd.f32 %v371, 1.0
      %v408 = vadd.f32 %v373, 1.0
      %v409 = vadd.f32 %v375, 1.0
      %v410 = vadd.f32 %v377, 1.0
      %v411 = vadd.f32 %v379, 1.0
      %v412 = vrcp.pop %v380
      %v413 = vmul.f32 1.0, %v412
      %v414 = vrcp.pop %v381
      %v415 = vmul.f32 1.0, %v414
      %v416 = vrcp.pop %v382
      %v417 = vmul.f32 1.0, %v416
      %v418 = vrcp.pop %v383
      %v419 = vmul.f32 1.0, %v418
      %v420 = vrcp.pop %v384
      %v421 = vmul.f32 1.0, %v420
      %v422 = vrcp.pop %v385
      %v423 = vmul.f32 1.0, %v422
      %v424 = vrcp.pop %v386
      %v425 = vmul.f32 1.0, %v424
      %v426 = vrcp.pop %v387
      %v427 = vmul.f32 1.0, %v426
      %v428 = vrcp.pop %v388
      %v429 = vmul.f32 1.0, %v428
      %v430 = vrcp.pop %v389
      %v431 = vmul.f32 1.0, %v430
      %v432 = vrcp.pop %v390
      %v433 = vmul.f32 1.0, %v432
      %v434 = vrcp.pop %v391
      %v435 = vmul.f32 1.0, %v434
      %v436 = vrcp.pop %v392
      %v437 = vmul.f32 1.0, %v436
      %v438 = vrcp.pop %v393
      %v439 = vmul.f32 1.0, %v438
      %v440 = vrcp.pop %v394
      %v441 = vmul.f32 1.0, %v440
      %v442 = vrcp.pop %v395
      %v443 = vmul.f32 1.0, %v442
      %v444 = vrcp.pop %v396
      %v445 = vmul.f32 1.0, %v444
      %v446 = vrcp.pop %v397
      %v447 = vmul.f32 1.0, %v446
      %v448 = vrcp.pop %v398
      %v449 = vmul.f32 1.0, %v448
      %v450 = vrcp.pop %v399
      %v451 = vmul.f32 1.0, %v450
      %v452 = vrcp.pop %v400
      %v453 = vmul.f32 1.0, %v452
      %v454 = vrcp.pop %v401
      %v455 = vmul.f32 1.0, %v454
      %v456 = vrcp.pop %v402
      %v457 = vmul.f32 1.0, %v456
      %v458 = vrcp.pop %v403
      %v459 = vmul.f32 1.0, %v458
      %v460 = vrcp.pop %v404
      %v461 = vmul.f32 1.0, %v460
      %v462 = vrcp.pop %v405
      %v463 = vmul.f32 1.0, %v462
      %v464 = vrcp.pop %v406
      %v465 = vmul.f32 1.0, %v464
      %v466 = vrcp.pop %v407
      %v467 = vmul.f32 1.0, %v466
      %v468 = vrcp.pop %v408
      %v469 = vmul.f32 1.0, %v468
      %v470 = vrcp.pop %v409
      %v471 = vmul.f32 1.0, %v470
      %v472 = vrcp.pop %v410
      %v473 = vmul.f32 1.0, %v472
      %v474 = vrcp.pop %v411
      %v475 = vmul.f32 1.0, %v474
      %v476 = vmul.f32 %v252, %v413
      %v477 = vmul.f32 %v253, %v415
      %v478 = vmul.f32 %v254, %v417
      %v479 = vmul.f32 %v255, %v419
      %v480 = vmul.f32 %v256, %v421
      %v481 = vmul.f32 %v257, %v423
      %v482 = vmul.f32 %v258, %v425
      %v483 = vmul.f32 %v259, %v427
      %v484 = vmul.f32 %v260, %v429
      %v485 = vmul.f32 %v261, %v431
      %v486 = vmul.f32 %v262, %v433
      %v487 = vmul.f32 %v263, %v435
      %v488 = vmul.f32 %v264, %v437
      %v489 = vmul.f32 %v265, %v439
      %v490 = vmul.f32 %v266, %v441
      %v491 = vmul.f32 %v267, %v443
      %v492 = vmul.f32 %v268, %v445
      %v493 = vmul.f32 %v269, %v447
      %v494 = vmul.f32 %v270, %v449
      %v495 = vmul.f32 %v271, %v451
      %v496 = vmul.f32 %v272, %v453
      %v497 = vmul.f32 %v273, %v455
      %v498 = vmul.f32 %v274, %v457
      %v499 = vmul.f32 %v275, %v459
      %v500 = vmul.f32 %v276, %v461
      %v501 = vmul.f32 %v277, %v463
      %v502 = vmul.f32 %v278, %v465
      %v503 = vmul.f32 %v279, %v467
      %v504 = vmul.f32 %v280, %v469
      %v505 = vmul.f32 %v281, %v471
      %v506 = vmul.f32 %v282, %v473
      %v507 = vmul.f32 %v283, %v475
      %508 = vst [vmem:[%s172] sm:$0xff] %v476
      %509 = vst [vmem:[%s172 + $0x8] sm:$0xff] %v477
      %510 = vst [vmem:[%s172 + $0x10] sm:$0xff] %v478
      %511 = vst [vmem:[%s172 + $0x18] sm:$0xff] %v479
      %512 = vst [vmem:[%s172 + $0x20] sm:$0xff] %v480
      %513 = vst [vmem:[%s172 + $0x28] sm:$0xff] %v481
      %514 = vst [vmem:[%s172 + $0x30] sm:$0xff] %v482
      %515 = vst [vmem:[%s172 + $0x38] sm:$0xff] %v483
      %516 = vst [vmem:[%s172 + $0x40] sm:$0xff] %v484
      %517 = vst [vmem:[%s172 + $0x48] sm:$0xff] %v485
      %518 = vst [vmem:[%s172 + $0x50] sm:$0xff] %v486
      %519 = vst [vmem:[%s172 + $0x58] sm:$0xff] %v487
      %520 = vst [vmem:[%s172 + $0x60] sm:$0xff] %v488
      %521 = vst [vmem:[%s172 + $0x68] sm:$0xff] %v489
      %522 = vst [vmem:[%s172 + $0x70] sm:$0xff] %v490
      %523 = vst [vmem:[%s172 + $0x78] sm:$0xff] %v491
      %524 = vst [vmem:[%s172 + $0x80] sm:$0xff] %v492
      %525 = vst [vmem:[%s172 + $0x88] sm:$0xff] %v493
      %526 = vst [vmem:[%s172 + $0x90] sm:$0xff] %v494
      %527 = vst [vmem:[%s172 + $0x98] sm:$0xff] %v495
      %528 = vst [vmem:[%s172 + $0xa0] sm:$0xff] %v496
      %529 = vst [vmem:[%s172 + $0xa8] sm:$0xff] %v497
      %530 = vst [vmem:[%s172 + $0xb0] sm:$0xff] %v498
      %531 = vst [vmem:[%s172 + $0xb8] sm:$0xff] %v499
      %532 = vst [vmem:[%s172 + $0xc0] sm:$0xff] %v500
      %533 = vst [vmem:[%s172 + $0xc8] sm:$0xff] %v501
      %534 = vst [vmem:[%s172 + $0xd0] sm:$0xff] %v502
      %535 = vst [vmem:[%s172 + $0xd8] sm:$0xff] %v503
      %536 = vst [vmem:[%s172 + $0xe0] sm:$0xff] %v504
      %537 = vst [vmem:[%s172 + $0xe8] sm:$0xff] %v505
      %538 = vst [vmem:[%s172 + $0xf0] sm:$0xff] %v506
      %539 = vst [vmem:[%s172 + $0xf8] sm:$0xff] %v507
      %s540 = smul.u32 32, %s14
      %p541 = scmp.lt.s32.totalorder %s540, 63
      %s542 = scalar_select %p541, %s540, 63
      %s543 = smul.addr %s542, 8
      %s544 = scalar_lea.vmem %s3, %s543
      // Predicated region
      $region33: #{depthwise_separable_conv.5} parent=31 // pred_check
        %p545 = pneg %p100
      $region34: #{depthwise_separable_conv.5} parent=31 // pred_check_branch
        %547 = sbr.rel (%p545) target = $region36
      $region35: #{depthwise_separable_conv.5} parent=31 // pred_region
        %s548 = smul.u32 32, %s14
      $region36: #{depthwise_separable_conv.5} parent=31 // pred_fallthru
        _
    $region32: #{depthwise_separable_conv.5} parent=5 // pred_fallthru
      _
    %p549 = scmp.le.s32.totalorder 2, %s9
    // Predicated region
    $region37: #{depthwise_separable_conv.5} parent=5 // pred_check
      %p550 = pneg %p549
    $region38: #{depthwise_separable_conv.5} parent=5 // pred_check_branch
      %552 = sbr.rel (%p550) target = $region40
    $region39: #{depthwise_separable_conv.5} parent=5 // pred_region
      %s553 = ssub.s32 %s9, 2
      // Predicated region
      $region41: #{depthwise_separable_conv.5} parent=39 // pred_check
        %p554 = pneg %p106
      $region42: #{depthwise_separable_conv.5} parent=39 // pred_check_branch
        %556 = sbr.rel (%p554) target = $region44
      $region43: #{depthwise_separable_conv.5} parent=39 // pred_region
        %s557 = smul.u32 32, %s15
        %p558 = scmp.lt.s32.totalorder %s557, 63
        %s559 = scalar_select %p558, %s557, 63
        %s560 = smul.addr %s559, 8
        %s561 = scalar_lea.vmem %s3, %s560
      $region44: #{depthwise_separable_conv.5} parent=39 // pred_fallthru
        _
    $region40: #{depthwise_separable_conv.5} parent=5 // pred_fallthru
      _
  $region6: #{depthwise_separable_conv.5} parent=0 // loop_footer
    %s13 = sadd.s32 1, %s9
  $region7: #{depthwise_separable_conv.5} parent=0 // loop_footer_branch
    %8 = sbr.rel target = $region3
  $region8: #{depthwise_separable_conv.5} parent=0 // loop_exit
    _

</llo_original>
